<compile_context>
chip_gen: v7x
topology: tpu7x:2x2x1
jax: 0.10.0
libtpu: 0.0.40
codegen_flags: <defaults>
</compile_context>

<pallas_src>
import jax
import jax.numpy as jnp
from jax.experimental import pallas as pl
from jax.experimental.pallas import tpu as pltpu

D_IN_HALF = 1024            # per-branch feature dim d'
D_IN = 2 * D_IN_HALF        # concat width = 2048
D_OUT = 1024


def coupling_kernel(f_ref, s_ref, w_ref, b_ref, o_ref):
    # f_ref, s_ref : (tm, 1024)  f32   row tile of features / semantics
    # w_ref        : (2048, tn)  bf16  column tile of W^T (prepared at load)
    # b_ref        : (1, tn)     f32   bias column tile
    # o_ref        : (tm, tn)    f32
    fs = f_ref[...] * s_ref[...]                       # f32 multiply on VPU
    x = jnp.concatenate(
        [fs.astype(jnp.bfloat16), s_ref[...].astype(jnp.bfloat16)], axis=1
    )                                                  # (tm, 2048) bf16
    acc = jnp.dot(x, w_ref[...], preferred_element_type=jnp.float32)
    o_ref[...] = (acc + b_ref[...]).astype(o_ref.dtype)


def prepare_coupling_params(weight, bias):
    """One-time (model-load) parameter prep, NOT in the per-call path:
    weight (1024, 2048) nn.Linear layout -> W^T (2048, 1024) in bf16,
    bias (1024,) -> (1, 1024) f32."""
    wt = jnp.asarray(weight).T.astype(jnp.bfloat16)          # (2048, 1024)
    b2 = jnp.asarray(bias).reshape(1, D_OUT).astype(jnp.float32)
    return wt, b2


def coupling_network(features, semantics, wt, b2, *, tm_max=256, tn=512):
    """
    features, semantics : (n, c, 1024) float32
    wt                  : (2048, 1024) bfloat16  (from prepare_coupling_params)
    b2                  : (1, 1024)    float32
    returns             : (n, c, 1024) float32
    """
    n, c, d = features.shape
    assert d == D_IN_HALF
    assert wt.shape == (D_IN, D_OUT)
    assert b2.shape == (1, D_OUT)
    assert D_OUT % tn == 0 and tn % 128 == 0
    assert tm_max % 8 == 0
    m = n * c

    f2 = features.reshape(m, d)
    s2 = semantics.reshape(m, d)

    # Row tiling: pad m to a sublane multiple; cap tile at tm_max.
    m_pad8 = pl.cdiv(m, 8) * 8
    if m_pad8 <= tm_max:
        tm = m_pad8
        m_pad = m_pad8
    else:
        tm = tm_max
        m_pad = pl.cdiv(m, tm) * tm
    if m_pad != m:
        pad = m_pad - m
        f2 = jnp.pad(f2, ((0, pad), (0, 0)))
        s2 = jnp.pad(s2, ((0, pad), (0, 0)))

    grid = (m_pad // tm, D_OUT // tn)

    cost = pl.CostEstimate(
        flops=2 * m_pad * D_IN * D_OUT,
        transcendentals=0,
        bytes_accessed=(wt.size * wt.dtype.itemsize         # weight (bf16)
                        + 2 * m_pad * D_IN_HALF * 4          # features + semantics
                        + m_pad * D_OUT * 4                  # output
                        + D_OUT * 4),                        # bias
    )

    out = pl.pallas_call(
        coupling_kernel,
        out_shape=jax.ShapeDtypeStruct((m_pad, D_OUT), features.dtype),
        grid_spec=pltpu.PrefetchScalarGridSpec(
            num_scalar_prefetch=0,
            grid=grid,
            in_specs=[
                # f/s tiles depend only on the row axis -> not re-fetched over j.
                pl.BlockSpec((tm, D_IN_HALF), lambda i, j: (i, 0)),  # features
                pl.BlockSpec((tm, D_IN_HALF), lambda i, j: (i, 0)),  # semantics
                pl.BlockSpec((D_IN, tn), lambda i, j: (0, j)),       # W^T (bf16)
                pl.BlockSpec((1, tn), lambda i, j: (0, j)),          # bias
            ],
            out_specs=pl.BlockSpec((tm, tn), lambda i, j: (i, j)),
        ),
        compiler_params=pltpu.CompilerParams(
            dimension_semantics=("parallel", "parallel"),
            vmem_limit_bytes=48 * 1024 * 1024,   # fits v7x (64 MiB physical)
        ),
        cost_estimate=cost,
    )(f2, s2, wt, b2)

    if m_pad != m:
        out = out[:m]
    return out.reshape(n, c, D_OUT)


def reference(features, semantics, weight, bias):
    # Pure f32 reference matching the PyTorch forward.
    fs = features * semantics
    x = jnp.concatenate([fs, semantics], axis=2).reshape(-1, D_IN)
    y = x @ weight.T + bias
    return y.reshape(features.shape[0], features.shape[1], D_OUT)


if __name__ == "__main__":
    key = jax.random.PRNGKey(0)
    k1, k2, k3, k4 = jax.random.split(key, 4)

    n, c = 2, 4  # small batch / channel; d' is fixed at 1024 by the module
    features = jax.random.normal(k1, (n, c, D_IN_HALF), dtype=jnp.float32)
    semantics = jax.random.normal(k2, (n, c, D_IN_HALF), dtype=jnp.float32)

    # Deterministic synthetic parameters (nn.Linear(2048, 1024) shapes).
    weight = jax.random.normal(k3, (D_OUT, D_IN), dtype=jnp.float32) * 0.02
    bias = jax.random.normal(k4, (D_OUT,), dtype=jnp.float32) * 0.02

    # Model-load-time prep (transpose + bf16 cast, outside per-call path).
    wt, b2 = prepare_coupling_params(weight, bias)

    out = coupling_network(features, semantics, wt, b2)
    out = jax.block_until_ready(out)

    ref = reference(features, semantics, weight, bias)
    assert out.shape == (n, c, D_OUT)
    # bf16 weights / activations in the dot -> relaxed tolerance vs f32 ref.
    assert jnp.allclose(out, ref, atol=3e-2, rtol=3e-2), "mismatch vs reference"

    print("KERNEL_OK")
</pallas_src>

<mosaic_0001>
module attributes {stable_mosaic.version = 11 : i64} {
  func.func @coupling_kernel(%arg0: i32, %arg1: i32, %arg2: memref<8x1024xf32, #tpu.memory_space<vmem>>, %arg3: memref<8x1024xf32, #tpu.memory_space<vmem>>, %arg4: memref<2048x512xbf16, #tpu.memory_space<vmem>>, %arg5: memref<1x512xf32, #tpu.memory_space<vmem>>, %arg6: memref<8x512xf32, #tpu.memory_space<vmem>>) attributes {dimension_semantics = [#tpu.dimension_semantics<parallel>, #tpu.dimension_semantics<parallel>], iteration_bounds = array<i64: 1, 2>, scalar_prefetch = 0 : i64, scratch_operands = 0 : i64, tpu.core_type = #tpu.core_type<tc>, window_params = [{transform_indices = @transform_0, window_bounds = array<i64: 8, 1024>}, {transform_indices = @transform_1, window_bounds = array<i64: 8, 1024>}, {transform_indices = @transform_2, window_bounds = array<i64: 2048, 512>}, {transform_indices = @transform_3, window_bounds = array<i64: 1, 512>}, {transform_indices = @transform_4, window_bounds = array<i64: 8, 512>}]} {
    %c0 = arith.constant 0 : index
    %c0_0 = arith.constant 0 : index
    %0 = vector.load %arg2[%c0, %c0_0] : memref<8x1024xf32, #tpu.memory_space<vmem>>, vector<8x1024xf32>
    %c0_1 = arith.constant 0 : index
    %c0_2 = arith.constant 0 : index
    %1 = vector.load %arg3[%c0_1, %c0_2] : memref<8x1024xf32, #tpu.memory_space<vmem>>, vector<8x1024xf32>
    %2 = arith.mulf %0, %1 : vector<8x1024xf32>
    %3 = arith.truncf %2 : vector<8x1024xf32> to vector<8x1024xbf16>
    %c0_3 = arith.constant 0 : index
    %c0_4 = arith.constant 0 : index
    %4 = vector.load %arg3[%c0_3, %c0_4] : memref<8x1024xf32, #tpu.memory_space<vmem>>, vector<8x1024xf32>
    %5 = arith.truncf %4 : vector<8x1024xf32> to vector<8x1024xbf16>
    %6 = tpu.concatenate %3, %5 in 1 : vector<8x1024xbf16>, vector<8x1024xbf16> -> vector<8x2048xbf16>
    %c0_5 = arith.constant 0 : index
    %c0_6 = arith.constant 0 : index
    %7 = vector.load %arg4[%c0_5, %c0_6] : memref<2048x512xbf16, #tpu.memory_space<vmem>>, vector<2048x512xbf16>
    %cst = arith.constant dense<0.000000e+00> : vector<8x512xf32>
    %8 = tpu.matmul %6, %7, %cst {dimension_numbers = #tpu.dot_dimension_numbers<[1], [0], [0], [1], [0, 0, 1, 1], [], []>} : vector<8x2048xbf16>, vector<2048x512xbf16>, vector<8x512xf32> -> vector<8x512xf32>
    %c0_7 = arith.constant 0 : index
    %c0_8 = arith.constant 0 : index
    %9 = vector.load %arg5[%c0_7, %c0_8] : memref<1x512xf32, #tpu.memory_space<vmem>>, vector<1x512xf32>
    %10 = vector.broadcast %9 : vector<1x512xf32> to vector<8x512xf32>
    %11 = arith.addf %8, %10 : vector<8x512xf32>
    %c0_9 = arith.constant 0 : index
    %c0_10 = arith.constant 0 : index
    %12 = vector.load %arg6[%c0_9, %c0_10] : memref<8x512xf32, #tpu.memory_space<vmem>>, vector<8x512xf32>
    tpu.vector_store %arg6[%c0_9, %c0_10], %11 {strides = array<i32>} : memref<8x512xf32, #tpu.memory_space<vmem>>, vector<8x512xf32>,
    return
  }
  func.func @transform_0(%arg0: i32, %arg1: i32) -> (i32, i32) {
    %c0_i32 = arith.constant 0 : i32
    %c0_i32_0 = arith.constant 0 : i32
    return %arg0, %c0_i32 : i32, i32
  }
  func.func @transform_1(%arg0: i32, %arg1: i32) -> (i32, i32) {
    %c0_i32 = arith.constant 0 : i32
    %c0_i32_0 = arith.constant 0 : i32
    return %arg0, %c0_i32 : i32, i32
  }
  func.func @transform_2(%arg0: i32, %arg1: i32) -> (i32, i32) {
    %c0_i32 = arith.constant 0 : i32
    %c0_i32_0 = arith.constant 0 : i32
    return %c0_i32, %arg1 : i32, i32
  }
  func.func @transform_3(%arg0: i32, %arg1: i32) -> (i32, i32) {
    %c0_i32 = arith.constant 0 : i32
    %c0_i32_0 = arith.constant 0 : i32
    return %c0_i32, %arg1 : i32, i32
  }
  func.func @transform_4(%arg0: i32, %arg1: i32) -> (i32, i32) {
    %c0_i32 = arith.constant 0 : i32
    return %arg0, %arg1 : i32, i32
  }
}

</mosaic_0001>

<llo_original>
// kernel: tpu_custom_call.1
$region0: #{tpu_custom_call.1}
  #allocation0 [shape = 'u32[]', space=smem, size = 0x4, offset = 0x4, fixed_abs, tag = 'smem constant byte address 0x4 - core index']
  #allocation1 [shape = 'u32[144,128]{1,0:T(1,128)}', space=vmem, size = 0x12000, scoped, tag = 'internal scratch']
  %s0 = inlined_call_operand.hbm [shape: f32[8,1024], index: 0, kind: input, shape index: {}]
  %s1 = inlined_call_operand.hbm [shape: f32[8,1024], index: 1, kind: input, shape index: {}]
  %s2 = inlined_call_operand.hbm [shape: bf16[2048,1024], index: 2, kind: input, shape index: {}]
  %s3 = inlined_call_operand.hbm [shape: f32[1,1024], index: 3, kind: input, shape index: {}]
  %s4 = inlined_call_operand.hbm [shape: f32[8,1024], index: 4, kind: output, shape index: {}]
  %s5 = sld [smem:[#allocation0]]
  $region65: #{tpu_custom_call.1} parent=0
    _
  %s7 = ssub.s32 1, %s5
  %s8 = scalar_select 0, %s7, %s5
  $region1: #{tpu_custom_call.1} parent=0
    #allocation2 [shape = 'u8[32768]{0}', space=vmem, size = 0x8000, scoped, tag = 'input window, operand 0, single buffered']
    #allocation3 [shape = 's32[2]{0}', space=sflag, size = 0x8, scoped, tag = 'scoped memory for tpu_custom_call.1']
    #allocation4 [shape = 's32[2]{0}', space=sflag, size = 0x8, scoped, tag = 'scoped memory for tpu_custom_call.1']
    #allocation5 [shape = 'u8[32768]{0}', space=vmem, size = 0x8000, scoped, tag = 'input window, operand 1, single buffered']
    #allocation6 [shape = 's32[1]{0}', space=sflag, size = 0x4, scoped, tag = 'scoped memory for tpu_custom_call.1']
    #allocation7 [shape = 'u8[4194304]{0}', space=vmem, size = 0x400000, scoped, tag = 'input window, operand 2']
    #allocation8 [shape = 'u8[4096]{0}', space=vmem, size = 0x1000, scoped, tag = 'input window, operand 3']
    #allocation9 [shape = 'u8[32768]{0}', space=vmem, size = 0x8000, scoped, tag = 'output window, operand 0']
    %9 = vsyncpa [#allocation3], 0
    %10 = vsyncpa [#allocation6], 0
    %11 = vsyncpa [#allocation4], 0
    %s12 = scalar_lea.sflag [#allocation4], 1
    %13 = vsyncpa %s12, 0
    loop: start=0, step=1, limit=4
    $region2: #{tpu_custom_call.1} parent=1 // loop_pre_header
      _
    $region3: #{tpu_custom_call.1} parent=1 // loop_header
      %s15 = sphi 0, %s19
      %p16 = scmp.ge.s32.totalorder %s15, 4
      %s22 = sphi 0, %s34
      %s23 = sphi 0, %s30
      %s24 = sphi 0, %s22
      %s25 = sphi 0, %s23
      %s26 = sphi 0, %s24
      %s27 = sphi 0, %s25
      %s37 = sphi 0, %s39
      %s40 = sphi 0, %s37
      %s41 = sphi 0, %s40
      %s57 = sphi 0, %s41
      %s63 = sphi 0, %s65
      %s66 = sphi 0, %s63
      %s67 = sphi 0, %s66
      %s83 = sphi 0, %s67
      %s89 = sphi 0, %s91
      %s92 = sphi 0, %s89
      %s93 = sphi 0, %s92
      %s109 = sphi 0, %s93
      %s115 = sphi 0, %s117
      %s118 = sphi 0, %s115
      %s119 = sphi 0, %s118
      %s135 = sphi 0, %s119
      %s143 = sphi 0, %s145
      %s146 = sphi 0, %s143
      %s147 = sphi 0, %s146
      %s163 = sphi 0, %s147
    $region4: #{tpu_custom_call.1} parent=1 // loop_header_branch
      %18 = sbr.rel (%p16) target = $region8
    $region5: #{tpu_custom_call.1} parent=1 // loop_body
      %s20 = ssub.s32 %s15, 1
      %s21 = ssub.s32 %s15, 2
      %s28 = sadd.s32 1, %s23
      %p29 = scmp.ge.s32.totalorder %s28, 2
      %s30 = scalar_select %p29, 0, %s28
      %s31 = sadd.s32 1, %s22
      %s32 = scalar_select %p29, %s31, %s22
      %p33 = scmp.ge.s32.totalorder %s32, 1
      %s34 = scalar_select %p33, 0, %s32
      %s35 = ssub.s32 %s22, %s34
      %p36 = scmp.eq.s32.totalorder %s35, 0
      %s38 = sadd.s32 %s37, 1
      %s39 = scalar_select %p36, %s37, %s38
      %p42 = pneg %p36
      %p43 = scmp.eq.s32.totalorder %s15, 1
      %p44 = por %p42, %p43
      %p45 = scmp.ne.s32.totalorder %s37, %s40
      %p46 = scmp.eq.s32.totalorder %s15, 0
      %p47 = por %p45, %p46
      %p48 = scmp.ne.s32.totalorder %s37, %s40
      %p49 = scmp.eq.s32.totalorder %s20, 1
      %p50 = por %p48, %p49
      %p51 = scmp.ne.s32.totalorder %s40, %s41
      %p52 = scmp.eq.s32.totalorder %s20, 0
      %p53 = por %p51, %p52
      %p54 = scmp.ne.s32.totalorder %s40, %s41
      %p55 = scmp.eq.s32.totalorder %s21, 1
      %p56 = por %p54, %p55
      %p58 = scmp.ne.s32.totalorder %s41, %s57
      %p59 = scmp.eq.s32.totalorder %s21, 0
      %p60 = por %p58, %p59
      %s61 = ssub.s32 %s22, %s34
      %p62 = scmp.eq.s32.totalorder %s61, 0
      %s64 = sadd.s32 %s63, 1
      %s65 = scalar_select %p62, %s63, %s64
      %p68 = pneg %p62
      %p69 = scmp.eq.s32.totalorder %s15, 1
      %p70 = por %p68, %p69
      %p71 = scmp.ne.s32.totalorder %s63, %s66
      %p72 = scmp.eq.s32.totalorder %s15, 0
      %p73 = por %p71, %p72
      %p74 = scmp.ne.s32.totalorder %s63, %s66
      %p75 = scmp.eq.s32.totalorder %s20, 1
      %p76 = por %p74, %p75
      %p77 = scmp.ne.s32.totalorder %s66, %s67
      %p78 = scmp.eq.s32.totalorder %s20, 0
      %p79 = por %p77, %p78
      %p80 = scmp.ne.s32.totalorder %s66, %s67
      %p81 = scmp.eq.s32.totalorder %s21, 1
      %p82 = por %p80, %p81
      %p84 = scmp.ne.s32.totalorder %s67, %s83
      %p85 = scmp.eq.s32.totalorder %s21, 0
      %p86 = por %p84, %p85
      %s87 = ssub.s32 %s23, %s30
      %p88 = scmp.eq.s32.totalorder %s87, 0
      %s90 = sadd.s32 %s89, 1
      %s91 = scalar_select %p88, %s89, %s90
      %p94 = pneg %p88
      %p95 = scmp.eq.s32.totalorder %s15, 1
      %p96 = por %p94, %p95
      %p97 = scmp.ne.s32.totalorder %s89, %s92
      %p98 = scmp.eq.s32.totalorder %s15, 0
      %p99 = por %p97, %p98
      %p100 = scmp.ne.s32.totalorder %s89, %s92
      %p101 = scmp.eq.s32.totalorder %s20, 1
      %p102 = por %p100, %p101
      %p103 = scmp.ne.s32.totalorder %s92, %s93
      %p104 = scmp.eq.s32.totalorder %s20, 0
      %p105 = por %p103, %p104
      %p106 = scmp.ne.s32.totalorder %s92, %s93
      %p107 = scmp.eq.s32.totalorder %s21, 1
      %p108 = por %p106, %p107
      %p110 = scmp.ne.s32.totalorder %s93, %s109
      %p111 = scmp.eq.s32.totalorder %s21, 0
      %p112 = por %p110, %p111
      %s113 = ssub.s32 %s23, %s30
      %p114 = scmp.eq.s32.totalorder %s113, 0
      %s116 = sadd.s32 %s115, 1
      %s117 = scalar_select %p114, %s115, %s116
      %p120 = pneg %p114
      %p121 = scmp.eq.s32.totalorder %s15, 1
      %p122 = por %p120, %p121
      %p123 = scmp.ne.s32.totalorder %s115, %s118
      %p124 = scmp.eq.s32.totalorder %s15, 0
      %p125 = por %p123, %p124
      %p126 = scmp.ne.s32.totalorder %s115, %s118
      %p127 = scmp.eq.s32.totalorder %s20, 1
      %p128 = por %p126, %p127
      %p129 = scmp.ne.s32.totalorder %s118, %s119
      %p130 = scmp.eq.s32.totalorder %s20, 0
      %p131 = por %p129, %p130
      %p132 = scmp.ne.s32.totalorder %s118, %s119
      %p133 = scmp.eq.s32.totalorder %s21, 1
      %p134 = por %p132, %p133
      %p136 = scmp.ne.s32.totalorder %s119, %s135
      %p137 = scmp.eq.s32.totalorder %s21, 0
      %p138 = por %p136, %p137
      %s139 = ssub.s32 %s22, %s34
      %s140 = ssub.s32 %s23, %s30
      %s141 = sor.u32 %s139, %s140
      %p142 = scmp.eq.s32.totalorder %s141, 0
      %s144 = sadd.s32 %s143, 1
      %s145 = scalar_select %p142, %s143, %s144
      %p148 = pneg %p142
      %p149 = scmp.eq.s32.totalorder %s15, 1
      %p150 = por %p148, %p149
      %p151 = scmp.ne.s32.totalorder %s143, %s146
      %p152 = scmp.eq.s32.totalorder %s15, 0
      %p153 = por %p151, %p152
      %p154 = scmp.ne.s32.totalorder %s143, %s146
      %p155 = scmp.eq.s32.totalorder %s20, 1
      %p156 = por %p154, %p155
      %p157 = scmp.ne.s32.totalorder %s146, %s147
      %p158 = scmp.eq.s32.totalorder %s20, 0
      %p159 = por %p157, %p158
      %p160 = scmp.ne.s32.totalorder %s146, %s147
      %p161 = scmp.eq.s32.totalorder %s21, 1
      %p162 = por %p160, %p161
      %p164 = scmp.ne.s32.totalorder %s147, %s163
      %p165 = scmp.eq.s32.totalorder %s21, 0
      %p166 = por %p164, %p165
      %p167 = scmp.le.s32.totalorder 1, %s15
      %p168 = scmp.lt.s32.totalorder %s15, 3
      %p169 = pnand %p167, %p168
      %p170 = pneg %p169
      // Predicated region
      $region9: #{tpu_custom_call.1} parent=5 // pred_check
        _
      $region10: #{tpu_custom_call.1} parent=5 // pred_check_branch
        %172 = sbr.rel (%p169) target = $region12
      $region11: #{tpu_custom_call.1} parent=5 // pred_region
        %s173 = ssub.s32 %s15, 1
        // Predicated region
        $region13: #{tpu_custom_call.1} parent=11 // pred_check
          %p174 = pneg %p53
        $region14: #{tpu_custom_call.1} parent=11 // pred_check_branch
          %176 = sbr.rel (%p174) target = $region16
        $region15: #{tpu_custom_call.1} parent=11 // pred_region
          %s178 = ssub.s32 1024, 1024
          %179 = vsyncadd [#allocation3], %s178
          %s180 = smul.addr %s24, 8
          %s181 = smul.addr %s180, 128
          %s182 = scalar_lea.hbm %s0, %s181
          %s184 = sshll.u32 [#allocation2], 4
          %s185 = int_to_ptr.vmem [resolvable:$true] %s184
          %187 = dma.hbm_to_vmem [thread:$0]  %s182, 1024, %s185, [#allocation3]
        $region16: #{tpu_custom_call.1} parent=11 // pred_fallthru
          _
        // Predicated region
        $region17: #{tpu_custom_call.1} parent=11 // pred_check
          %p188 = pneg %p79
        $region18: #{tpu_custom_call.1} parent=11 // pred_check_branch
          %190 = sbr.rel (%p188) target = $region20
        $region19: #{tpu_custom_call.1} parent=11 // pred_region
          %s192 = ssub.s32 1024, 1024
          %193 = vsyncadd [#allocation6], %s192
          %s194 = smul.addr %s24, 8
          %s195 = smul.addr %s194, 128
          %s196 = scalar_lea.hbm %s1, %s195
          %s198 = sshll.u32 [#allocation5], 4
          %s199 = int_to_ptr.vmem [resolvable:$true] %s198
          %201 = dma.hbm_to_vmem [thread:$0]  %s196, 1024, %s199, [#allocation6]
        $region20: #{tpu_custom_call.1} parent=11 // pred_fallthru
          _
      $region12: #{tpu_custom_call.1} parent=5 // pred_fallthru
        _
      %p202 = scmp.lt.s32.totalorder %s15, 2
      // Predicated region
      $region21: #{tpu_custom_call.1} parent=5 // pred_check
        %p203 = pneg %p202
      $region22: #{tpu_custom_call.1} parent=5 // pred_check_branch
        %205 = sbr.rel (%p203) target = $region24
      $region23: #{tpu_custom_call.1} parent=5 // pred_region
        // Predicated region
        $region25: #{tpu_custom_call.1} parent=23 // pred_check
          %p206 = pneg %p99
        $region26: #{tpu_custom_call.1} parent=23 // pred_check_branch
          %208 = sbr.rel (%p206) target = $region28
        $region27: #{tpu_custom_call.1} parent=23 // pred_region
          %s209 = sand.u32 %s15, 1
          %s210 = scalar_lea.sflag [#allocation3], %s209
          %s211 = sand.u32 %s89, 1
          %s212 = smul.addr %s211, 4096
          %s213 = scalar_lea.vmem [#allocation7], %s212
          %s214 = smul.u32 4, %s23
          %s216 = ssub.s32 65536, 65536
          %217 = vsyncadd %s210, %s216
          %s218 = smul.addr %s214, 64
          %s219 = scalar_lea.hbm %s2, %s218
          %s220 = sshll.u32 %s213, 4
          %s221 = int_to_ptr.vmem [resolvable:$true] %s220
          %226 = dma.hbm_to_vmem [thread:$0]  %s219, 65536, %s221, %s210, 512, 256, 16
        $region28: #{tpu_custom_call.1} parent=23 // pred_fallthru
          _
        // Predicated region
        $region29: #{tpu_custom_call.1} parent=23 // pred_check
          %p227 = pneg %p125
        $region30: #{tpu_custom_call.1} parent=23 // pred_check_branch
          %229 = sbr.rel (%p227) target = $region32
        $region31: #{tpu_custom_call.1} parent=23 // pred_region
          %s230 = sand.u32 %s15, 1
          %s231 = scalar_lea.sflag [#allocation3], %s230
          %s232 = sand.u32 %s115, 1
          %s233 = smul.addr %s232, 4
          %s234 = scalar_lea.vmem [#allocation8], %s233
          %s235 = smul.u32 4, %s23
          %s237 = ssub.s32 64, 64
          %238 = vsyncadd %s231, %s237
          %s239 = smul.addr %s235, 16
          %s240 = scalar_lea.hbm %s3, %s239
          %s242 = sshll.u32 %s234, 4
          %s243 = int_to_ptr.vmem [resolvable:$true] %s242
          %245 = dma.hbm_to_vmem [thread:$0]  %s240, 64, %s243, %s231
        $region32: #{tpu_custom_call.1} parent=23 // pred_fallthru
          _
      $region24: #{tpu_custom_call.1} parent=5 // pred_fallthru
        _
      %p246 = scmp.le.s32.totalorder 1, %s15
      %p247 = scmp.lt.s32.totalorder %s15, 3
      %p248 = pnand %p246, %p247
      %p249 = pneg %p248
      // Predicated region
      $region33: #{tpu_custom_call.1} parent=5 // pred_check
        _
      $region34: #{tpu_custom_call.1} parent=5 // pred_check_branch
        %251 = sbr.rel (%p248) target = $region36
      $region35: #{tpu_custom_call.1} parent=5 // pred_region
        %s252 = ssub.s32 %s15, 1
        // Predicated region
        $region37: #{tpu_custom_call.1} parent=35 // pred_check
          %p253 = pneg %p53
        $region38: #{tpu_custom_call.1} parent=35 // pred_check_branch
          %255 = sbr.rel (%p253) target = $region40
        $region39: #{tpu_custom_call.1} parent=35 // pred_region
          %256 = dma.done [#allocation3], 1024
        $region40: #{tpu_custom_call.1} parent=35 // pred_fallthru
          _
        // Predicated region
        $region41: #{tpu_custom_call.1} parent=35 // pred_check
          %p257 = pneg %p79
        $region42: #{tpu_custom_call.1} parent=35 // pred_check_branch
          %259 = sbr.rel (%p257) target = $region44
        $region43: #{tpu_custom_call.1} parent=35 // pred_region
          %260 = dma.done [#allocation6], 1024
        $region44: #{tpu_custom_call.1} parent=35 // pred_fallthru
          _
        %s261 = sand.u32 %s20, 1
        %s262 = scalar_lea.sflag [#allocation3], %s261
        %s263 = sand.u32 %s92, 1
        %s264 = smul.addr %s263, 4096
        %s265 = scalar_lea.vmem [#allocation7], %s264
        // Predicated region
        $region45: #{tpu_custom_call.1} parent=35 // pred_check
          %p266 = pneg %p105
        $region46: #{tpu_custom_call.1} parent=35 // pred_check_branch
          %268 = sbr.rel (%p266) target = $region48
        $region47: #{tpu_custom_call.1} parent=35 // pred_region
          %269 = dma.done %s262, 65536
        $region48: #{tpu_custom_call.1} parent=35 // pred_fallthru
          _
        %s270 = sand.u32 %s20, 1
        %s271 = scalar_lea.sflag [#allocation3], %s270
        %s272 = sand.u32 %s118, 1
        %s273 = smul.addr %s272, 4
        %s274 = scalar_lea.vmem [#allocation8], %s273
        // Predicated region
        $region49: #{tpu_custom_call.1} parent=35 // pred_check
          %p275 = pneg %p131
        $region50: #{tpu_custom_call.1} parent=35 // pred_check_branch
          %277 = sbr.rel (%p275) target = $region52
        $region51: #{tpu_custom_call.1} parent=35 // pred_region
          %278 = dma.done %s271, 64
        $region52: #{tpu_custom_call.1} parent=35 // pred_fallthru
          _
        %p279 = pneg %p53
        %p280 = pneg %p50
        %p281 = pneg %p79
        %p282 = pneg %p76
        %s283 = sand.u32 %s20, 1
        %s284 = scalar_lea.sflag [#allocation3], %s283
        %s285 = sand.u32 %s92, 1
        %s286 = smul.addr %s285, 4096
        %s287 = scalar_lea.vmem [#allocation7], %s286
        %p288 = pneg %p105
        %p289 = pneg %p102
        %s290 = sand.u32 %s20, 1
        %s291 = scalar_lea.sflag [#allocation3], %s290
        %s292 = sand.u32 %s118, 1
        %s293 = smul.addr %s292, 4
        %s294 = scalar_lea.vmem [#allocation8], %s293
        %p295 = pneg %p131
        %p296 = pneg %p128
        %p297 = pneg %p159
        %p298 = pneg %p156
        %s299 = sand.u32 %s146, 1
        %s300 = scalar_lea.sflag [#allocation4], %s299
        %s301 = sand.u32 %s146, 1
        %s302 = smul.addr %s301, 32
        %s303 = scalar_lea.vmem [#allocation9], %s302
        %s304 = smul.u32 4, %s25
        %s305 = smul.u32 4, %s25
        %s306 = smul.u32 4, %s25
        %v307 = vld [vmem:[#allocation2] sm:$0xff]
        %v308 = vld [vmem:[#allocation2 + $0x8] sm:$0xff]
        %v309 = vld [vmem:[#allocation2 + $0x10] sm:$0xff]
        %v310 = vld [vmem:[#allocation2 + $0x18] sm:$0xff]
        %v311 = vld [vmem:[#allocation2 + $0x20] sm:$0xff]
        %v312 = vld [vmem:[#allocation2 + $0x28] sm:$0xff]
        %v313 = vld [vmem:[#allocation2 + $0x30] sm:$0xff]
        %v314 = vld [vmem:[#allocation2 + $0x38] sm:$0xff]
        %v315 = vld [vmem:[#allocation5] sm:$0xff]
        %v316 = vld [vmem:[#allocation5 + $0x8] sm:$0xff]
        %v317 = vld [vmem:[#allocation5 + $0x10] sm:$0xff]
        %v318 = vld [vmem:[#allocation5 + $0x18] sm:$0xff]
        %v319 = vld [vmem:[#allocation5 + $0x20] sm:$0xff]
        %v320 = vld [vmem:[#allocation5 + $0x28] sm:$0xff]
        %v321 = vld [vmem:[#allocation5 + $0x30] sm:$0xff]
        %v322 = vld [vmem:[#allocation5 + $0x38] sm:$0xff]
        %v323 = vmul.f32 %v307, %v315
        %v324 = vmul.f32 %v308, %v316
        %v325 = vmul.f32 %v309, %v317
        %v326 = vmul.f32 %v310, %v318
        %v327 = vmul.f32 %v311, %v319
        %v328 = vmul.f32 %v312, %v320
        %v329 = vmul.f32 %v313, %v321
        %v330 = vmul.f32 %v314, %v322
        %v331 = vpack.c.bf16 %v323, %v323
        %v332 = vpack.c.bf16 %v324, %v324
        %v333 = vpack.c.bf16 %v325, %v325
        %v334 = vpack.c.bf16 %v326, %v326
        %v335 = vpack.c.bf16 %v327, %v327
        %v336 = vpack.c.bf16 %v328, %v328
        %v337 = vpack.c.bf16 %v329, %v329
        %v338 = vpack.c.bf16 %v330, %v330
        %v339 = vpack.c.bf16 %v315, %v315
        %v340 = vpack.c.bf16 %v316, %v316
        %v341 = vpack.c.bf16 %v317, %v317
        %v342 = vpack.c.bf16 %v318, %v318
        %v343 = vpack.c.bf16 %v319, %v319
        %v344 = vpack.c.bf16 %v320, %v320
        %v345 = vpack.c.bf16 %v321, %v321
        %v346 = vpack.c.bf16 %v322, %v322
        %v347 = vld [vmem:[%s265] sm:$0xff]
        %v348 = vld [vmem:[%s265 + $0x8] sm:$0xff]
        %v349 = vld [vmem:[%s265 + $0x10] sm:$0xff]
        %v350 = vld [vmem:[%s265 + $0x18] sm:$0xff]
        %v351 = vld [vmem:[%s265 + $0x20] sm:$0xff]
        %v352 = vld [vmem:[%s265 + $0x28] sm:$0xff]
        %v353 = vld [vmem:[%s265 + $0x30] sm:$0xff]
        %v354 = vld [vmem:[%s265 + $0x38] sm:$0xff]
        %v355 = vld [vmem:[%s265 + $0x40] sm:$0xff]
        %v356 = vld [vmem:[%s265 + $0x48] sm:$0xff]
        %v357 = vld [vmem:[%s265 + $0x50] sm:$0xff]
        %v358 = vld [vmem:[%s265 + $0x58] sm:$0xff]
        %v359 = vld [vmem:[%s265 + $0x60] sm:$0xff]
        %v360 = vld [vmem:[%s265 + $0x68] sm:$0xff]
        %v361 = vld [vmem:[%s265 + $0x70] sm:$0xff]
        %v362 = vld [vmem:[%s265 + $0x78] sm:$0xff]
        %v363 = vld [vmem:[%s265 + $0x80] sm:$0xff]
        %v364 = vld [vmem:[%s265 + $0x88] sm:$0xff]
        %v365 = vld [vmem:[%s265 + $0x90] sm:$0xff]
        %v366 = vld [vmem:[%s265 + $0x98] sm:$0xff]
        %v367 = vld [vmem:[%s265 + $0xa0] sm:$0xff]
        %v368 = vld [vmem:[%s265 + $0xa8] sm:$0xff]
        %v369 = vld [vmem:[%s265 + $0xb0] sm:$0xff]
        %v370 = vld [vmem:[%s265 + $0xb8] sm:$0xff]
        %v371 = vld [vmem:[%s265 + $0xc0] sm:$0xff]
        %v372 = vld [vmem:[%s265 + $0xc8] sm:$0xff]
        %v373 = vld [vmem:[%s265 + $0xd0] sm:$0xff]
        %v374 = vld [vmem:[%s265 + $0xd8] sm:$0xff]
        %v375 = vld [vmem:[%s265 + $0xe0] sm:$0xff]
        %v376 = vld [vmem:[%s265 + $0xe8] sm:$0xff]
        %v377 = vld [vmem:[%s265 + $0xf0] sm:$0xff]
        %v378 = vld [vmem:[%s265 + $0xf8] sm:$0xff]
        %v379 = vld [vmem:[%s265 + $0x100] sm:$0xff]
        %v380 = vld [vmem:[%s265 + $0x108] sm:$0xff]
        %v381 = vld [vmem:[%s265 + $0x110] sm:$0xff]
        %v382 = vld [vmem:[%s265 + $0x118] sm:$0xff]
        %v383 = vld [vmem:[%s265 + $0x120] sm:$0xff]
        %v384 = vld [vmem:[%s265 + $0x128] sm:$0xff]
        %v385 = vld [vmem:[%s265 + $0x130] sm:$0xff]
        %v386 = vld [vmem:[%s265 + $0x138] sm:$0xff]
        %v387 = vld [vmem:[%s265 + $0x140] sm:$0xff]
        %v388 = vld [vmem:[%s265 + $0x148] sm:$0xff]
        %v389 = vld [vmem:[%s265 + $0x150] sm:$0xff]
        %v390 = vld [vmem:[%s265 + $0x158] sm:$0xff]
        %v391 = vld [vmem:[%s265 + $0x160] sm:$0xff]
        %v392 = vld [vmem:[%s265 + $0x168] sm:$0xff]
        %v393 = vld [vmem:[%s265 + $0x170] sm:$0xff]
        %v394 = vld [vmem:[%s265 + $0x178] sm:$0xff]
        %v395 = vld [vmem:[%s265 + $0x180] sm:$0xff]
        %v396 = vld [vmem:[%s265 + $0x188] sm:$0xff]
        %v397 = vld [vmem:[%s265 + $0x190] sm:$0xff]
        %v398 = vld [vmem:[%s265 + $0x198] sm:$0xff]
        %v399 = vld [vmem:[%s265 + $0x1a0] sm:$0xff]
        %v400 = vld [vmem:[%s265 + $0x1a8] sm:$0xff]
        %v401 = vld [vmem:[%s265 + $0x1b0] sm:$0xff]
        %v402 = vld [vmem:[%s265 + $0x1b8] sm:$0xff]
        %v403 = vld [vmem:[%s265 + $0x1c0] sm:$0xff]
        %v404 = vld [vmem:[%s265 + $0x1c8] sm:$0xff]
        %v405 = vld [vmem:[%s265 + $0x1d0] sm:$0xff]
        %v406 = vld [vmem:[%s265 + $0x1d8] sm:$0xff]
        %v407 = vld [vmem:[%s265 + $0x1e0] sm:$0xff]
        %v408 = vld [vmem:[%s265 + $0x1e8] sm:$0xff]
        %v409 = vld [vmem:[%s265 + $0x1f0] sm:$0xff]
        %v410 = vld [vmem:[%s265 + $0x1f8] sm:$0xff]
        %v411 = vld [vmem:[%s265 + $0x200] sm:$0xff]
        %v412 = vld [vmem:[%s265 + $0x208] sm:$0xff]
        %v413 = vld [vmem:[%s265 + $0x210] sm:$0xff]
        %v414 = vld [vmem:[%s265 + $0x218] sm:$0xff]
        %v415 = vld [vmem:[%s265 + $0x220] sm:$0xff]
        %v416 = vld [vmem:[%s265 + $0x228] sm:$0xff]
        %v417 = vld [vmem:[%s265 + $0x230] sm:$0xff]
        %v418 = vld [vmem:[%s265 + $0x238] sm:$0xff]
        %v419 = vld [vmem:[%s265 + $0x240] sm:$0xff]
        %v420 = vld [vmem:[%s265 + $0x248] sm:$0xff]
        %v421 = vld [vmem:[%s265 + $0x250] sm:$0xff]
        %v422 = vld [vmem:[%s265 + $0x258] sm:$0xff]
        %v423 = vld [vmem:[%s265 + $0x260] sm:$0xff]
        %v424 = vld [vmem:[%s265 + $0x268] sm:$0xff]
        %v425 = vld [vmem:[%s265 + $0x270] sm:$0xff]
        %v426 = vld [vmem:[%s265 + $0x278] sm:$0xff]
        %v427 = vld [vmem:[%s265 + $0x280] sm:$0xff]
        %v428 = vld [vmem:[%s265 + $0x288] sm:$0xff]
        %v429 = vld [vmem:[%s265 + $0x290] sm:$0xff]
        %v430 = vld [vmem:[%s265 + $0x298] sm:$0xff]
        %v431 = vld [vmem:[%s265 + $0x2a0] sm:$0xff]
        %v432 = vld [vmem:[%s265 + $0x2a8] sm:$0xff]
        %v433 = vld [vmem:[%s265 + $0x2b0] sm:$0xff]
        %v434 = vld [vmem:[%s265 + $0x2b8] sm:$0xff]
        %v435 = vld [vmem:[%s265 + $0x2c0] sm:$0xff]
        %v436 = vld [vmem:[%s265 + $0x2c8] sm:$0xff]
        %v437 = vld [vmem:[%s265 + $0x2d0] sm:$0xff]
        %v438 = vld [vmem:[%s265 + $0x2d8] sm:$0xff]
        %v439 = vld [vmem:[%s265 + $0x2e0] sm:$0xff]
        %v440 = vld [vmem:[%s265 + $0x2e8] sm:$0xff]
        %v441 = vld [vmem:[%s265 + $0x2f0] sm:$0xff]
        %v442 = vld [vmem:[%s265 + $0x2f8] sm:$0xff]
        %v443 = vld [vmem:[%s265 + $0x300] sm:$0xff]
        %v444 = vld [vmem:[%s265 + $0x308] sm:$0xff]
        %v445 = vld [vmem:[%s265 + $0x310] sm:$0xff]
        %v446 = vld [vmem:[%s265 + $0x318] sm:$0xff]
        %v447 = vld [vmem:[%s265 + $0x320] sm:$0xff]
        %v448 = vld [vmem:[%s265 + $0x328] sm:$0xff]
        %v449 = vld [vmem:[%s265 + $0x330] sm:$0xff]
        %v450 = vld [vmem:[%s265 + $0x338] sm:$0xff]
        %v451 = vld [vmem:[%s265 + $0x340] sm:$0xff]
        %v452 = vld [vmem:[%s265 + $0x348] sm:$0xff]
        %v453 = vld [vmem:[%s265 + $0x350] sm:$0xff]
        %v454 = vld [vmem:[%s265 + $0x358] sm:$0xff]
        %v455 = vld [vmem:[%s265 + $0x360] sm:$0xff]
        %v456 = vld [vmem:[%s265 + $0x368] sm:$0xff]
        %v457 = vld [vmem:[%s265 + $0x370] sm:$0xff]
        %v458 = vld [vmem:[%s265 + $0x378] sm:$0xff]
        %v459 = vld [vmem:[%s265 + $0x380] sm:$0xff]
        %v460 = vld [vmem:[%s265 + $0x388] sm:$0xff]
        %v461 = vld [vmem:[%s265 + $0x390] sm:$0xff]
        %v462 = vld [vmem:[%s265 + $0x398] sm:$0xff]
        %v463 = vld [vmem:[%s265 + $0x3a0] sm:$0xff]
        %v464 = vld [vmem:[%s265 + $0x3a8] sm:$0xff]
        %v465 = vld [vmem:[%s265 + $0x3b0] sm:$0xff]
        %v466 = vld [vmem:[%s265 + $0x3b8] sm:$0xff]
        %v467 = vld [vmem:[%s265 + $0x3c0] sm:$0xff]
        %v468 = vld [vmem:[%s265 + $0x3c8] sm:$0xff]
        %v469 = vld [vmem:[%s265 + $0x3d0] sm:$0xff]
        %v470 = vld [vmem:[%s265 + $0x3d8] sm:$0xff]
        %v471 = vld [vmem:[%s265 + $0x3e0] sm:$0xff]
        %v472 = vld [vmem:[%s265 + $0x3e8] sm:$0xff]
        %v473 = vld [vmem:[%s265 + $0x3f0] sm:$0xff]
        %v474 = vld [vmem:[%s265 + $0x3f8] sm:$0xff]
        %v475 = vld [vmem:[%s265 + $0x400] sm:$0xff]
        %v476 = vld [vmem:[%s265 + $0x408] sm:$0xff]
        %v477 = vld [vmem:[%s265 + $0x410] sm:$0xff]
        %v478 = vld [vmem:[%s265 + $0x418] sm:$0xff]
        %v479 = vld [vmem:[%s265 + $0x420] sm:$0xff]
        %v480 = vld [vmem:[%s265 + $0x428] sm:$0xff]
        %v481 = vld [vmem:[%s265 + $0x430] sm:$0xff]
        %v482 = vld [vmem:[%s265 + $0x438] sm:$0xff]
        %v483 = vld [vmem:[%s265 + $0x440] sm:$0xff]
        %v484 = vld [vmem:[%s265 + $0x448] sm:$0xff]
        %v485 = vld [vmem:[%s265 + $0x450] sm:$0xff]
        %v486 = vld [vmem:[%s265 + $0x458] sm:$0xff]
        %v487 = vld [vmem:[%s265 + $0x460] sm:$0xff]
        %v488 = vld [vmem:[%s265 + $0x468] sm:$0xff]
        %v489 = vld [vmem:[%s265 + $0x470] sm:$0xff]
        %v490 = vld [vmem:[%s265 + $0x478] sm:$0xff]
        %v491 = vld [vmem:[%s265 + $0x480] sm:$0xff]
        %v492 = vld [vmem:[%s265 + $0x488] sm:$0xff]
        %v493 = vld [vmem:[%s265 + $0x490] sm:$0xff]
        %v494 = vld [vmem:[%s265 + $0x498] sm:$0xff]
        %v495 = vld [vmem:[%s265 + $0x4a0] sm:$0xff]
        %v496 = vld [vmem:[%s265 + $0x4a8] sm:$0xff]
        %v497 = vld [vmem:[%s265 + $0x4b0] sm:$0xff]
        %v498 = vld [vmem:[%s265 + $0x4b8] sm:$0xff]
        %v499 = vld [vmem:[%s265 + $0x4c0] sm:$0xff]
        %v500 = vld [vmem:[%s265 + $0x4c8] sm:$0xff]
        %v501 = vld [vmem:[%s265 + $0x4d0] sm:$0xff]
        %v502 = vld [vmem:[%s265 + $0x4d8] sm:$0xff]
        %v503 = vld [vmem:[%s265 + $0x4e0] sm:$0xff]
        %v504 = vld [vmem:[%s265 + $0x4e8] sm:$0xff]
        %v505 = vld [vmem:[%s265 + $0x4f0] sm:$0xff]
        %v506 = vld [vmem:[%s265 + $0x4f8] sm:$0xff]
        %v507 = vld [vmem:[%s265 + $0x500] sm:$0xff]
        %v508 = vld [vmem:[%s265 + $0x508] sm:$0xff]
        %v509 = vld [vmem:[%s265 + $0x510] sm:$0xff]
        %v510 = vld [vmem:[%s265 + $0x518] sm:$0xff]
        %v511 = vld [vmem:[%s265 + $0x520] sm:$0xff]
        %v512 = vld [vmem:[%s265 + $0x528] sm:$0xff]
        %v513 = vld [vmem:[%s265 + $0x530] sm:$0xff]
        %v514 = vld [vmem:[%s265 + $0x538] sm:$0xff]
        %v515 = vld [vmem:[%s265 + $0x540] sm:$0xff]
        %v516 = vld [vmem:[%s265 + $0x548] sm:$0xff]
        %v517 = vld [vmem:[%s265 + $0x550] sm:$0xff]
        %v518 = vld [vmem:[%s265 + $0x558] sm:$0xff]
        %v519 = vld [vmem:[%s265 + $0x560] sm:$0xff]
        %v520 = vld [vmem:[%s265 + $0x568] sm:$0xff]
        %v521 = vld [vmem:[%s265 + $0x570] sm:$0xff]
        %v522 = vld [vmem:[%s265 + $0x578] sm:$0xff]
        %v523 = vld [vmem:[%s265 + $0x580] sm:$0xff]
        %v524 = vld [vmem:[%s265 + $0x588] sm:$0xff]
        %v525 = vld [vmem:[%s265 + $0x590] sm:$0xff]
        %v526 = vld [vmem:[%s265 + $0x598] sm:$0xff]
        %v527 = vld [vmem:[%s265 + $0x5a0] sm:$0xff]
        %v528 = vld [vmem:[%s265 + $0x5a8] sm:$0xff]
        %v529 = vld [vmem:[%s265 + $0x5b0] sm:$0xff]
        %v530 = vld [vmem:[%s265 + $0x5b8] sm:$0xff]
        %v531 = vld [vmem:[%s265 + $0x5c0] sm:$0xff]
        %v532 = vld [vmem:[%s265 + $0x5c8] sm:$0xff]
        %v533 = vld [vmem:[%s265 + $0x5d0] sm:$0xff]
        %v534 = vld [vmem:[%s265 + $0x5d8] sm:$0xff]
        %v535 = vld [vmem:[%s265 + $0x5e0] sm:$0xff]
        %v536 = vld [vmem:[%s265 + $0x5e8] sm:$0xff]
        %v537 = vld [vmem:[%s265 + $0x5f0] sm:$0xff]
        %v538 = vld [vmem:[%s265 + $0x5f8] sm:$0xff]
        %v539 = vld [vmem:[%s265 + $0x600] sm:$0xff]
        %v540 = vld [vmem:[%s265 + $0x608] sm:$0xff]
        %v541 = vld [vmem:[%s265 + $0x610] sm:$0xff]
        %v542 = vld [vmem:[%s265 + $0x618] sm:$0xff]
        %v543 = vld [vmem:[%s265 + $0x620] sm:$0xff]
        %v544 = vld [vmem:[%s265 + $0x628] sm:$0xff]
        %v545 = vld [vmem:[%s265 + $0x630] sm:$0xff]
        %v546 = vld [vmem:[%s265 + $0x638] sm:$0xff]
        %v547 = vld [vmem:[%s265 + $0x640] sm:$0xff]
        %v548 = vld [vmem:[%s265 + $0x648] sm:$0xff]
        %v549 = vld [vmem:[%s265 + $0x650] sm:$0xff]
        %v550 = vld [vmem:[%s265 + $0x658] sm:$0xff]
        %v551 = vld [vmem:[%s265 + $0x660] sm:$0xff]
        %v552 = vld [vmem:[%s265 + $0x668] sm:$0xff]
        %v553 = vld [vmem:[%s265 + $0x670] sm:$0xff]
        %v554 = vld [vmem:[%s265 + $0x678] sm:$0xff]
        %v555 = vld [vmem:[%s265 + $0x680] sm:$0xff]
        %v556 = vld [vmem:[%s265 + $0x688] sm:$0xff]
        %v557 = vld [vmem:[%s265 + $0x690] sm:$0xff]
        %v558 = vld [vmem:[%s265 + $0x698] sm:$0xff]
        %v559 = vld [vmem:[%s265 + $0x6a0] sm:$0xff]
        %v560 = vld [vmem:[%s265 + $0x6a8] sm:$0xff]
        %v561 = vld [vmem:[%s265 + $0x6b0] sm:$0xff]
        %v562 = vld [vmem:[%s265 + $0x6b8] sm:$0xff]
        %v563 = vld [vmem:[%s265 + $0x6c0] sm:$0xff]
        %v564 = vld [vmem:[%s265 + $0x6c8] sm:$0xff]
        %v565 = vld [vmem:[%s265 + $0x6d0] sm:$0xff]
        %v566 = vld [vmem:[%s265 + $0x6d8] sm:$0xff]
        %v567 = vld [vmem:[%s265 + $0x6e0] sm:$0xff]
        %v568 = vld [vmem:[%s265 + $0x6e8] sm:$0xff]
        %v569 = vld [vmem:[%s265 + $0x6f0] sm:$0xff]
        %v570 = vld [vmem:[%s265 + $0x6f8] sm:$0xff]
        %v571 = vld [vmem:[%s265 + $0x700] sm:$0xff]
        %v572 = vld [vmem:[%s265 + $0x708] sm:$0xff]
        %v573 = vld [vmem:[%s265 + $0x710] sm:$0xff]
        %v574 = vld [vmem:[%s265 + $0x718] sm:$0xff]
        %v575 = vld [vmem:[%s265 + $0x720] sm:$0xff]
        %v576 = vld [vmem:[%s265 + $0x728] sm:$0xff]
        %v577 = vld [vmem:[%s265 + $0x730] sm:$0xff]
        %v578 = vld [vmem:[%s265 + $0x738] sm:$0xff]
        %v579 = vld [vmem:[%s265 + $0x740] sm:$0xff]
        %v580 = vld [vmem:[%s265 + $0x748] sm:$0xff]
        %v581 = vld [vmem:[%s265 + $0x750] sm:$0xff]
        %v582 = vld [vmem:[%s265 + $0x758] sm:$0xff]
        %v583 = vld [vmem:[%s265 + $0x760] sm:$0xff]
        %v584 = vld [vmem:[%s265 + $0x768] sm:$0xff]
        %v585 = vld [vmem:[%s265 + $0x770] sm:$0xff]
        %v586 = vld [vmem:[%s265 + $0x778] sm:$0xff]
        %v587 = vld [vmem:[%s265 + $0x780] sm:$0xff]
        %v588 = vld [vmem:[%s265 + $0x788] sm:$0xff]
        %v589 = vld [vmem:[%s265 + $0x790] sm:$0xff]
        %v590 = vld [vmem:[%s265 + $0x798] sm:$0xff]
        %v591 = vld [vmem:[%s265 + $0x7a0] sm:$0xff]
        %v592 = vld [vmem:[%s265 + $0x7a8] sm:$0xff]
        %v593 = vld [vmem:[%s265 + $0x7b0] sm:$0xff]
        %v594 = vld [vmem:[%s265 + $0x7b8] sm:$0xff]
        %v595 = vld [vmem:[%s265 + $0x7c0] sm:$0xff]
        %v596 = vld [vmem:[%s265 + $0x7c8] sm:$0xff]
        %v597 = vld [vmem:[%s265 + $0x7d0] sm:$0xff]
        %v598 = vld [vmem:[%s265 + $0x7d8] sm:$0xff]
        %v599 = vld [vmem:[%s265 + $0x7e0] sm:$0xff]
        %v600 = vld [vmem:[%s265 + $0x7e8] sm:$0xff]
        %v601 = vld [vmem:[%s265 + $0x7f0] sm:$0xff]
        %v602 = vld [vmem:[%s265 + $0x7f8] sm:$0xff]
        %v603 = vld [vmem:[%s265 + $0x800] sm:$0xff]
        %v604 = vld [vmem:[%s265 + $0x808] sm:$0xff]
        %v605 = vld [vmem:[%s265 + $0x810] sm:$0xff]
        %v606 = vld [vmem:[%s265 + $0x818] sm:$0xff]
        %v607 = vld [vmem:[%s265 + $0x820] sm:$0xff]
        %v608 = vld [vmem:[%s265 + $0x828] sm:$0xff]
        %v609 = vld [vmem:[%s265 + $0x830] sm:$0xff]
        %v610 = vld [vmem:[%s265 + $0x838] sm:$0xff]
        %v611 = vld [vmem:[%s265 + $0x840] sm:$0xff]
        %v612 = vld [vmem:[%s265 + $0x848] sm:$0xff]
        %v613 = vld [vmem:[%s265 + $0x850] sm:$0xff]
        %v614 = vld [vmem:[%s265 + $0x858] sm:$0xff]
        %v615 = vld [vmem:[%s265 + $0x860] sm:$0xff]
        %v616 = vld [vmem:[%s265 + $0x868] sm:$0xff]
        %v617 = vld [vmem:[%s265 + $0x870] sm:$0xff]
        %v618 = vld [vmem:[%s265 + $0x878] sm:$0xff]
        %v619 = vld [vmem:[%s265 + $0x880] sm:$0xff]
        %v620 = vld [vmem:[%s265 + $0x888] sm:$0xff]
        %v621 = vld [vmem:[%s265 + $0x890] sm:$0xff]
        %v622 = vld [vmem:[%s265 + $0x898] sm:$0xff]
        %v623 = vld [vmem:[%s265 + $0x8a0] sm:$0xff]
        %v624 = vld [vmem:[%s265 + $0x8a8] sm:$0xff]
        %v625 = vld [vmem:[%s265 + $0x8b0] sm:$0xff]
        %v626 = vld [vmem:[%s265 + $0x8b8] sm:$0xff]
        %v627 = vld [vmem:[%s265 + $0x8c0] sm:$0xff]
        %v628 = vld [vmem:[%s265 + $0x8c8] sm:$0xff]
        %v629 = vld [vmem:[%s265 + $0x8d0] sm:$0xff]
        %v630 = vld [vmem:[%s265 + $0x8d8] sm:$0xff]
        %v631 = vld [vmem:[%s265 + $0x8e0] sm:$0xff]
        %v632 = vld [vmem:[%s265 + $0x8e8] sm:$0xff]
        %v633 = vld [vmem:[%s265 + $0x8f0] sm:$0xff]
        %v634 = vld [vmem:[%s265 + $0x8f8] sm:$0xff]
        %v635 = vld [vmem:[%s265 + $0x900] sm:$0xff]
        %v636 = vld [vmem:[%s265 + $0x908] sm:$0xff]
        %v637 = vld [vmem:[%s265 + $0x910] sm:$0xff]
        %v638 = vld [vmem:[%s265 + $0x918] sm:$0xff]
        %v639 = vld [vmem:[%s265 + $0x920] sm:$0xff]
        %v640 = vld [vmem:[%s265 + $0x928] sm:$0xff]
        %v641 = vld [vmem:[%s265 + $0x930] sm:$0xff]
        %v642 = vld [vmem:[%s265 + $0x938] sm:$0xff]
        %v643 = vld [vmem:[%s265 + $0x940] sm:$0xff]
        %v644 = vld [vmem:[%s265 + $0x948] sm:$0xff]
        %v645 = vld [vmem:[%s265 + $0x950] sm:$0xff]
        %v646 = vld [vmem:[%s265 + $0x958] sm:$0xff]
        %v647 = vld [vmem:[%s265 + $0x960] sm:$0xff]
        %v648 = vld [vmem:[%s265 + $0x968] sm:$0xff]
        %v649 = vld [vmem:[%s265 + $0x970] sm:$0xff]
        %v650 = vld [vmem:[%s265 + $0x978] sm:$0xff]
        %v651 = vld [vmem:[%s265 + $0x980] sm:$0xff]
        %v652 = vld [vmem:[%s265 + $0x988] sm:$0xff]
        %v653 = vld [vmem:[%s265 + $0x990] sm:$0xff]
        %v654 = vld [vmem:[%s265 + $0x998] sm:$0xff]
        %v655 = vld [vmem:[%s265 + $0x9a0] sm:$0xff]
        %v656 = vld [vmem:[%s265 + $0x9a8] sm:$0xff]
        %v657 = vld [vmem:[%s265 + $0x9b0] sm:$0xff]
        %v658 = vld [vmem:[%s265 + $0x9b8] sm:$0xff]
        %v659 = vld [vmem:[%s265 + $0x9c0] sm:$0xff]
        %v660 = vld [vmem:[%s265 + $0x9c8] sm:$0xff]
        %v661 = vld [vmem:[%s265 + $0x9d0] sm:$0xff]
        %v662 = vld [vmem:[%s265 + $0x9d8] sm:$0xff]
        %v663 = vld [vmem:[%s265 + $0x9e0] sm:$0xff]
        %v664 = vld [vmem:[%s265 + $0x9e8] sm:$0xff]
        %v665 = vld [vmem:[%s265 + $0x9f0] sm:$0xff]
        %v666 = vld [vmem:[%s265 + $0x9f8] sm:$0xff]
        %v667 = vld [vmem:[%s265 + $0xa00] sm:$0xff]
        %v668 = vld [vmem:[%s265 + $0xa08] sm:$0xff]
        %v669 = vld [vmem:[%s265 + $0xa10] sm:$0xff]
        %v670 = vld [vmem:[%s265 + $0xa18] sm:$0xff]
        %v671 = vld [vmem:[%s265 + $0xa20] sm:$0xff]
        %v672 = vld [vmem:[%s265 + $0xa28] sm:$0xff]
        %v673 = vld [vmem:[%s265 + $0xa30] sm:$0xff]
        %v674 = vld [vmem:[%s265 + $0xa38] sm:$0xff]
        %v675 = vld [vmem:[%s265 + $0xa40] sm:$0xff]
        %v676 = vld [vmem:[%s265 + $0xa48] sm:$0xff]
        %v677 = vld [vmem:[%s265 + $0xa50] sm:$0xff]
        %v678 = vld [vmem:[%s265 + $0xa58] sm:$0xff]
        %v679 = vld [vmem:[%s265 + $0xa60] sm:$0xff]
        %v680 = vld [vmem:[%s265 + $0xa68] sm:$0xff]
        %v681 = vld [vmem:[%s265 + $0xa70] sm:$0xff]
        %v682 = vld [vmem:[%s265 + $0xa78] sm:$0xff]
        %v683 = vld [vmem:[%s265 + $0xa80] sm:$0xff]
        %v684 = vld [vmem:[%s265 + $0xa88] sm:$0xff]
        %v685 = vld [vmem:[%s265 + $0xa90] sm:$0xff]
        %v686 = vld [vmem:[%s265 + $0xa98] sm:$0xff]
        %v687 = vld [vmem:[%s265 + $0xaa0] sm:$0xff]
        %v688 = vld [vmem:[%s265 + $0xaa8] sm:$0xff]
        %v689 = vld [vmem:[%s265 + $0xab0] sm:$0xff]
        %v690 = vld [vmem:[%s265 + $0xab8] sm:$0xff]
        %v691 = vld [vmem:[%s265 + $0xac0] sm:$0xff]
        %v692 = vld [vmem:[%s265 + $0xac8] sm:$0xff]
        %v693 = vld [vmem:[%s265 + $0xad0] sm:$0xff]
        %v694 = vld [vmem:[%s265 + $0xad8] sm:$0xff]
        %v695 = vld [vmem:[%s265 + $0xae0] sm:$0xff]
        %v696 = vld [vmem:[%s265 + $0xae8] sm:$0xff]
        %v697 = vld [vmem:[%s265 + $0xaf0] sm:$0xff]
        %v698 = vld [vmem:[%s265 + $0xaf8] sm:$0xff]
        %v699 = vld [vmem:[%s265 + $0xb00] sm:$0xff]
        %v700 = vld [vmem:[%s265 + $0xb08] sm:$0xff]
        %v701 = vld [vmem:[%s265 + $0xb10] sm:$0xff]
        %v702 = vld [vmem:[%s265 + $0xb18] sm:$0xff]
        %v703 = vld [vmem:[%s265 + $0xb20] sm:$0xff]
        %v704 = vld [vmem:[%s265 + $0xb28] sm:$0xff]
        %v705 = vld [vmem:[%s265 + $0xb30] sm:$0xff]
        %v706 = vld [vmem:[%s265 + $0xb38] sm:$0xff]
        %v707 = vld [vmem:[%s265 + $0xb40] sm:$0xff]
        %v708 = vld [vmem:[%s265 + $0xb48] sm:$0xff]
        %v709 = vld [vmem:[%s265 + $0xb50] sm:$0xff]
        %v710 = vld [vmem:[%s265 + $0xb58] sm:$0xff]
        %v711 = vld [vmem:[%s265 + $0xb60] sm:$0xff]
        %v712 = vld [vmem:[%s265 + $0xb68] sm:$0xff]
        %v713 = vld [vmem:[%s265 + $0xb70] sm:$0xff]
        %v714 = vld [vmem:[%s265 + $0xb78] sm:$0xff]
        %v715 = vld [vmem:[%s265 + $0xb80] sm:$0xff]
        %v716 = vld [vmem:[%s265 + $0xb88] sm:$0xff]
        %v717 = vld [vmem:[%s265 + $0xb90] sm:$0xff]
        %v718 = vld [vmem:[%s265 + $0xb98] sm:$0xff]
        %v719 = vld [vmem:[%s265 + $0xba0] sm:$0xff]
        %v720 = vld [vmem:[%s265 + $0xba8] sm:$0xff]
        %v721 = vld [vmem:[%s265 + $0xbb0] sm:$0xff]
        %v722 = vld [vmem:[%s265 + $0xbb8] sm:$0xff]
        %v723 = vld [vmem:[%s265 + $0xbc0] sm:$0xff]
        %v724 = vld [vmem:[%s265 + $0xbc8] sm:$0xff]
        %v725 = vld [vmem:[%s265 + $0xbd0] sm:$0xff]
        %v726 = vld [vmem:[%s265 + $0xbd8] sm:$0xff]
        %v727 = vld [vmem:[%s265 + $0xbe0] sm:$0xff]
        %v728 = vld [vmem:[%s265 + $0xbe8] sm:$0xff]
        %v729 = vld [vmem:[%s265 + $0xbf0] sm:$0xff]
        %v730 = vld [vmem:[%s265 + $0xbf8] sm:$0xff]
        %v731 = vld [vmem:[%s265 + $0xc00] sm:$0xff]
        %v732 = vld [vmem:[%s265 + $0xc08] sm:$0xff]
        %v733 = vld [vmem:[%s265 + $0xc10] sm:$0xff]
        %v734 = vld [vmem:[%s265 + $0xc18] sm:$0xff]
        %v735 = vld [vmem:[%s265 + $0xc20] sm:$0xff]
        %v736 = vld [vmem:[%s265 + $0xc28] sm:$0xff]
        %v737 = vld [vmem:[%s265 + $0xc30] sm:$0xff]
        %v738 = vld [vmem:[%s265 + $0xc38] sm:$0xff]
        %v739 = vld [vmem:[%s265 + $0xc40] sm:$0xff]
        %v740 = vld [vmem:[%s265 + $0xc48] sm:$0xff]
        %v741 = vld [vmem:[%s265 + $0xc50] sm:$0xff]
        %v742 = vld [vmem:[%s265 + $0xc58] sm:$0xff]
        %v743 = vld [vmem:[%s265 + $0xc60] sm:$0xff]
        %v744 = vld [vmem:[%s265 + $0xc68] sm:$0xff]
        %v745 = vld [vmem:[%s265 + $0xc70] sm:$0xff]
        %v746 = vld [vmem:[%s265 + $0xc78] sm:$0xff]
        %v747 = vld [vmem:[%s265 + $0xc80] sm:$0xff]
        %v748 = vld [vmem:[%s265 + $0xc88] sm:$0xff]
        %v749 = vld [vmem:[%s265 + $0xc90] sm:$0xff]
        %v750 = vld [vmem:[%s265 + $0xc98] sm:$0xff]
        %v751 = vld [vmem:[%s265 + $0xca0] sm:$0xff]
        %v752 = vld [vmem:[%s265 + $0xca8] sm:$0xff]
        %v753 = vld [vmem:[%s265 + $0xcb0] sm:$0xff]
        %v754 = vld [vmem:[%s265 + $0xcb8] sm:$0xff]
        %v755 = vld [vmem:[%s265 + $0xcc0] sm:$0xff]
        %v756 = vld [vmem:[%s265 + $0xcc8] sm:$0xff]
        %v757 = vld [vmem:[%s265 + $0xcd0] sm:$0xff]
        %v758 = vld [vmem:[%s265 + $0xcd8] sm:$0xff]
        %v759 = vld [vmem:[%s265 + $0xce0] sm:$0xff]
        %v760 = vld [vmem:[%s265 + $0xce8] sm:$0xff]
        %v761 = vld [vmem:[%s265 + $0xcf0] sm:$0xff]
        %v762 = vld [vmem:[%s265 + $0xcf8] sm:$0xff]
        %v763 = vld [vmem:[%s265 + $0xd00] sm:$0xff]
        %v764 = vld [vmem:[%s265 + $0xd08] sm:$0xff]
        %v765 = vld [vmem:[%s265 + $0xd10] sm:$0xff]
        %v766 = vld [vmem:[%s265 + $0xd18] sm:$0xff]
        %v767 = vld [vmem:[%s265 + $0xd20] sm:$0xff]
        %v768 = vld [vmem:[%s265 + $0xd28] sm:$0xff]
        %v769 = vld [vmem:[%s265 + $0xd30] sm:$0xff]
        %v770 = vld [vmem:[%s265 + $0xd38] sm:$0xff]
        %v771 = vld [vmem:[%s265 + $0xd40] sm:$0xff]
        %v772 = vld [vmem:[%s265 + $0xd48] sm:$0xff]
        %v773 = vld [vmem:[%s265 + $0xd50] sm:$0xff]
        %v774 = vld [vmem:[%s265 + $0xd58] sm:$0xff]
        %v775 = vld [vmem:[%s265 + $0xd60] sm:$0xff]
        %v776 = vld [vmem:[%s265 + $0xd68] sm:$0xff]
        %v777 = vld [vmem:[%s265 + $0xd70] sm:$0xff]
        %v778 = vld [vmem:[%s265 + $0xd78] sm:$0xff]
        %v779 = vld [vmem:[%s265 + $0xd80] sm:$0xff]
        %v780 = vld [vmem:[%s265 + $0xd88] sm:$0xff]
        %v781 = vld [vmem:[%s265 + $0xd90] sm:$0xff]
        %v782 = vld [vmem:[%s265 + $0xd98] sm:$0xff]
        %v783 = vld [vmem:[%s265 + $0xda0] sm:$0xff]
        %v784 = vld [vmem:[%s265 + $0xda8] sm:$0xff]
        %v785 = vld [vmem:[%s265 + $0xdb0] sm:$0xff]
        %v786 = vld [vmem:[%s265 + $0xdb8] sm:$0xff]
        %v787 = vld [vmem:[%s265 + $0xdc0] sm:$0xff]
        %v788 = vld [vmem:[%s265 + $0xdc8] sm:$0xff]
        %v789 = vld [vmem:[%s265 + $0xdd0] sm:$0xff]
        %v790 = vld [vmem:[%s265 + $0xdd8] sm:$0xff]
        %v791 = vld [vmem:[%s265 + $0xde0] sm:$0xff]
        %v792 = vld [vmem:[%s265 + $0xde8] sm:$0xff]
        %v793 = vld [vmem:[%s265 + $0xdf0] sm:$0xff]
        %v794 = vld [vmem:[%s265 + $0xdf8] sm:$0xff]
        %v795 = vld [vmem:[%s265 + $0xe00] sm:$0xff]
        %v796 = vld [vmem:[%s265 + $0xe08] sm:$0xff]
        %v797 = vld [vmem:[%s265 + $0xe10] sm:$0xff]
        %v798 = vld [vmem:[%s265 + $0xe18] sm:$0xff]
        %v799 = vld [vmem:[%s265 + $0xe20] sm:$0xff]
        %v800 = vld [vmem:[%s265 + $0xe28] sm:$0xff]
        %v801 = vld [vmem:[%s265 + $0xe30] sm:$0xff]
        %v802 = vld [vmem:[%s265 + $0xe38] sm:$0xff]
        %v803 = vld [vmem:[%s265 + $0xe40] sm:$0xff]
        %v804 = vld [vmem:[%s265 + $0xe48] sm:$0xff]
        %v805 = vld [vmem:[%s265 + $0xe50] sm:$0xff]
        %v806 = vld [vmem:[%s265 + $0xe58] sm:$0xff]
        %v807 = vld [vmem:[%s265 + $0xe60] sm:$0xff]
        %v808 = vld [vmem:[%s265 + $0xe68] sm:$0xff]
        %v809 = vld [vmem:[%s265 + $0xe70] sm:$0xff]
        %v810 = vld [vmem:[%s265 + $0xe78] sm:$0xff]
        %v811 = vld [vmem:[%s265 + $0xe80] sm:$0xff]
        %v812 = vld [vmem:[%s265 + $0xe88] sm:$0xff]
        %v813 = vld [vmem:[%s265 + $0xe90] sm:$0xff]
        %v814 = vld [vmem:[%s265 + $0xe98] sm:$0xff]
        %v815 = vld [vmem:[%s265 + $0xea0] sm:$0xff]
        %v816 = vld [vmem:[%s265 + $0xea8] sm:$0xff]
        %v817 = vld [vmem:[%s265 + $0xeb0] sm:$0xff]
        %v818 = vld [vmem:[%s265 + $0xeb8] sm:$0xff]
        %v819 = vld [vmem:[%s265 + $0xec0] sm:$0xff]
        %v820 = vld [vmem:[%s265 + $0xec8] sm:$0xff]
        %v821 = vld [vmem:[%s265 + $0xed0] sm:$0xff]
        %v822 = vld [vmem:[%s265 + $0xed8] sm:$0xff]
        %v823 = vld [vmem:[%s265 + $0xee0] sm:$0xff]
        %v824 = vld [vmem:[%s265 + $0xee8] sm:$0xff]
        %v825 = vld [vmem:[%s265 + $0xef0] sm:$0xff]
        %v826 = vld [vmem:[%s265 + $0xef8] sm:$0xff]
        %v827 = vld [vmem:[%s265 + $0xf00] sm:$0xff]
        %v828 = vld [vmem:[%s265 + $0xf08] sm:$0xff]
        %v829 = vld [vmem:[%s265 + $0xf10] sm:$0xff]
        %v830 = vld [vmem:[%s265 + $0xf18] sm:$0xff]
        %v831 = vld [vmem:[%s265 + $0xf20] sm:$0xff]
        %v832 = vld [vmem:[%s265 + $0xf28] sm:$0xff]
        %v833 = vld [vmem:[%s265 + $0xf30] sm:$0xff]
        %v834 = vld [vmem:[%s265 + $0xf38] sm:$0xff]
        %v835 = vld [vmem:[%s265 + $0xf40] sm:$0xff]
        %v836 = vld [vmem:[%s265 + $0xf48] sm:$0xff]
        %v837 = vld [vmem:[%s265 + $0xf50] sm:$0xff]
        %v838 = vld [vmem:[%s265 + $0xf58] sm:$0xff]
        %v839 = vld [vmem:[%s265 + $0xf60] sm:$0xff]
        %v840 = vld [vmem:[%s265 + $0xf68] sm:$0xff]
        %v841 = vld [vmem:[%s265 + $0xf70] sm:$0xff]
        %v842 = vld [vmem:[%s265 + $0xf78] sm:$0xff]
        %v843 = vld [vmem:[%s265 + $0xf80] sm:$0xff]
        %v844 = vld [vmem:[%s265 + $0xf88] sm:$0xff]
        %v845 = vld [vmem:[%s265 + $0xf90] sm:$0xff]
        %v846 = vld [vmem:[%s265 + $0xf98] sm:$0xff]
        %v847 = vld [vmem:[%s265 + $0xfa0] sm:$0xff]
        %v848 = vld [vmem:[%s265 + $0xfa8] sm:$0xff]
        %v849 = vld [vmem:[%s265 + $0xfb0] sm:$0xff]
        %v850 = vld [vmem:[%s265 + $0xfb8] sm:$0xff]
        %v851 = vld [vmem:[%s265 + $0xfc0] sm:$0xff]
        %v852 = vld [vmem:[%s265 + $0xfc8] sm:$0xff]
        %v853 = vld [vmem:[%s265 + $0xfd0] sm:$0xff]
        %v854 = vld [vmem:[%s265 + $0xfd8] sm:$0xff]
        %v855 = vld [vmem:[%s265 + $0xfe0] sm:$0xff]
        %v856 = vld [vmem:[%s265 + $0xfe8] sm:$0xff]
        %v857 = vld [vmem:[%s265 + $0xff0] sm:$0xff]
        %v858 = vld [vmem:[%s265 + $0xff8] sm:$0xff]
        %v859 = vld [vmem:[%s274] sm:$0xf]
        %v861 = vlaneseq
        %v862 = vshrl.u32 %v861, 7
        %v863 = vsub.s32 0, %v862
        %v864 = vrot.slane %v859, %v863
        %v865 = vlaneseq
        %v866 = vshrl.u32 %v865, 7
        %v867 = vsub.s32 1, %v866
        %v868 = vrot.slane %v859, %v867
        %v869 = vlaneseq
        %v870 = vshrl.u32 %v869, 7
        %v871 = vsub.s32 2, %v870
        %v872 = vrot.slane %v859, %v871
        %v873 = vlaneseq
        %v874 = vshrl.u32 %v873, 7
        %v875 = vsub.s32 3, %v874
        %v876 = vrot.slane %v859, %v875
        %v1393 = vunpack.c.l.b16 %v347
        %v1394 = vunpack.c.h.b16 %v347
        %v1395 = vunpack.c.l.b16 %v348
        %v1396 = vunpack.c.h.b16 %v348
        %v1397 = vunpack.c.l.b16 %v349
        %v1398 = vunpack.c.h.b16 %v349
        %v1399 = vunpack.c.l.b16 %v350
        %v1400 = vunpack.c.h.b16 %v350
        %v1401 = vunpack.c.l.b16 %v351
        %v1402 = vunpack.c.h.b16 %v351
        %v1403 = vunpack.c.l.b16 %v352
        %v1404 = vunpack.c.h.b16 %v352
        %v1405 = vunpack.c.l.b16 %v353
        %v1406 = vunpack.c.h.b16 %v353
        %v1407 = vunpack.c.l.b16 %v354
        %v1408 = vunpack.c.h.b16 %v354
        %v1409 = vunpack.c.l.b16 %v355
        %v1410 = vunpack.c.h.b16 %v355
        %v1411 = vunpack.c.l.b16 %v356
        %v1412 = vunpack.c.h.b16 %v356
        %v1413 = vunpack.c.l.b16 %v357
        %v1414 = vunpack.c.h.b16 %v357
        %v1415 = vunpack.c.l.b16 %v358
        %v1416 = vunpack.c.h.b16 %v358
        %v1417 = vunpack.c.l.b16 %v359
        %v1418 = vunpack.c.h.b16 %v359
        %v1419 = vunpack.c.l.b16 %v360
        %v1420 = vunpack.c.h.b16 %v360
        %v1421 = vunpack.c.l.b16 %v361
        %v1422 = vunpack.c.h.b16 %v361
        %v1423 = vunpack.c.l.b16 %v362
        %v1424 = vunpack.c.h.b16 %v362
        %v1425 = vunpack.c.l.b16 %v363
        %v1426 = vunpack.c.h.b16 %v363
        %v1427 = vunpack.c.l.b16 %v364
        %v1428 = vunpack.c.h.b16 %v364
        %v1429 = vunpack.c.l.b16 %v365
        %v1430 = vunpack.c.h.b16 %v365
        %v1431 = vunpack.c.l.b16 %v366
        %v1432 = vunpack.c.h.b16 %v366
        %v1433 = vunpack.c.l.b16 %v367
        %v1434 = vunpack.c.h.b16 %v367
        %v1435 = vunpack.c.l.b16 %v368
        %v1436 = vunpack.c.h.b16 %v368
        %v1437 = vunpack.c.l.b16 %v369
        %v1438 = vunpack.c.h.b16 %v369
        %v1439 = vunpack.c.l.b16 %v370
        %v1440 = vunpack.c.h.b16 %v370
        %v1441 = vunpack.c.l.b16 %v371
        %v1442 = vunpack.c.h.b16 %v371
        %v1443 = vunpack.c.l.b16 %v372
        %v1444 = vunpack.c.h.b16 %v372
        %v1445 = vunpack.c.l.b16 %v373
        %v1446 = vunpack.c.h.b16 %v373
        %v1447 = vunpack.c.l.b16 %v374
        %v1448 = vunpack.c.h.b16 %v374
        %v1449 = vunpack.c.l.b16 %v375
        %v1450 = vunpack.c.h.b16 %v375
        %v1451 = vunpack.c.l.b16 %v376
        %v1452 = vunpack.c.h.b16 %v376
        %v1453 = vunpack.c.l.b16 %v377
        %v1454 = vunpack.c.h.b16 %v377
        %v1455 = vunpack.c.l.b16 %v378
        %v1456 = vunpack.c.h.b16 %v378
        %v1457 = vunpack.c.l.b16 %v379
        %v1458 = vunpack.c.h.b16 %v379
        %v1459 = vunpack.c.l.b16 %v380
        %v1460 = vunpack.c.h.b16 %v380
        %v1461 = vunpack.c.l.b16 %v381
        %v1462 = vunpack.c.h.b16 %v381
        %v1463 = vunpack.c.l.b16 %v382
        %v1464 = vunpack.c.h.b16 %v382
        %v1465 = vunpack.c.l.b16 %v383
        %v1466 = vunpack.c.h.b16 %v383
        %v1467 = vunpack.c.l.b16 %v384
        %v1468 = vunpack.c.h.b16 %v384
        %v1469 = vunpack.c.l.b16 %v385
        %v1470 = vunpack.c.h.b16 %v385
        %v1471 = vunpack.c.l.b16 %v386
        %v1472 = vunpack.c.h.b16 %v386
        %v1473 = vunpack.c.l.b16 %v387
        %v1474 = vunpack.c.h.b16 %v387
        %v1475 = vunpack.c.l.b16 %v388
        %v1476 = vunpack.c.h.b16 %v388
        %v1477 = vunpack.c.l.b16 %v389
        %v1478 = vunpack.c.h.b16 %v389
        %v1479 = vunpack.c.l.b16 %v390
        %v1480 = vunpack.c.h.b16 %v390
        %v1481 = vunpack.c.l.b16 %v391
        %v1482 = vunpack.c.h.b16 %v391
        %v1483 = vunpack.c.l.b16 %v392
        %v1484 = vunpack.c.h.b16 %v392
        %v1485 = vunpack.c.l.b16 %v393
        %v1486 = vunpack.c.h.b16 %v393
        %v1487 = vunpack.c.l.b16 %v394
        %v1488 = vunpack.c.h.b16 %v394
        %v1489 = vunpack.c.l.b16 %v395
        %v1490 = vunpack.c.h.b16 %v395
        %v1491 = vunpack.c.l.b16 %v396
        %v1492 = vunpack.c.h.b16 %v396
        %v1493 = vunpack.c.l.b16 %v397
        %v1494 = vunpack.c.h.b16 %v397
        %v1495 = vunpack.c.l.b16 %v398
        %v1496 = vunpack.c.h.b16 %v398
        %v1497 = vunpack.c.l.b16 %v399
        %v1498 = vunpack.c.h.b16 %v399
        %v1499 = vunpack.c.l.b16 %v400
        %v1500 = vunpack.c.h.b16 %v400
        %v1501 = vunpack.c.l.b16 %v401
        %v1502 = vunpack.c.h.b16 %v401
        %v1503 = vunpack.c.l.b16 %v402
        %v1504 = vunpack.c.h.b16 %v402
        %v1505 = vunpack.c.l.b16 %v403
        %v1506 = vunpack.c.h.b16 %v403
        %v1507 = vunpack.c.l.b16 %v404
        %v1508 = vunpack.c.h.b16 %v404
        %v1509 = vunpack.c.l.b16 %v405
        %v1510 = vunpack.c.h.b16 %v405
        %v1511 = vunpack.c.l.b16 %v406
        %v1512 = vunpack.c.h.b16 %v406
        %v1513 = vunpack.c.l.b16 %v407
        %v1514 = vunpack.c.h.b16 %v407
        %v1515 = vunpack.c.l.b16 %v408
        %v1516 = vunpack.c.h.b16 %v408
        %v1517 = vunpack.c.l.b16 %v409
        %v1518 = vunpack.c.h.b16 %v409
        %v1519 = vunpack.c.l.b16 %v410
        %v1520 = vunpack.c.h.b16 %v410
        %v1521 = vunpack.c.l.b16 %v411
        %v1522 = vunpack.c.h.b16 %v411
        %v1523 = vunpack.c.l.b16 %v412
        %v1524 = vunpack.c.h.b16 %v412
        %v1525 = vunpack.c.l.b16 %v413
        %v1526 = vunpack.c.h.b16 %v413
        %v1527 = vunpack.c.l.b16 %v414
        %v1528 = vunpack.c.h.b16 %v414
        %v1529 = vunpack.c.l.b16 %v415
        %v1530 = vunpack.c.h.b16 %v415
        %v1531 = vunpack.c.l.b16 %v416
        %v1532 = vunpack.c.h.b16 %v416
        %v1533 = vunpack.c.l.b16 %v417
        %v1534 = vunpack.c.h.b16 %v417
        %v1535 = vunpack.c.l.b16 %v418
        %v1536 = vunpack.c.h.b16 %v418
        %v1537 = vunpack.c.l.b16 %v419
        %v1538 = vunpack.c.h.b16 %v419
        %v1539 = vunpack.c.l.b16 %v420
        %v1540 = vunpack.c.h.b16 %v420
        %v1541 = vunpack.c.l.b16 %v421
        %v1542 = vunpack.c.h.b16 %v421
        %v1543 = vunpack.c.l.b16 %v422
        %v1544 = vunpack.c.h.b16 %v422
        %v1545 = vunpack.c.l.b16 %v423
        %v1546 = vunpack.c.h.b16 %v423
        %v1547 = vunpack.c.l.b16 %v424
        %v1548 = vunpack.c.h.b16 %v424
        %v1549 = vunpack.c.l.b16 %v425
        %v1550 = vunpack.c.h.b16 %v425
        %v1551 = vunpack.c.l.b16 %v426
        %v1552 = vunpack.c.h.b16 %v426
        %v1553 = vunpack.c.l.b16 %v427
        %v1554 = vunpack.c.h.b16 %v427
        %v1555 = vunpack.c.l.b16 %v428
        %v1556 = vunpack.c.h.b16 %v428
        %v1557 = vunpack.c.l.b16 %v429
        %v1558 = vunpack.c.h.b16 %v429
        %v1559 = vunpack.c.l.b16 %v430
        %v1560 = vunpack.c.h.b16 %v430
        %v1561 = vunpack.c.l.b16 %v431
        %v1562 = vunpack.c.h.b16 %v431
        %v1563 = vunpack.c.l.b16 %v432
        %v1564 = vunpack.c.h.b16 %v432
        %v1565 = vunpack.c.l.b16 %v433
        %v1566 = vunpack.c.h.b16 %v433
        %v1567 = vunpack.c.l.b16 %v434
        %v1568 = vunpack.c.h.b16 %v434
        %v1569 = vunpack.c.l.b16 %v435
        %v1570 = vunpack.c.h.b16 %v435
        %v1571 = vunpack.c.l.b16 %v436
        %v1572 = vunpack.c.h.b16 %v436
        %v1573 = vunpack.c.l.b16 %v437
        %v1574 = vunpack.c.h.b16 %v437
        %v1575 = vunpack.c.l.b16 %v438
        %v1576 = vunpack.c.h.b16 %v438
        %v1577 = vunpack.c.l.b16 %v439
        %v1578 = vunpack.c.h.b16 %v439
        %v1579 = vunpack.c.l.b16 %v440
        %v1580 = vunpack.c.h.b16 %v440
        %v1581 = vunpack.c.l.b16 %v441
        %v1582 = vunpack.c.h.b16 %v441
        %v1583 = vunpack.c.l.b16 %v442
        %v1584 = vunpack.c.h.b16 %v442
        %v1585 = vunpack.c.l.b16 %v443
        %v1586 = vunpack.c.h.b16 %v443
        %v1587 = vunpack.c.l.b16 %v444
        %v1588 = vunpack.c.h.b16 %v444
        %v1589 = vunpack.c.l.b16 %v445
        %v1590 = vunpack.c.h.b16 %v445
        %v1591 = vunpack.c.l.b16 %v446
        %v1592 = vunpack.c.h.b16 %v446
        %v1593 = vunpack.c.l.b16 %v447
        %v1594 = vunpack.c.h.b16 %v447
        %v1595 = vunpack.c.l.b16 %v448
        %v1596 = vunpack.c.h.b16 %v448
        %v1597 = vunpack.c.l.b16 %v449
        %v1598 = vunpack.c.h.b16 %v449
        %v1599 = vunpack.c.l.b16 %v450
        %v1600 = vunpack.c.h.b16 %v450
        %v1601 = vunpack.c.l.b16 %v451
        %v1602 = vunpack.c.h.b16 %v451
        %v1603 = vunpack.c.l.b16 %v452
        %v1604 = vunpack.c.h.b16 %v452
        %v1605 = vunpack.c.l.b16 %v453
        %v1606 = vunpack.c.h.b16 %v453
        %v1607 = vunpack.c.l.b16 %v454
        %v1608 = vunpack.c.h.b16 %v454
        %v1609 = vunpack.c.l.b16 %v455
        %v1610 = vunpack.c.h.b16 %v455
        %v1611 = vunpack.c.l.b16 %v456
        %v1612 = vunpack.c.h.b16 %v456
        %v1613 = vunpack.c.l.b16 %v457
        %v1614 = vunpack.c.h.b16 %v457
        %v1615 = vunpack.c.l.b16 %v458
        %v1616 = vunpack.c.h.b16 %v458
        %v1617 = vunpack.c.l.b16 %v459
        %v1618 = vunpack.c.h.b16 %v459
        %v1619 = vunpack.c.l.b16 %v460
        %v1620 = vunpack.c.h.b16 %v460
        %v1621 = vunpack.c.l.b16 %v461
        %v1622 = vunpack.c.h.b16 %v461
        %v1623 = vunpack.c.l.b16 %v462
        %v1624 = vunpack.c.h.b16 %v462
        %v1625 = vunpack.c.l.b16 %v463
        %v1626 = vunpack.c.h.b16 %v463
        %v1627 = vunpack.c.l.b16 %v464
        %v1628 = vunpack.c.h.b16 %v464
        %v1629 = vunpack.c.l.b16 %v465
        %v1630 = vunpack.c.h.b16 %v465
        %v1631 = vunpack.c.l.b16 %v466
        %v1632 = vunpack.c.h.b16 %v466
        %v1633 = vunpack.c.l.b16 %v467
        %v1634 = vunpack.c.h.b16 %v467
        %v1635 = vunpack.c.l.b16 %v468
        %v1636 = vunpack.c.h.b16 %v468
        %v1637 = vunpack.c.l.b16 %v469
        %v1638 = vunpack.c.h.b16 %v469
        %v1639 = vunpack.c.l.b16 %v470
        %v1640 = vunpack.c.h.b16 %v470
        %v1641 = vunpack.c.l.b16 %v471
        %v1642 = vunpack.c.h.b16 %v471
        %v1643 = vunpack.c.l.b16 %v472
        %v1644 = vunpack.c.h.b16 %v472
        %v1645 = vunpack.c.l.b16 %v473
        %v1646 = vunpack.c.h.b16 %v473
        %v1647 = vunpack.c.l.b16 %v474
        %v1648 = vunpack.c.h.b16 %v474
        %v1649 = vunpack.c.l.b16 %v475
        %v1650 = vunpack.c.h.b16 %v475
        %v1651 = vunpack.c.l.b16 %v476
        %v1652 = vunpack.c.h.b16 %v476
        %v1653 = vunpack.c.l.b16 %v477
        %v1654 = vunpack.c.h.b16 %v477
        %v1655 = vunpack.c.l.b16 %v478
        %v1656 = vunpack.c.h.b16 %v478
        %v1657 = vunpack.c.l.b16 %v479
        %v1658 = vunpack.c.h.b16 %v479
        %v1659 = vunpack.c.l.b16 %v480
        %v1660 = vunpack.c.h.b16 %v480
        %v1661 = vunpack.c.l.b16 %v481
        %v1662 = vunpack.c.h.b16 %v481
        %v1663 = vunpack.c.l.b16 %v482
        %v1664 = vunpack.c.h.b16 %v482
        %v1665 = vunpack.c.l.b16 %v483
        %v1666 = vunpack.c.h.b16 %v483
        %v1667 = vunpack.c.l.b16 %v484
        %v1668 = vunpack.c.h.b16 %v484
        %v1669 = vunpack.c.l.b16 %v485
        %v1670 = vunpack.c.h.b16 %v485
        %v1671 = vunpack.c.l.b16 %v486
        %v1672 = vunpack.c.h.b16 %v486
        %v1673 = vunpack.c.l.b16 %v487
        %v1674 = vunpack.c.h.b16 %v487
        %v1675 = vunpack.c.l.b16 %v488
        %v1676 = vunpack.c.h.b16 %v488
        %v1677 = vunpack.c.l.b16 %v489
        %v1678 = vunpack.c.h.b16 %v489
        %v1679 = vunpack.c.l.b16 %v490
        %v1680 = vunpack.c.h.b16 %v490
        %v1681 = vunpack.c.l.b16 %v491
        %v1682 = vunpack.c.h.b16 %v491
        %v1683 = vunpack.c.l.b16 %v492
        %v1684 = vunpack.c.h.b16 %v492
        %v1685 = vunpack.c.l.b16 %v493
        %v1686 = vunpack.c.h.b16 %v493
        %v1687 = vunpack.c.l.b16 %v494
        %v1688 = vunpack.c.h.b16 %v494
        %v1689 = vunpack.c.l.b16 %v495
        %v1690 = vunpack.c.h.b16 %v495
        %v1691 = vunpack.c.l.b16 %v496
        %v1692 = vunpack.c.h.b16 %v496
        %v1693 = vunpack.c.l.b16 %v497
        %v1694 = vunpack.c.h.b16 %v497
        %v1695 = vunpack.c.l.b16 %v498
        %v1696 = vunpack.c.h.b16 %v498
        %v1697 = vunpack.c.l.b16 %v499
        %v1698 = vunpack.c.h.b16 %v499
        %v1699 = vunpack.c.l.b16 %v500
        %v1700 = vunpack.c.h.b16 %v500
        %v1701 = vunpack.c.l.b16 %v501
        %v1702 = vunpack.c.h.b16 %v501
        %v1703 = vunpack.c.l.b16 %v502
        %v1704 = vunpack.c.h.b16 %v502
        %v1705 = vunpack.c.l.b16 %v503
        %v1706 = vunpack.c.h.b16 %v503
        %v1707 = vunpack.c.l.b16 %v504
        %v1708 = vunpack.c.h.b16 %v504
        %v1709 = vunpack.c.l.b16 %v505
        %v1710 = vunpack.c.h.b16 %v505
        %v1711 = vunpack.c.l.b16 %v506
        %v1712 = vunpack.c.h.b16 %v506
        %v1713 = vunpack.c.l.b16 %v507
        %v1714 = vunpack.c.h.b16 %v507
        %v1715 = vunpack.c.l.b16 %v508
        %v1716 = vunpack.c.h.b16 %v508
        %v1717 = vunpack.c.l.b16 %v509
        %v1718 = vunpack.c.h.b16 %v509
        %v1719 = vunpack.c.l.b16 %v510
        %v1720 = vunpack.c.h.b16 %v510
        %v1721 = vunpack.c.l.b16 %v511
        %v1722 = vunpack.c.h.b16 %v511
        %v1723 = vunpack.c.l.b16 %v512
        %v1724 = vunpack.c.h.b16 %v512
        %v1725 = vunpack.c.l.b16 %v513
        %v1726 = vunpack.c.h.b16 %v513
        %v1727 = vunpack.c.l.b16 %v514
        %v1728 = vunpack.c.h.b16 %v514
        %v1729 = vunpack.c.l.b16 %v515
        %v1730 = vunpack.c.h.b16 %v515
        %v1731 = vunpack.c.l.b16 %v516
        %v1732 = vunpack.c.h.b16 %v516
        %v1733 = vunpack.c.l.b16 %v517
        %v1734 = vunpack.c.h.b16 %v517
        %v1735 = vunpack.c.l.b16 %v518
        %v1736 = vunpack.c.h.b16 %v518
        %v1737 = vunpack.c.l.b16 %v519
        %v1738 = vunpack.c.h.b16 %v519
        %v1739 = vunpack.c.l.b16 %v520
        %v1740 = vunpack.c.h.b16 %v520
        %v1741 = vunpack.c.l.b16 %v521
        %v1742 = vunpack.c.h.b16 %v521
        %v1743 = vunpack.c.l.b16 %v522
        %v1744 = vunpack.c.h.b16 %v522
        %v1745 = vunpack.c.l.b16 %v523
        %v1746 = vunpack.c.h.b16 %v523
        %v1747 = vunpack.c.l.b16 %v524
        %v1748 = vunpack.c.h.b16 %v524
        %v1749 = vunpack.c.l.b16 %v525
        %v1750 = vunpack.c.h.b16 %v525
        %v1751 = vunpack.c.l.b16 %v526
        %v1752 = vunpack.c.h.b16 %v526
        %v1753 = vunpack.c.l.b16 %v527
        %v1754 = vunpack.c.h.b16 %v527
        %v1755 = vunpack.c.l.b16 %v528
        %v1756 = vunpack.c.h.b16 %v528
        %v1757 = vunpack.c.l.b16 %v529
        %v1758 = vunpack.c.h.b16 %v529
        %v1759 = vunpack.c.l.b16 %v530
        %v1760 = vunpack.c.h.b16 %v530
        %v1761 = vunpack.c.l.b16 %v531
        %v1762 = vunpack.c.h.b16 %v531
        %v1763 = vunpack.c.l.b16 %v532
        %v1764 = vunpack.c.h.b16 %v532
        %v1765 = vunpack.c.l.b16 %v533
        %v1766 = vunpack.c.h.b16 %v533
        %v1767 = vunpack.c.l.b16 %v534
        %v1768 = vunpack.c.h.b16 %v534
        %v1769 = vunpack.c.l.b16 %v535
        %v1770 = vunpack.c.h.b16 %v535
        %v1771 = vunpack.c.l.b16 %v536
        %v1772 = vunpack.c.h.b16 %v536
        %v1773 = vunpack.c.l.b16 %v537
        %v1774 = vunpack.c.h.b16 %v537
        %v1775 = vunpack.c.l.b16 %v538
        %v1776 = vunpack.c.h.b16 %v538
        %v1777 = vunpack.c.l.b16 %v539
        %v1778 = vunpack.c.h.b16 %v539
        %v1779 = vunpack.c.l.b16 %v540
        %v1780 = vunpack.c.h.b16 %v540
        %v1781 = vunpack.c.l.b16 %v541
        %v1782 = vunpack.c.h.b16 %v541
        %v1783 = vunpack.c.l.b16 %v542
        %v1784 = vunpack.c.h.b16 %v542
        %v1785 = vunpack.c.l.b16 %v543
        %v1786 = vunpack.c.h.b16 %v543
        %v1787 = vunpack.c.l.b16 %v544
        %v1788 = vunpack.c.h.b16 %v544
        %v1789 = vunpack.c.l.b16 %v545
        %v1790 = vunpack.c.h.b16 %v545
        %v1791 = vunpack.c.l.b16 %v546
        %v1792 = vunpack.c.h.b16 %v546
        %v1793 = vunpack.c.l.b16 %v547
        %v1794 = vunpack.c.h.b16 %v547
        %v1795 = vunpack.c.l.b16 %v548
        %v1796 = vunpack.c.h.b16 %v548
        %v1797 = vunpack.c.l.b16 %v549
        %v1798 = vunpack.c.h.b16 %v549
        %v1799 = vunpack.c.l.b16 %v550
        %v1800 = vunpack.c.h.b16 %v550
        %v1801 = vunpack.c.l.b16 %v551
        %v1802 = vunpack.c.h.b16 %v551
        %v1803 = vunpack.c.l.b16 %v552
        %v1804 = vunpack.c.h.b16 %v552
        %v1805 = vunpack.c.l.b16 %v553
        %v1806 = vunpack.c.h.b16 %v553
        %v1807 = vunpack.c.l.b16 %v554
        %v1808 = vunpack.c.h.b16 %v554
        %v1809 = vunpack.c.l.b16 %v555
        %v1810 = vunpack.c.h.b16 %v555
        %v1811 = vunpack.c.l.b16 %v556
        %v1812 = vunpack.c.h.b16 %v556
        %v1813 = vunpack.c.l.b16 %v557
        %v1814 = vunpack.c.h.b16 %v557
        %v1815 = vunpack.c.l.b16 %v558
        %v1816 = vunpack.c.h.b16 %v558
        %v1817 = vunpack.c.l.b16 %v559
        %v1818 = vunpack.c.h.b16 %v559
        %v1819 = vunpack.c.l.b16 %v560
        %v1820 = vunpack.c.h.b16 %v560
        %v1821 = vunpack.c.l.b16 %v561
        %v1822 = vunpack.c.h.b16 %v561
        %v1823 = vunpack.c.l.b16 %v562
        %v1824 = vunpack.c.h.b16 %v562
        %v1825 = vunpack.c.l.b16 %v563
        %v1826 = vunpack.c.h.b16 %v563
        %v1827 = vunpack.c.l.b16 %v564
        %v1828 = vunpack.c.h.b16 %v564
        %v1829 = vunpack.c.l.b16 %v565
        %v1830 = vunpack.c.h.b16 %v565
        %v1831 = vunpack.c.l.b16 %v566
        %v1832 = vunpack.c.h.b16 %v566
        %v1833 = vunpack.c.l.b16 %v567
        %v1834 = vunpack.c.h.b16 %v567
        %v1835 = vunpack.c.l.b16 %v568
        %v1836 = vunpack.c.h.b16 %v568
        %v1837 = vunpack.c.l.b16 %v569
        %v1838 = vunpack.c.h.b16 %v569
        %v1839 = vunpack.c.l.b16 %v570
        %v1840 = vunpack.c.h.b16 %v570
        %v1841 = vunpack.c.l.b16 %v571
        %v1842 = vunpack.c.h.b16 %v571
        %v1843 = vunpack.c.l.b16 %v572
        %v1844 = vunpack.c.h.b16 %v572
        %v1845 = vunpack.c.l.b16 %v573
        %v1846 = vunpack.c.h.b16 %v573
        %v1847 = vunpack.c.l.b16 %v574
        %v1848 = vunpack.c.h.b16 %v574
        %v1849 = vunpack.c.l.b16 %v575
        %v1850 = vunpack.c.h.b16 %v575
        %v1851 = vunpack.c.l.b16 %v576
        %v1852 = vunpack.c.h.b16 %v576
        %v1853 = vunpack.c.l.b16 %v577
        %v1854 = vunpack.c.h.b16 %v577
        %v1855 = vunpack.c.l.b16 %v578
        %v1856 = vunpack.c.h.b16 %v578
        %v1857 = vunpack.c.l.b16 %v579
        %v1858 = vunpack.c.h.b16 %v579
        %v1859 = vunpack.c.l.b16 %v580
        %v1860 = vunpack.c.h.b16 %v580
        %v1861 = vunpack.c.l.b16 %v581
        %v1862 = vunpack.c.h.b16 %v581
        %v1863 = vunpack.c.l.b16 %v582
        %v1864 = vunpack.c.h.b16 %v582
        %v1865 = vunpack.c.l.b16 %v583
        %v1866 = vunpack.c.h.b16 %v583
        %v1867 = vunpack.c.l.b16 %v584
        %v1868 = vunpack.c.h.b16 %v584
        %v1869 = vunpack.c.l.b16 %v585
        %v1870 = vunpack.c.h.b16 %v585
        %v1871 = vunpack.c.l.b16 %v586
        %v1872 = vunpack.c.h.b16 %v586
        %v1873 = vunpack.c.l.b16 %v587
        %v1874 = vunpack.c.h.b16 %v587
        %v1875 = vunpack.c.l.b16 %v588
        %v1876 = vunpack.c.h.b16 %v588
        %v1877 = vunpack.c.l.b16 %v589
        %v1878 = vunpack.c.h.b16 %v589
        %v1879 = vunpack.c.l.b16 %v590
        %v1880 = vunpack.c.h.b16 %v590
        %v1881 = vunpack.c.l.b16 %v591
        %v1882 = vunpack.c.h.b16 %v591
        %v1883 = vunpack.c.l.b16 %v592
        %v1884 = vunpack.c.h.b16 %v592
        %v1885 = vunpack.c.l.b16 %v593
        %v1886 = vunpack.c.h.b16 %v593
        %v1887 = vunpack.c.l.b16 %v594
        %v1888 = vunpack.c.h.b16 %v594
        %v1889 = vunpack.c.l.b16 %v595
        %v1890 = vunpack.c.h.b16 %v595
        %v1891 = vunpack.c.l.b16 %v596
        %v1892 = vunpack.c.h.b16 %v596
        %v1893 = vunpack.c.l.b16 %v597
        %v1894 = vunpack.c.h.b16 %v597
        %v1895 = vunpack.c.l.b16 %v598
        %v1896 = vunpack.c.h.b16 %v598
        %v1897 = vunpack.c.l.b16 %v599
        %v1898 = vunpack.c.h.b16 %v599
        %v1899 = vunpack.c.l.b16 %v600
        %v1900 = vunpack.c.h.b16 %v600
        %v1901 = vunpack.c.l.b16 %v601
        %v1902 = vunpack.c.h.b16 %v601
        %v1903 = vunpack.c.l.b16 %v602
        %v1904 = vunpack.c.h.b16 %v602
        %v1905 = vunpack.c.l.b16 %v603
        %v1906 = vunpack.c.h.b16 %v603
        %v1907 = vunpack.c.l.b16 %v604
        %v1908 = vunpack.c.h.b16 %v604
        %v1909 = vunpack.c.l.b16 %v605
        %v1910 = vunpack.c.h.b16 %v605
        %v1911 = vunpack.c.l.b16 %v606
        %v1912 = vunpack.c.h.b16 %v606
        %v1913 = vunpack.c.l.b16 %v607
        %v1914 = vunpack.c.h.b16 %v607
        %v1915 = vunpack.c.l.b16 %v608
        %v1916 = vunpack.c.h.b16 %v608
        %v1917 = vunpack.c.l.b16 %v609
        %v1918 = vunpack.c.h.b16 %v609
        %v1919 = vunpack.c.l.b16 %v610
        %v1920 = vunpack.c.h.b16 %v610
        %v1921 = vunpack.c.l.b16 %v611
        %v1922 = vunpack.c.h.b16 %v611
        %v1923 = vunpack.c.l.b16 %v612
        %v1924 = vunpack.c.h.b16 %v612
        %v1925 = vunpack.c.l.b16 %v613
        %v1926 = vunpack.c.h.b16 %v613
        %v1927 = vunpack.c.l.b16 %v614
        %v1928 = vunpack.c.h.b16 %v614
        %v1929 = vunpack.c.l.b16 %v615
        %v1930 = vunpack.c.h.b16 %v615
        %v1931 = vunpack.c.l.b16 %v616
        %v1932 = vunpack.c.h.b16 %v616
        %v1933 = vunpack.c.l.b16 %v617
        %v1934 = vunpack.c.h.b16 %v617
        %v1935 = vunpack.c.l.b16 %v618
        %v1936 = vunpack.c.h.b16 %v618
        %v1937 = vunpack.c.l.b16 %v619
        %v1938 = vunpack.c.h.b16 %v619
        %v1939 = vunpack.c.l.b16 %v620
        %v1940 = vunpack.c.h.b16 %v620
        %v1941 = vunpack.c.l.b16 %v621
        %v1942 = vunpack.c.h.b16 %v621
        %v1943 = vunpack.c.l.b16 %v622
        %v1944 = vunpack.c.h.b16 %v622
        %v1945 = vunpack.c.l.b16 %v623
        %v1946 = vunpack.c.h.b16 %v623
        %v1947 = vunpack.c.l.b16 %v624
        %v1948 = vunpack.c.h.b16 %v624
        %v1949 = vunpack.c.l.b16 %v625
        %v1950 = vunpack.c.h.b16 %v625
        %v1951 = vunpack.c.l.b16 %v626
        %v1952 = vunpack.c.h.b16 %v626
        %v1953 = vunpack.c.l.b16 %v627
        %v1954 = vunpack.c.h.b16 %v627
        %v1955 = vunpack.c.l.b16 %v628
        %v1956 = vunpack.c.h.b16 %v628
        %v1957 = vunpack.c.l.b16 %v629
        %v1958 = vunpack.c.h.b16 %v629
        %v1959 = vunpack.c.l.b16 %v630
        %v1960 = vunpack.c.h.b16 %v630
        %v1961 = vunpack.c.l.b16 %v631
        %v1962 = vunpack.c.h.b16 %v631
        %v1963 = vunpack.c.l.b16 %v632
        %v1964 = vunpack.c.h.b16 %v632
        %v1965 = vunpack.c.l.b16 %v633
        %v1966 = vunpack.c.h.b16 %v633
        %v1967 = vunpack.c.l.b16 %v634
        %v1968 = vunpack.c.h.b16 %v634
        %v1969 = vunpack.c.l.b16 %v635
        %v1970 = vunpack.c.h.b16 %v635
        %v1971 = vunpack.c.l.b16 %v636
        %v1972 = vunpack.c.h.b16 %v636
        %v1973 = vunpack.c.l.b16 %v637
        %v1974 = vunpack.c.h.b16 %v637
        %v1975 = vunpack.c.l.b16 %v638
        %v1976 = vunpack.c.h.b16 %v638
        %v1977 = vunpack.c.l.b16 %v639
        %v1978 = vunpack.c.h.b16 %v639
        %v1979 = vunpack.c.l.b16 %v640
        %v1980 = vunpack.c.h.b16 %v640
        %v1981 = vunpack.c.l.b16 %v641
        %v1982 = vunpack.c.h.b16 %v641
        %v1983 = vunpack.c.l.b16 %v642
        %v1984 = vunpack.c.h.b16 %v642
        %v1985 = vunpack.c.l.b16 %v643
        %v1986 = vunpack.c.h.b16 %v643
        %v1987 = vunpack.c.l.b16 %v644
        %v1988 = vunpack.c.h.b16 %v644
        %v1989 = vunpack.c.l.b16 %v645
        %v1990 = vunpack.c.h.b16 %v645
        %v1991 = vunpack.c.l.b16 %v646
        %v1992 = vunpack.c.h.b16 %v646
        %v1993 = vunpack.c.l.b16 %v647
        %v1994 = vunpack.c.h.b16 %v647
        %v1995 = vunpack.c.l.b16 %v648
        %v1996 = vunpack.c.h.b16 %v648
        %v1997 = vunpack.c.l.b16 %v649
        %v1998 = vunpack.c.h.b16 %v649
        %v1999 = vunpack.c.l.b16 %v650
        %v2000 = vunpack.c.h.b16 %v650
        %v2001 = vunpack.c.l.b16 %v651
        %v2002 = vunpack.c.h.b16 %v651
        %v2003 = vunpack.c.l.b16 %v652
        %v2004 = vunpack.c.h.b16 %v652
        %v2005 = vunpack.c.l.b16 %v653
        %v2006 = vunpack.c.h.b16 %v653
        %v2007 = vunpack.c.l.b16 %v654
        %v2008 = vunpack.c.h.b16 %v654
        %v2009 = vunpack.c.l.b16 %v655
        %v2010 = vunpack.c.h.b16 %v655
        %v2011 = vunpack.c.l.b16 %v656
        %v2012 = vunpack.c.h.b16 %v656
        %v2013 = vunpack.c.l.b16 %v657
        %v2014 = vunpack.c.h.b16 %v657
        %v2015 = vunpack.c.l.b16 %v658
        %v2016 = vunpack.c.h.b16 %v658
        %v2017 = vunpack.c.l.b16 %v659
        %v2018 = vunpack.c.h.b16 %v659
        %v2019 = vunpack.c.l.b16 %v660
        %v2020 = vunpack.c.h.b16 %v660
        %v2021 = vunpack.c.l.b16 %v661
        %v2022 = vunpack.c.h.b16 %v661
        %v2023 = vunpack.c.l.b16 %v662
        %v2024 = vunpack.c.h.b16 %v662
        %v2025 = vunpack.c.l.b16 %v663
        %v2026 = vunpack.c.h.b16 %v663
        %v2027 = vunpack.c.l.b16 %v664
        %v2028 = vunpack.c.h.b16 %v664
        %v2029 = vunpack.c.l.b16 %v665
        %v2030 = vunpack.c.h.b16 %v665
        %v2031 = vunpack.c.l.b16 %v666
        %v2032 = vunpack.c.h.b16 %v666
        %v2033 = vunpack.c.l.b16 %v667
        %v2034 = vunpack.c.h.b16 %v667
        %v2035 = vunpack.c.l.b16 %v668
        %v2036 = vunpack.c.h.b16 %v668
        %v2037 = vunpack.c.l.b16 %v669
        %v2038 = vunpack.c.h.b16 %v669
        %v2039 = vunpack.c.l.b16 %v670
        %v2040 = vunpack.c.h.b16 %v670
        %v2041 = vunpack.c.l.b16 %v671
        %v2042 = vunpack.c.h.b16 %v671
        %v2043 = vunpack.c.l.b16 %v672
        %v2044 = vunpack.c.h.b16 %v672
        %v2045 = vunpack.c.l.b16 %v673
        %v2046 = vunpack.c.h.b16 %v673
        %v2047 = vunpack.c.l.b16 %v674
        %v2048 = vunpack.c.h.b16 %v674
        %v2049 = vunpack.c.l.b16 %v675
        %v2050 = vunpack.c.h.b16 %v675
        %v2051 = vunpack.c.l.b16 %v676
        %v2052 = vunpack.c.h.b16 %v676
        %v2053 = vunpack.c.l.b16 %v677
        %v2054 = vunpack.c.h.b16 %v677
        %v2055 = vunpack.c.l.b16 %v678
        %v2056 = vunpack.c.h.b16 %v678
        %v2057 = vunpack.c.l.b16 %v679
        %v2058 = vunpack.c.h.b16 %v679
        %v2059 = vunpack.c.l.b16 %v680
        %v2060 = vunpack.c.h.b16 %v680
        %v2061 = vunpack.c.l.b16 %v681
        %v2062 = vunpack.c.h.b16 %v681
        %v2063 = vunpack.c.l.b16 %v682
        %v2064 = vunpack.c.h.b16 %v682
        %v2065 = vunpack.c.l.b16 %v683
        %v2066 = vunpack.c.h.b16 %v683
        %v2067 = vunpack.c.l.b16 %v684
        %v2068 = vunpack.c.h.b16 %v684
        %v2069 = vunpack.c.l.b16 %v685
        %v2070 = vunpack.c.h.b16 %v685
        %v2071 = vunpack.c.l.b16 %v686
        %v2072 = vunpack.c.h.b16 %v686
        %v2073 = vunpack.c.l.b16 %v687
        %v2074 = vunpack.c.h.b16 %v687
        %v2075 = vunpack.c.l.b16 %v688
        %v2076 = vunpack.c.h.b16 %v688
        %v2077 = vunpack.c.l.b16 %v689
        %v2078 = vunpack.c.h.b16 %v689
        %v2079 = vunpack.c.l.b16 %v690
        %v2080 = vunpack.c.h.b16 %v690
        %v2081 = vunpack.c.l.b16 %v691
        %v2082 = vunpack.c.h.b16 %v691
        %v2083 = vunpack.c.l.b16 %v692
        %v2084 = vunpack.c.h.b16 %v692
        %v2085 = vunpack.c.l.b16 %v693
        %v2086 = vunpack.c.h.b16 %v693
        %v2087 = vunpack.c.l.b16 %v694
        %v2088 = vunpack.c.h.b16 %v694
        %v2089 = vunpack.c.l.b16 %v695
        %v2090 = vunpack.c.h.b16 %v695
        %v2091 = vunpack.c.l.b16 %v696
        %v2092 = vunpack.c.h.b16 %v696
        %v2093 = vunpack.c.l.b16 %v697
        %v2094 = vunpack.c.h.b16 %v697
        %v2095 = vunpack.c.l.b16 %v698
        %v2096 = vunpack.c.h.b16 %v698
        %v2097 = vunpack.c.l.b16 %v699
        %v2098 = vunpack.c.h.b16 %v699
        %v2099 = vunpack.c.l.b16 %v700
        %v2100 = vunpack.c.h.b16 %v700
        %v2101 = vunpack.c.l.b16 %v701
        %v2102 = vunpack.c.h.b16 %v701
        %v2103 = vunpack.c.l.b16 %v702
        %v2104 = vunpack.c.h.b16 %v702
        %v2105 = vunpack.c.l.b16 %v703
        %v2106 = vunpack.c.h.b16 %v703
        %v2107 = vunpack.c.l.b16 %v704
        %v2108 = vunpack.c.h.b16 %v704
        %v2109 = vunpack.c.l.b16 %v705
        %v2110 = vunpack.c.h.b16 %v705
        %v2111 = vunpack.c.l.b16 %v706
        %v2112 = vunpack.c.h.b16 %v706
        %v2113 = vunpack.c.l.b16 %v707
        %v2114 = vunpack.c.h.b16 %v707
        %v2115 = vunpack.c.l.b16 %v708
        %v2116 = vunpack.c.h.b16 %v708
        %v2117 = vunpack.c.l.b16 %v709
        %v2118 = vunpack.c.h.b16 %v709
        %v2119 = vunpack.c.l.b16 %v710
        %v2120 = vunpack.c.h.b16 %v710
        %v2121 = vunpack.c.l.b16 %v711
        %v2122 = vunpack.c.h.b16 %v711
        %v2123 = vunpack.c.l.b16 %v712
        %v2124 = vunpack.c.h.b16 %v712
        %v2125 = vunpack.c.l.b16 %v713
        %v2126 = vunpack.c.h.b16 %v713
        %v2127 = vunpack.c.l.b16 %v714
        %v2128 = vunpack.c.h.b16 %v714
        %v2129 = vunpack.c.l.b16 %v715
        %v2130 = vunpack.c.h.b16 %v715
        %v2131 = vunpack.c.l.b16 %v716
        %v2132 = vunpack.c.h.b16 %v716
        %v2133 = vunpack.c.l.b16 %v717
        %v2134 = vunpack.c.h.b16 %v717
        %v2135 = vunpack.c.l.b16 %v718
        %v2136 = vunpack.c.h.b16 %v718
        %v2137 = vunpack.c.l.b16 %v719
        %v2138 = vunpack.c.h.b16 %v719
        %v2139 = vunpack.c.l.b16 %v720
        %v2140 = vunpack.c.h.b16 %v720
        %v2141 = vunpack.c.l.b16 %v721
        %v2142 = vunpack.c.h.b16 %v721
        %v2143 = vunpack.c.l.b16 %v722
        %v2144 = vunpack.c.h.b16 %v722
        %v2145 = vunpack.c.l.b16 %v723
        %v2146 = vunpack.c.h.b16 %v723
        %v2147 = vunpack.c.l.b16 %v724
        %v2148 = vunpack.c.h.b16 %v724
        %v2149 = vunpack.c.l.b16 %v725
        %v2150 = vunpack.c.h.b16 %v725
        %v2151 = vunpack.c.l.b16 %v726
        %v2152 = vunpack.c.h.b16 %v726
        %v2153 = vunpack.c.l.b16 %v727
        %v2154 = vunpack.c.h.b16 %v727
        %v2155 = vunpack.c.l.b16 %v728
        %v2156 = vunpack.c.h.b16 %v728
        %v2157 = vunpack.c.l.b16 %v729
        %v2158 = vunpack.c.h.b16 %v729
        %v2159 = vunpack.c.l.b16 %v730
        %v2160 = vunpack.c.h.b16 %v730
        %v2161 = vunpack.c.l.b16 %v731
        %v2162 = vunpack.c.h.b16 %v731
        %v2163 = vunpack.c.l.b16 %v732
        %v2164 = vunpack.c.h.b16 %v732
        %v2165 = vunpack.c.l.b16 %v733
        %v2166 = vunpack.c.h.b16 %v733
        %v2167 = vunpack.c.l.b16 %v734
        %v2168 = vunpack.c.h.b16 %v734
        %v2169 = vunpack.c.l.b16 %v735
        %v2170 = vunpack.c.h.b16 %v735
        %v2171 = vunpack.c.l.b16 %v736
        %v2172 = vunpack.c.h.b16 %v736
        %v2173 = vunpack.c.l.b16 %v737
        %v2174 = vunpack.c.h.b16 %v737
        %v2175 = vunpack.c.l.b16 %v738
        %v2176 = vunpack.c.h.b16 %v738
        %v2177 = vunpack.c.l.b16 %v739
        %v2178 = vunpack.c.h.b16 %v739
        %v2179 = vunpack.c.l.b16 %v740
        %v2180 = vunpack.c.h.b16 %v740
        %v2181 = vunpack.c.l.b16 %v741
        %v2182 = vunpack.c.h.b16 %v741
        %v2183 = vunpack.c.l.b16 %v742
        %v2184 = vunpack.c.h.b16 %v742
        %v2185 = vunpack.c.l.b16 %v743
        %v2186 = vunpack.c.h.b16 %v743
        %v2187 = vunpack.c.l.b16 %v744
        %v2188 = vunpack.c.h.b16 %v744
        %v2189 = vunpack.c.l.b16 %v745
        %v2190 = vunpack.c.h.b16 %v745
        %v2191 = vunpack.c.l.b16 %v746
        %v2192 = vunpack.c.h.b16 %v746
        %v2193 = vunpack.c.l.b16 %v747
        %v2194 = vunpack.c.h.b16 %v747
        %v2195 = vunpack.c.l.b16 %v748
        %v2196 = vunpack.c.h.b16 %v748
        %v2197 = vunpack.c.l.b16 %v749
        %v2198 = vunpack.c.h.b16 %v749
        %v2199 = vunpack.c.l.b16 %v750
        %v2200 = vunpack.c.h.b16 %v750
        %v2201 = vunpack.c.l.b16 %v751
        %v2202 = vunpack.c.h.b16 %v751
        %v2203 = vunpack.c.l.b16 %v752
        %v2204 = vunpack.c.h.b16 %v752
        %v2205 = vunpack.c.l.b16 %v753
        %v2206 = vunpack.c.h.b16 %v753
        %v2207 = vunpack.c.l.b16 %v754
        %v2208 = vunpack.c.h.b16 %v754
        %v2209 = vunpack.c.l.b16 %v755
        %v2210 = vunpack.c.h.b16 %v755
        %v2211 = vunpack.c.l.b16 %v756
        %v2212 = vunpack.c.h.b16 %v756
        %v2213 = vunpack.c.l.b16 %v757
        %v2214 = vunpack.c.h.b16 %v757
        %v2215 = vunpack.c.l.b16 %v758
        %v2216 = vunpack.c.h.b16 %v758
        %v2217 = vunpack.c.l.b16 %v759
        %v2218 = vunpack.c.h.b16 %v759
        %v2219 = vunpack.c.l.b16 %v760
        %v2220 = vunpack.c.h.b16 %v760
        %v2221 = vunpack.c.l.b16 %v761
        %v2222 = vunpack.c.h.b16 %v761
        %v2223 = vunpack.c.l.b16 %v762
        %v2224 = vunpack.c.h.b16 %v762
        %v2225 = vunpack.c.l.b16 %v763
        %v2226 = vunpack.c.h.b16 %v763
        %v2227 = vunpack.c.l.b16 %v764
        %v2228 = vunpack.c.h.b16 %v764
        %v2229 = vunpack.c.l.b16 %v765
        %v2230 = vunpack.c.h.b16 %v765
        %v2231 = vunpack.c.l.b16 %v766
        %v2232 = vunpack.c.h.b16 %v766
        %v2233 = vunpack.c.l.b16 %v767
        %v2234 = vunpack.c.h.b16 %v767
        %v2235 = vunpack.c.l.b16 %v768
        %v2236 = vunpack.c.h.b16 %v768
        %v2237 = vunpack.c.l.b16 %v769
        %v2238 = vunpack.c.h.b16 %v769
        %v2239 = vunpack.c.l.b16 %v770
        %v2240 = vunpack.c.h.b16 %v770
        %v2241 = vunpack.c.l.b16 %v771
        %v2242 = vunpack.c.h.b16 %v771
        %v2243 = vunpack.c.l.b16 %v772
        %v2244 = vunpack.c.h.b16 %v772
        %v2245 = vunpack.c.l.b16 %v773
        %v2246 = vunpack.c.h.b16 %v773
        %v2247 = vunpack.c.l.b16 %v774
        %v2248 = vunpack.c.h.b16 %v774
        %v2249 = vunpack.c.l.b16 %v775
        %v2250 = vunpack.c.h.b16 %v775
        %v2251 = vunpack.c.l.b16 %v776
        %v2252 = vunpack.c.h.b16 %v776
        %v2253 = vunpack.c.l.b16 %v777
        %v2254 = vunpack.c.h.b16 %v777
        %v2255 = vunpack.c.l.b16 %v778
        %v2256 = vunpack.c.h.b16 %v778
        %v2257 = vunpack.c.l.b16 %v779
        %v2258 = vunpack.c.h.b16 %v779
        %v2259 = vunpack.c.l.b16 %v780
        %v2260 = vunpack.c.h.b16 %v780
        %v2261 = vunpack.c.l.b16 %v781
        %v2262 = vunpack.c.h.b16 %v781
        %v2263 = vunpack.c.l.b16 %v782
        %v2264 = vunpack.c.h.b16 %v782
        %v2265 = vunpack.c.l.b16 %v783
        %v2266 = vunpack.c.h.b16 %v783
        %v2267 = vunpack.c.l.b16 %v784
        %v2268 = vunpack.c.h.b16 %v784
        %v2269 = vunpack.c.l.b16 %v785
        %v2270 = vunpack.c.h.b16 %v785
        %v2271 = vunpack.c.l.b16 %v786
        %v2272 = vunpack.c.h.b16 %v786
        %v2273 = vunpack.c.l.b16 %v787
        %v2274 = vunpack.c.h.b16 %v787
        %v2275 = vunpack.c.l.b16 %v788
        %v2276 = vunpack.c.h.b16 %v788
        %v2277 = vunpack.c.l.b16 %v789
        %v2278 = vunpack.c.h.b16 %v789
        %v2279 = vunpack.c.l.b16 %v790
        %v2280 = vunpack.c.h.b16 %v790
        %v2281 = vunpack.c.l.b16 %v791
        %v2282 = vunpack.c.h.b16 %v791
        %v2283 = vunpack.c.l.b16 %v792
        %v2284 = vunpack.c.h.b16 %v792
        %v2285 = vunpack.c.l.b16 %v793
        %v2286 = vunpack.c.h.b16 %v793
        %v2287 = vunpack.c.l.b16 %v794
        %v2288 = vunpack.c.h.b16 %v794
        %v2289 = vunpack.c.l.b16 %v795
        %v2290 = vunpack.c.h.b16 %v795
        %v2291 = vunpack.c.l.b16 %v796
        %v2292 = vunpack.c.h.b16 %v796
        %v2293 = vunpack.c.l.b16 %v797
        %v2294 = vunpack.c.h.b16 %v797
        %v2295 = vunpack.c.l.b16 %v798
        %v2296 = vunpack.c.h.b16 %v798
        %v2297 = vunpack.c.l.b16 %v799
        %v2298 = vunpack.c.h.b16 %v799
        %v2299 = vunpack.c.l.b16 %v800
        %v2300 = vunpack.c.h.b16 %v800
        %v2301 = vunpack.c.l.b16 %v801
        %v2302 = vunpack.c.h.b16 %v801
        %v2303 = vunpack.c.l.b16 %v802
        %v2304 = vunpack.c.h.b16 %v802
        %v2305 = vunpack.c.l.b16 %v803
        %v2306 = vunpack.c.h.b16 %v803
        %v2307 = vunpack.c.l.b16 %v804
        %v2308 = vunpack.c.h.b16 %v804
        %v2309 = vunpack.c.l.b16 %v805
        %v2310 = vunpack.c.h.b16 %v805
        %v2311 = vunpack.c.l.b16 %v806
        %v2312 = vunpack.c.h.b16 %v806
        %v2313 = vunpack.c.l.b16 %v807
        %v2314 = vunpack.c.h.b16 %v807
        %v2315 = vunpack.c.l.b16 %v808
        %v2316 = vunpack.c.h.b16 %v808
        %v2317 = vunpack.c.l.b16 %v809
        %v2318 = vunpack.c.h.b16 %v809
        %v2319 = vunpack.c.l.b16 %v810
        %v2320 = vunpack.c.h.b16 %v810
        %v2321 = vunpack.c.l.b16 %v811
        %v2322 = vunpack.c.h.b16 %v811
        %v2323 = vunpack.c.l.b16 %v812
        %v2324 = vunpack.c.h.b16 %v812
        %v2325 = vunpack.c.l.b16 %v813
        %v2326 = vunpack.c.h.b16 %v813
        %v2327 = vunpack.c.l.b16 %v814
        %v2328 = vunpack.c.h.b16 %v814
        %v2329 = vunpack.c.l.b16 %v815
        %v2330 = vunpack.c.h.b16 %v815
        %v2331 = vunpack.c.l.b16 %v816
        %v2332 = vunpack.c.h.b16 %v816
        %v2333 = vunpack.c.l.b16 %v817
        %v2334 = vunpack.c.h.b16 %v817
        %v2335 = vunpack.c.l.b16 %v818
        %v2336 = vunpack.c.h.b16 %v818
        %v2337 = vunpack.c.l.b16 %v819
        %v2338 = vunpack.c.h.b16 %v819
        %v2339 = vunpack.c.l.b16 %v820
        %v2340 = vunpack.c.h.b16 %v820
        %v2341 = vunpack.c.l.b16 %v821
        %v2342 = vunpack.c.h.b16 %v821
        %v2343 = vunpack.c.l.b16 %v822
        %v2344 = vunpack.c.h.b16 %v822
        %v2345 = vunpack.c.l.b16 %v823
        %v2346 = vunpack.c.h.b16 %v823
        %v2347 = vunpack.c.l.b16 %v824
        %v2348 = vunpack.c.h.b16 %v824
        %v2349 = vunpack.c.l.b16 %v825
        %v2350 = vunpack.c.h.b16 %v825
        %v2351 = vunpack.c.l.b16 %v826
        %v2352 = vunpack.c.h.b16 %v826
        %v2353 = vunpack.c.l.b16 %v827
        %v2354 = vunpack.c.h.b16 %v827
        %v2355 = vunpack.c.l.b16 %v828
        %v2356 = vunpack.c.h.b16 %v828
        %v2357 = vunpack.c.l.b16 %v829
        %v2358 = vunpack.c.h.b16 %v829
        %v2359 = vunpack.c.l.b16 %v830
        %v2360 = vunpack.c.h.b16 %v830
        %v2361 = vunpack.c.l.b16 %v831
        %v2362 = vunpack.c.h.b16 %v831
        %v2363 = vunpack.c.l.b16 %v832
        %v2364 = vunpack.c.h.b16 %v832
        %v2365 = vunpack.c.l.b16 %v833
        %v2366 = vunpack.c.h.b16 %v833
        %v2367 = vunpack.c.l.b16 %v834
        %v2368 = vunpack.c.h.b16 %v834
        %v2369 = vunpack.c.l.b16 %v835
        %v2370 = vunpack.c.h.b16 %v835
        %v2371 = vunpack.c.l.b16 %v836
        %v2372 = vunpack.c.h.b16 %v836
        %v2373 = vunpack.c.l.b16 %v837
        %v2374 = vunpack.c.h.b16 %v837
        %v2375 = vunpack.c.l.b16 %v838
        %v2376 = vunpack.c.h.b16 %v838
        %v2377 = vunpack.c.l.b16 %v839
        %v2378 = vunpack.c.h.b16 %v839
        %v2379 = vunpack.c.l.b16 %v840
        %v2380 = vunpack.c.h.b16 %v840
        %v2381 = vunpack.c.l.b16 %v841
        %v2382 = vunpack.c.h.b16 %v841
        %v2383 = vunpack.c.l.b16 %v842
        %v2384 = vunpack.c.h.b16 %v842
        %v2385 = vunpack.c.l.b16 %v843
        %v2386 = vunpack.c.h.b16 %v843
        %v2387 = vunpack.c.l.b16 %v844
        %v2388 = vunpack.c.h.b16 %v844
        %v2389 = vunpack.c.l.b16 %v845
        %v2390 = vunpack.c.h.b16 %v845
        %v2391 = vunpack.c.l.b16 %v846
        %v2392 = vunpack.c.h.b16 %v846
        %v2393 = vunpack.c.l.b16 %v847
        %v2394 = vunpack.c.h.b16 %v847
        %v2395 = vunpack.c.l.b16 %v848
        %v2396 = vunpack.c.h.b16 %v848
        %v2397 = vunpack.c.l.b16 %v849
        %v2398 = vunpack.c.h.b16 %v849
        %v2399 = vunpack.c.l.b16 %v850
        %v2400 = vunpack.c.h.b16 %v850
        %v2401 = vunpack.c.l.b16 %v851
        %v2402 = vunpack.c.h.b16 %v851
        %v2403 = vunpack.c.l.b16 %v852
        %v2404 = vunpack.c.h.b16 %v852
        %v2405 = vunpack.c.l.b16 %v853
        %v2406 = vunpack.c.h.b16 %v853
        %v2407 = vunpack.c.l.b16 %v854
        %v2408 = vunpack.c.h.b16 %v854
        %v2409 = vunpack.c.l.b16 %v855
        %v2410 = vunpack.c.h.b16 %v855
        %v2411 = vunpack.c.l.b16 %v856
        %v2412 = vunpack.c.h.b16 %v856
        %v2413 = vunpack.c.l.b16 %v857
        %v2414 = vunpack.c.h.b16 %v857
        %v2415 = vunpack.c.l.b16 %v858
        %v2416 = vunpack.c.h.b16 %v858
        %v2417 = vpack.c.b16 %v1397, %v1393
        %v2418 = vpack.c.b16 %v1398, %v1394
        %v2419 = vpack.c.b16 %v1399, %v1395
        %v2420 = vpack.c.b16 %v1400, %v1396
        %v2421 = vpack.c.b16 %v1405, %v1401
        %v2422 = vpack.c.b16 %v1406, %v1402
        %v2423 = vpack.c.b16 %v1407, %v1403
        %v2424 = vpack.c.b16 %v1408, %v1404
        %v2425 = vpack.c.b16 %v1413, %v1409
        %v2426 = vpack.c.b16 %v1414, %v1410
        %v2427 = vpack.c.b16 %v1415, %v1411
        %v2428 = vpack.c.b16 %v1416, %v1412
        %v2429 = vpack.c.b16 %v1421, %v1417
        %v2430 = vpack.c.b16 %v1422, %v1418
        %v2431 = vpack.c.b16 %v1423, %v1419
        %v2432 = vpack.c.b16 %v1424, %v1420
        %v2433 = vpack.c.b16 %v1429, %v1425
        %v2434 = vpack.c.b16 %v1430, %v1426
        %v2435 = vpack.c.b16 %v1431, %v1427
        %v2436 = vpack.c.b16 %v1432, %v1428
        %v2437 = vpack.c.b16 %v1437, %v1433
        %v2438 = vpack.c.b16 %v1438, %v1434
        %v2439 = vpack.c.b16 %v1439, %v1435
        %v2440 = vpack.c.b16 %v1440, %v1436
        %v2441 = vpack.c.b16 %v1445, %v1441
        %v2442 = vpack.c.b16 %v1446, %v1442
        %v2443 = vpack.c.b16 %v1447, %v1443
        %v2444 = vpack.c.b16 %v1448, %v1444
        %v2445 = vpack.c.b16 %v1453, %v1449
        %v2446 = vpack.c.b16 %v1454, %v1450
        %v2447 = vpack.c.b16 %v1455, %v1451
        %v2448 = vpack.c.b16 %v1456, %v1452
        %v2449 = vpack.c.b16 %v1461, %v1457
        %v2450 = vpack.c.b16 %v1462, %v1458
        %v2451 = vpack.c.b16 %v1463, %v1459
        %v2452 = vpack.c.b16 %v1464, %v1460
        %v2453 = vpack.c.b16 %v1469, %v1465
        %v2454 = vpack.c.b16 %v1470, %v1466
        %v2455 = vpack.c.b16 %v1471, %v1467
        %v2456 = vpack.c.b16 %v1472, %v1468
        %v2457 = vpack.c.b16 %v1477, %v1473
        %v2458 = vpack.c.b16 %v1478, %v1474
        %v2459 = vpack.c.b16 %v1479, %v1475
        %v2460 = vpack.c.b16 %v1480, %v1476
        %v2461 = vpack.c.b16 %v1485, %v1481
        %v2462 = vpack.c.b16 %v1486, %v1482
        %v2463 = vpack.c.b16 %v1487, %v1483
        %v2464 = vpack.c.b16 %v1488, %v1484
        %v2465 = vpack.c.b16 %v1493, %v1489
        %v2466 = vpack.c.b16 %v1494, %v1490
        %v2467 = vpack.c.b16 %v1495, %v1491
        %v2468 = vpack.c.b16 %v1496, %v1492
        %v2469 = vpack.c.b16 %v1501, %v1497
        %v2470 = vpack.c.b16 %v1502, %v1498
        %v2471 = vpack.c.b16 %v1503, %v1499
        %v2472 = vpack.c.b16 %v1504, %v1500
        %v2473 = vpack.c.b16 %v1509, %v1505
        %v2474 = vpack.c.b16 %v1510, %v1506
        %v2475 = vpack.c.b16 %v1511, %v1507
        %v2476 = vpack.c.b16 %v1512, %v1508
        %v2477 = vpack.c.b16 %v1517, %v1513
        %v2478 = vpack.c.b16 %v1518, %v1514
        %v2479 = vpack.c.b16 %v1519, %v1515
        %v2480 = vpack.c.b16 %v1520, %v1516
        %v2481 = vpack.c.b16 %v1525, %v1521
        %v2482 = vpack.c.b16 %v1526, %v1522
        %v2483 = vpack.c.b16 %v1527, %v1523
        %v2484 = vpack.c.b16 %v1528, %v1524
        %v2485 = vpack.c.b16 %v1533, %v1529
        %v2486 = vpack.c.b16 %v1534, %v1530
        %v2487 = vpack.c.b16 %v1535, %v1531
        %v2488 = vpack.c.b16 %v1536, %v1532
        %v2489 = vpack.c.b16 %v1541, %v1537
        %v2490 = vpack.c.b16 %v1542, %v1538
        %v2491 = vpack.c.b16 %v1543, %v1539
        %v2492 = vpack.c.b16 %v1544, %v1540
        %v2493 = vpack.c.b16 %v1549, %v1545
        %v2494 = vpack.c.b16 %v1550, %v1546
        %v2495 = vpack.c.b16 %v1551, %v1547
        %v2496 = vpack.c.b16 %v1552, %v1548
        %v2497 = vpack.c.b16 %v1557, %v1553
        %v2498 = vpack.c.b16 %v1558, %v1554
        %v2499 = vpack.c.b16 %v1559, %v1555
        %v2500 = vpack.c.b16 %v1560, %v1556
        %v2501 = vpack.c.b16 %v1565, %v1561
        %v2502 = vpack.c.b16 %v1566, %v1562
        %v2503 = vpack.c.b16 %v1567, %v1563
        %v2504 = vpack.c.b16 %v1568, %v1564
        %v2505 = vpack.c.b16 %v1573, %v1569
        %v2506 = vpack.c.b16 %v1574, %v1570
        %v2507 = vpack.c.b16 %v1575, %v1571
        %v2508 = vpack.c.b16 %v1576, %v1572
        %v2509 = vpack.c.b16 %v1581, %v1577
        %v2510 = vpack.c.b16 %v1582, %v1578
        %v2511 = vpack.c.b16 %v1583, %v1579
        %v2512 = vpack.c.b16 %v1584, %v1580
        %v2513 = vpack.c.b16 %v1589, %v1585
        %v2514 = vpack.c.b16 %v1590, %v1586
        %v2515 = vpack.c.b16 %v1591, %v1587
        %v2516 = vpack.c.b16 %v1592, %v1588
        %v2517 = vpack.c.b16 %v1597, %v1593
        %v2518 = vpack.c.b16 %v1598, %v1594
        %v2519 = vpack.c.b16 %v1599, %v1595
        %v2520 = vpack.c.b16 %v1600, %v1596
        %v2521 = vpack.c.b16 %v1605, %v1601
        %v2522 = vpack.c.b16 %v1606, %v1602
        %v2523 = vpack.c.b16 %v1607, %v1603
        %v2524 = vpack.c.b16 %v1608, %v1604
        %v2525 = vpack.c.b16 %v1613, %v1609
        %v2526 = vpack.c.b16 %v1614, %v1610
        %v2527 = vpack.c.b16 %v1615, %v1611
        %v2528 = vpack.c.b16 %v1616, %v1612
        %v2529 = vpack.c.b16 %v1621, %v1617
        %v2530 = vpack.c.b16 %v1622, %v1618
        %v2531 = vpack.c.b16 %v1623, %v1619
        %v2532 = vpack.c.b16 %v1624, %v1620
        %v2533 = vpack.c.b16 %v1629, %v1625
        %v2534 = vpack.c.b16 %v1630, %v1626
        %v2535 = vpack.c.b16 %v1631, %v1627
        %v2536 = vpack.c.b16 %v1632, %v1628
        %v2537 = vpack.c.b16 %v1637, %v1633
        %v2538 = vpack.c.b16 %v1638, %v1634
        %v2539 = vpack.c.b16 %v1639, %v1635
        %v2540 = vpack.c.b16 %v1640, %v1636
        %v2541 = vpack.c.b16 %v1645, %v1641
        %v2542 = vpack.c.b16 %v1646, %v1642
        %v2543 = vpack.c.b16 %v1647, %v1643
        %v2544 = vpack.c.b16 %v1648, %v1644
        %v2545 = vpack.c.b16 %v1653, %v1649
        %v2546 = vpack.c.b16 %v1654, %v1650
        %v2547 = vpack.c.b16 %v1655, %v1651
        %v2548 = vpack.c.b16 %v1656, %v1652
        %v2549 = vpack.c.b16 %v1661, %v1657
        %v2550 = vpack.c.b16 %v1662, %v1658
        %v2551 = vpack.c.b16 %v1663, %v1659
        %v2552 = vpack.c.b16 %v1664, %v1660
        %v2553 = vpack.c.b16 %v1669, %v1665
        %v2554 = vpack.c.b16 %v1670, %v1666
        %v2555 = vpack.c.b16 %v1671, %v1667
        %v2556 = vpack.c.b16 %v1672, %v1668
        %v2557 = vpack.c.b16 %v1677, %v1673
        %v2558 = vpack.c.b16 %v1678, %v1674
        %v2559 = vpack.c.b16 %v1679, %v1675
        %v2560 = vpack.c.b16 %v1680, %v1676
        %v2561 = vpack.c.b16 %v1685, %v1681
        %v2562 = vpack.c.b16 %v1686, %v1682
        %v2563 = vpack.c.b16 %v1687, %v1683
        %v2564 = vpack.c.b16 %v1688, %v1684
        %v2565 = vpack.c.b16 %v1693, %v1689
        %v2566 = vpack.c.b16 %v1694, %v1690
        %v2567 = vpack.c.b16 %v1695, %v1691
        %v2568 = vpack.c.b16 %v1696, %v1692
        %v2569 = vpack.c.b16 %v1701, %v1697
        %v2570 = vpack.c.b16 %v1702, %v1698
        %v2571 = vpack.c.b16 %v1703, %v1699
        %v2572 = vpack.c.b16 %v1704, %v1700
        %v2573 = vpack.c.b16 %v1709, %v1705
        %v2574 = vpack.c.b16 %v1710, %v1706
        %v2575 = vpack.c.b16 %v1711, %v1707
        %v2576 = vpack.c.b16 %v1712, %v1708
        %v2577 = vpack.c.b16 %v1717, %v1713
        %v2578 = vpack.c.b16 %v1718, %v1714
        %v2579 = vpack.c.b16 %v1719, %v1715
        %v2580 = vpack.c.b16 %v1720, %v1716
        %v2581 = vpack.c.b16 %v1725, %v1721
        %v2582 = vpack.c.b16 %v1726, %v1722
        %v2583 = vpack.c.b16 %v1727, %v1723
        %v2584 = vpack.c.b16 %v1728, %v1724
        %v2585 = vpack.c.b16 %v1733, %v1729
        %v2586 = vpack.c.b16 %v1734, %v1730
        %v2587 = vpack.c.b16 %v1735, %v1731
        %v2588 = vpack.c.b16 %v1736, %v1732
        %v2589 = vpack.c.b16 %v1741, %v1737
        %v2590 = vpack.c.b16 %v1742, %v1738
        %v2591 = vpack.c.b16 %v1743, %v1739
        %v2592 = vpack.c.b16 %v1744, %v1740
        %v2593 = vpack.c.b16 %v1749, %v1745
        %v2594 = vpack.c.b16 %v1750, %v1746
        %v2595 = vpack.c.b16 %v1751, %v1747
        %v2596 = vpack.c.b16 %v1752, %v1748
        %v2597 = vpack.c.b16 %v1757, %v1753
        %v2598 = vpack.c.b16 %v1758, %v1754
        %v2599 = vpack.c.b16 %v1759, %v1755
        %v2600 = vpack.c.b16 %v1760, %v1756
        %v2601 = vpack.c.b16 %v1765, %v1761
        %v2602 = vpack.c.b16 %v1766, %v1762
        %v2603 = vpack.c.b16 %v1767, %v1763
        %v2604 = vpack.c.b16 %v1768, %v1764
        %v2605 = vpack.c.b16 %v1773, %v1769
        %v2606 = vpack.c.b16 %v1774, %v1770
        %v2607 = vpack.c.b16 %v1775, %v1771
        %v2608 = vpack.c.b16 %v1776, %v1772
        %v2609 = vpack.c.b16 %v1781, %v1777
        %v2610 = vpack.c.b16 %v1782, %v1778
        %v2611 = vpack.c.b16 %v1783, %v1779
        %v2612 = vpack.c.b16 %v1784, %v1780
        %v2613 = vpack.c.b16 %v1789, %v1785
        %v2614 = vpack.c.b16 %v1790, %v1786
        %v2615 = vpack.c.b16 %v1791, %v1787
        %v2616 = vpack.c.b16 %v1792, %v1788
        %v2617 = vpack.c.b16 %v1797, %v1793
        %v2618 = vpack.c.b16 %v1798, %v1794
        %v2619 = vpack.c.b16 %v1799, %v1795
        %v2620 = vpack.c.b16 %v1800, %v1796
        %v2621 = vpack.c.b16 %v1805, %v1801
        %v2622 = vpack.c.b16 %v1806, %v1802
        %v2623 = vpack.c.b16 %v1807, %v1803
        %v2624 = vpack.c.b16 %v1808, %v1804
        %v2625 = vpack.c.b16 %v1813, %v1809
        %v2626 = vpack.c.b16 %v1814, %v1810
        %v2627 = vpack.c.b16 %v1815, %v1811
        %v2628 = vpack.c.b16 %v1816, %v1812
        %v2629 = vpack.c.b16 %v1821, %v1817
        %v2630 = vpack.c.b16 %v1822, %v1818
        %v2631 = vpack.c.b16 %v1823, %v1819
        %v2632 = vpack.c.b16 %v1824, %v1820
        %v2633 = vpack.c.b16 %v1829, %v1825
        %v2634 = vpack.c.b16 %v1830, %v1826
        %v2635 = vpack.c.b16 %v1831, %v1827
        %v2636 = vpack.c.b16 %v1832, %v1828
        %v2637 = vpack.c.b16 %v1837, %v1833
        %v2638 = vpack.c.b16 %v1838, %v1834
        %v2639 = vpack.c.b16 %v1839, %v1835
        %v2640 = vpack.c.b16 %v1840, %v1836
        %v2641 = vpack.c.b16 %v1845, %v1841
        %v2642 = vpack.c.b16 %v1846, %v1842
        %v2643 = vpack.c.b16 %v1847, %v1843
        %v2644 = vpack.c.b16 %v1848, %v1844
        %v2645 = vpack.c.b16 %v1853, %v1849
        %v2646 = vpack.c.b16 %v1854, %v1850
        %v2647 = vpack.c.b16 %v1855, %v1851
        %v2648 = vpack.c.b16 %v1856, %v1852
        %v2649 = vpack.c.b16 %v1861, %v1857
        %v2650 = vpack.c.b16 %v1862, %v1858
        %v2651 = vpack.c.b16 %v1863, %v1859
        %v2652 = vpack.c.b16 %v1864, %v1860
        %v2653 = vpack.c.b16 %v1869, %v1865
        %v2654 = vpack.c.b16 %v1870, %v1866
        %v2655 = vpack.c.b16 %v1871, %v1867
        %v2656 = vpack.c.b16 %v1872, %v1868
        %v2657 = vpack.c.b16 %v1877, %v1873
        %v2658 = vpack.c.b16 %v1878, %v1874
        %v2659 = vpack.c.b16 %v1879, %v1875
        %v2660 = vpack.c.b16 %v1880, %v1876
        %v2661 = vpack.c.b16 %v1885, %v1881
        %v2662 = vpack.c.b16 %v1886, %v1882
        %v2663 = vpack.c.b16 %v1887, %v1883
        %v2664 = vpack.c.b16 %v1888, %v1884
        %v2665 = vpack.c.b16 %v1893, %v1889
        %v2666 = vpack.c.b16 %v1894, %v1890
        %v2667 = vpack.c.b16 %v1895, %v1891
        %v2668 = vpack.c.b16 %v1896, %v1892
        %v2669 = vpack.c.b16 %v1901, %v1897
        %v2670 = vpack.c.b16 %v1902, %v1898
        %v2671 = vpack.c.b16 %v1903, %v1899
        %v2672 = vpack.c.b16 %v1904, %v1900
        %v2673 = vpack.c.b16 %v1909, %v1905
        %v2674 = vpack.c.b16 %v1910, %v1906
        %v2675 = vpack.c.b16 %v1911, %v1907
        %v2676 = vpack.c.b16 %v1912, %v1908
        %v2677 = vpack.c.b16 %v1917, %v1913
        %v2678 = vpack.c.b16 %v1918, %v1914
        %v2679 = vpack.c.b16 %v1919, %v1915
        %v2680 = vpack.c.b16 %v1920, %v1916
        %v2681 = vpack.c.b16 %v1925, %v1921
        %v2682 = vpack.c.b16 %v1926, %v1922
        %v2683 = vpack.c.b16 %v1927, %v1923
        %v2684 = vpack.c.b16 %v1928, %v1924
        %v2685 = vpack.c.b16 %v1933, %v1929
        %v2686 = vpack.c.b16 %v1934, %v1930
        %v2687 = vpack.c.b16 %v1935, %v1931
        %v2688 = vpack.c.b16 %v1936, %v1932
        %v2689 = vpack.c.b16 %v1941, %v1937
        %v2690 = vpack.c.b16 %v1942, %v1938
        %v2691 = vpack.c.b16 %v1943, %v1939
        %v2692 = vpack.c.b16 %v1944, %v1940
        %v2693 = vpack.c.b16 %v1949, %v1945
        %v2694 = vpack.c.b16 %v1950, %v1946
        %v2695 = vpack.c.b16 %v1951, %v1947
        %v2696 = vpack.c.b16 %v1952, %v1948
        %v2697 = vpack.c.b16 %v1957, %v1953
        %v2698 = vpack.c.b16 %v1958, %v1954
        %v2699 = vpack.c.b16 %v1959, %v1955
        %v2700 = vpack.c.b16 %v1960, %v1956
        %v2701 = vpack.c.b16 %v1965, %v1961
        %v2702 = vpack.c.b16 %v1966, %v1962
        %v2703 = vpack.c.b16 %v1967, %v1963
        %v2704 = vpack.c.b16 %v1968, %v1964
        %v2705 = vpack.c.b16 %v1973, %v1969
        %v2706 = vpack.c.b16 %v1974, %v1970
        %v2707 = vpack.c.b16 %v1975, %v1971
        %v2708 = vpack.c.b16 %v1976, %v1972
        %v2709 = vpack.c.b16 %v1981, %v1977
        %v2710 = vpack.c.b16 %v1982, %v1978
        %v2711 = vpack.c.b16 %v1983, %v1979
        %v2712 = vpack.c.b16 %v1984, %v1980
        %v2713 = vpack.c.b16 %v1989, %v1985
        %v2714 = vpack.c.b16 %v1990, %v1986
        %v2715 = vpack.c.b16 %v1991, %v1987
        %v2716 = vpack.c.b16 %v1992, %v1988
        %v2717 = vpack.c.b16 %v1997, %v1993
        %v2718 = vpack.c.b16 %v1998, %v1994
        %v2719 = vpack.c.b16 %v1999, %v1995
        %v2720 = vpack.c.b16 %v2000, %v1996
        %v2721 = vpack.c.b16 %v2005, %v2001
        %v2722 = vpack.c.b16 %v2006, %v2002
        %v2723 = vpack.c.b16 %v2007, %v2003
        %v2724 = vpack.c.b16 %v2008, %v2004
        %v2725 = vpack.c.b16 %v2013, %v2009
        %v2726 = vpack.c.b16 %v2014, %v2010
        %v2727 = vpack.c.b16 %v2015, %v2011
        %v2728 = vpack.c.b16 %v2016, %v2012
        %v2729 = vpack.c.b16 %v2021, %v2017
        %v2730 = vpack.c.b16 %v2022, %v2018
        %v2731 = vpack.c.b16 %v2023, %v2019
        %v2732 = vpack.c.b16 %v2024, %v2020
        %v2733 = vpack.c.b16 %v2029, %v2025
        %v2734 = vpack.c.b16 %v2030, %v2026
        %v2735 = vpack.c.b16 %v2031, %v2027
        %v2736 = vpack.c.b16 %v2032, %v2028
        %v2737 = vpack.c.b16 %v2037, %v2033
        %v2738 = vpack.c.b16 %v2038, %v2034
        %v2739 = vpack.c.b16 %v2039, %v2035
        %v2740 = vpack.c.b16 %v2040, %v2036
        %v2741 = vpack.c.b16 %v2045, %v2041
        %v2742 = vpack.c.b16 %v2046, %v2042
        %v2743 = vpack.c.b16 %v2047, %v2043
        %v2744 = vpack.c.b16 %v2048, %v2044
        %v2745 = vpack.c.b16 %v2053, %v2049
        %v2746 = vpack.c.b16 %v2054, %v2050
        %v2747 = vpack.c.b16 %v2055, %v2051
        %v2748 = vpack.c.b16 %v2056, %v2052
        %v2749 = vpack.c.b16 %v2061, %v2057
        %v2750 = vpack.c.b16 %v2062, %v2058
        %v2751 = vpack.c.b16 %v2063, %v2059
        %v2752 = vpack.c.b16 %v2064, %v2060
        %v2753 = vpack.c.b16 %v2069, %v2065
        %v2754 = vpack.c.b16 %v2070, %v2066
        %v2755 = vpack.c.b16 %v2071, %v2067
        %v2756 = vpack.c.b16 %v2072, %v2068
        %v2757 = vpack.c.b16 %v2077, %v2073
        %v2758 = vpack.c.b16 %v2078, %v2074
        %v2759 = vpack.c.b16 %v2079, %v2075
        %v2760 = vpack.c.b16 %v2080, %v2076
        %v2761 = vpack.c.b16 %v2085, %v2081
        %v2762 = vpack.c.b16 %v2086, %v2082
        %v2763 = vpack.c.b16 %v2087, %v2083
        %v2764 = vpack.c.b16 %v2088, %v2084
        %v2765 = vpack.c.b16 %v2093, %v2089
        %v2766 = vpack.c.b16 %v2094, %v2090
        %v2767 = vpack.c.b16 %v2095, %v2091
        %v2768 = vpack.c.b16 %v2096, %v2092
        %v2769 = vpack.c.b16 %v2101, %v2097
        %v2770 = vpack.c.b16 %v2102, %v2098
        %v2771 = vpack.c.b16 %v2103, %v2099
        %v2772 = vpack.c.b16 %v2104, %v2100
        %v2773 = vpack.c.b16 %v2109, %v2105
        %v2774 = vpack.c.b16 %v2110, %v2106
        %v2775 = vpack.c.b16 %v2111, %v2107
        %v2776 = vpack.c.b16 %v2112, %v2108
        %v2777 = vpack.c.b16 %v2117, %v2113
        %v2778 = vpack.c.b16 %v2118, %v2114
        %v2779 = vpack.c.b16 %v2119, %v2115
        %v2780 = vpack.c.b16 %v2120, %v2116
        %v2781 = vpack.c.b16 %v2125, %v2121
        %v2782 = vpack.c.b16 %v2126, %v2122
        %v2783 = vpack.c.b16 %v2127, %v2123
        %v2784 = vpack.c.b16 %v2128, %v2124
        %v2785 = vpack.c.b16 %v2133, %v2129
        %v2786 = vpack.c.b16 %v2134, %v2130
        %v2787 = vpack.c.b16 %v2135, %v2131
        %v2788 = vpack.c.b16 %v2136, %v2132
        %v2789 = vpack.c.b16 %v2141, %v2137
        %v2790 = vpack.c.b16 %v2142, %v2138
        %v2791 = vpack.c.b16 %v2143, %v2139
        %v2792 = vpack.c.b16 %v2144, %v2140
        %v2793 = vpack.c.b16 %v2149, %v2145
        %v2794 = vpack.c.b16 %v2150, %v2146
        %v2795 = vpack.c.b16 %v2151, %v2147
        %v2796 = vpack.c.b16 %v2152, %v2148
        %v2797 = vpack.c.b16 %v2157, %v2153
        %v2798 = vpack.c.b16 %v2158, %v2154
        %v2799 = vpack.c.b16 %v2159, %v2155
        %v2800 = vpack.c.b16 %v2160, %v2156
        %v2801 = vpack.c.b16 %v2165, %v2161
        %v2802 = vpack.c.b16 %v2166, %v2162
        %v2803 = vpack.c.b16 %v2167, %v2163
        %v2804 = vpack.c.b16 %v2168, %v2164
        %v2805 = vpack.c.b16 %v2173, %v2169
        %v2806 = vpack.c.b16 %v2174, %v2170
        %v2807 = vpack.c.b16 %v2175, %v2171
        %v2808 = vpack.c.b16 %v2176, %v2172
        %v2809 = vpack.c.b16 %v2181, %v2177
        %v2810 = vpack.c.b16 %v2182, %v2178
        %v2811 = vpack.c.b16 %v2183, %v2179
        %v2812 = vpack.c.b16 %v2184, %v2180
        %v2813 = vpack.c.b16 %v2189, %v2185
        %v2814 = vpack.c.b16 %v2190, %v2186
        %v2815 = vpack.c.b16 %v2191, %v2187
        %v2816 = vpack.c.b16 %v2192, %v2188
        %v2817 = vpack.c.b16 %v2197, %v2193
        %v2818 = vpack.c.b16 %v2198, %v2194
        %v2819 = vpack.c.b16 %v2199, %v2195
        %v2820 = vpack.c.b16 %v2200, %v2196
        %v2821 = vpack.c.b16 %v2205, %v2201
        %v2822 = vpack.c.b16 %v2206, %v2202
        %v2823 = vpack.c.b16 %v2207, %v2203
        %v2824 = vpack.c.b16 %v2208, %v2204
        %v2825 = vpack.c.b16 %v2213, %v2209
        %v2826 = vpack.c.b16 %v2214, %v2210
        %v2827 = vpack.c.b16 %v2215, %v2211
        %v2828 = vpack.c.b16 %v2216, %v2212
        %v2829 = vpack.c.b16 %v2221, %v2217
        %v2830 = vpack.c.b16 %v2222, %v2218
        %v2831 = vpack.c.b16 %v2223, %v2219
        %v2832 = vpack.c.b16 %v2224, %v2220
        %v2833 = vpack.c.b16 %v2229, %v2225
        %v2834 = vpack.c.b16 %v2230, %v2226
        %v2835 = vpack.c.b16 %v2231, %v2227
        %v2836 = vpack.c.b16 %v2232, %v2228
        %v2837 = vpack.c.b16 %v2237, %v2233
        %v2838 = vpack.c.b16 %v2238, %v2234
        %v2839 = vpack.c.b16 %v2239, %v2235
        %v2840 = vpack.c.b16 %v2240, %v2236
        %v2841 = vpack.c.b16 %v2245, %v2241
        %v2842 = vpack.c.b16 %v2246, %v2242
        %v2843 = vpack.c.b16 %v2247, %v2243
        %v2844 = vpack.c.b16 %v2248, %v2244
        %v2845 = vpack.c.b16 %v2253, %v2249
        %v2846 = vpack.c.b16 %v2254, %v2250
        %v2847 = vpack.c.b16 %v2255, %v2251
        %v2848 = vpack.c.b16 %v2256, %v2252
        %v2849 = vpack.c.b16 %v2261, %v2257
        %v2850 = vpack.c.b16 %v2262, %v2258
        %v2851 = vpack.c.b16 %v2263, %v2259
        %v2852 = vpack.c.b16 %v2264, %v2260
        %v2853 = vpack.c.b16 %v2269, %v2265
        %v2854 = vpack.c.b16 %v2270, %v2266
        %v2855 = vpack.c.b16 %v2271, %v2267
        %v2856 = vpack.c.b16 %v2272, %v2268
        %v2857 = vpack.c.b16 %v2277, %v2273
        %v2858 = vpack.c.b16 %v2278, %v2274
        %v2859 = vpack.c.b16 %v2279, %v2275
        %v2860 = vpack.c.b16 %v2280, %v2276
        %v2861 = vpack.c.b16 %v2285, %v2281
        %v2862 = vpack.c.b16 %v2286, %v2282
        %v2863 = vpack.c.b16 %v2287, %v2283
        %v2864 = vpack.c.b16 %v2288, %v2284
        %v2865 = vpack.c.b16 %v2293, %v2289
        %v2866 = vpack.c.b16 %v2294, %v2290
        %v2867 = vpack.c.b16 %v2295, %v2291
        %v2868 = vpack.c.b16 %v2296, %v2292
        %v2869 = vpack.c.b16 %v2301, %v2297
        %v2870 = vpack.c.b16 %v2302, %v2298
        %v2871 = vpack.c.b16 %v2303, %v2299
        %v2872 = vpack.c.b16 %v2304, %v2300
        %v2873 = vpack.c.b16 %v2309, %v2305
        %v2874 = vpack.c.b16 %v2310, %v2306
        %v2875 = vpack.c.b16 %v2311, %v2307
        %v2876 = vpack.c.b16 %v2312, %v2308
        %v2877 = vpack.c.b16 %v2317, %v2313
        %v2878 = vpack.c.b16 %v2318, %v2314
        %v2879 = vpack.c.b16 %v2319, %v2315
        %v2880 = vpack.c.b16 %v2320, %v2316
        %v2881 = vpack.c.b16 %v2325, %v2321
        %v2882 = vpack.c.b16 %v2326, %v2322
        %v2883 = vpack.c.b16 %v2327, %v2323
        %v2884 = vpack.c.b16 %v2328, %v2324
        %v2885 = vpack.c.b16 %v2333, %v2329
        %v2886 = vpack.c.b16 %v2334, %v2330
        %v2887 = vpack.c.b16 %v2335, %v2331
        %v2888 = vpack.c.b16 %v2336, %v2332
        %v2889 = vpack.c.b16 %v2341, %v2337
        %v2890 = vpack.c.b16 %v2342, %v2338
        %v2891 = vpack.c.b16 %v2343, %v2339
        %v2892 = vpack.c.b16 %v2344, %v2340
        %v2893 = vpack.c.b16 %v2349, %v2345
        %v2894 = vpack.c.b16 %v2350, %v2346
        %v2895 = vpack.c.b16 %v2351, %v2347
        %v2896 = vpack.c.b16 %v2352, %v2348
        %v2897 = vpack.c.b16 %v2357, %v2353
        %v2898 = vpack.c.b16 %v2358, %v2354
        %v2899 = vpack.c.b16 %v2359, %v2355
        %v2900 = vpack.c.b16 %v2360, %v2356
        %v2901 = vpack.c.b16 %v2365, %v2361
        %v2902 = vpack.c.b16 %v2366, %v2362
        %v2903 = vpack.c.b16 %v2367, %v2363
        %v2904 = vpack.c.b16 %v2368, %v2364
        %v2905 = vpack.c.b16 %v2373, %v2369
        %v2906 = vpack.c.b16 %v2374, %v2370
        %v2907 = vpack.c.b16 %v2375, %v2371
        %v2908 = vpack.c.b16 %v2376, %v2372
        %v2909 = vpack.c.b16 %v2381, %v2377
        %v2910 = vpack.c.b16 %v2382, %v2378
        %v2911 = vpack.c.b16 %v2383, %v2379
        %v2912 = vpack.c.b16 %v2384, %v2380
        %v2913 = vpack.c.b16 %v2389, %v2385
        %v2914 = vpack.c.b16 %v2390, %v2386
        %v2915 = vpack.c.b16 %v2391, %v2387
        %v2916 = vpack.c.b16 %v2392, %v2388
        %v2917 = vpack.c.b16 %v2397, %v2393
        %v2918 = vpack.c.b16 %v2398, %v2394
        %v2919 = vpack.c.b16 %v2399, %v2395
        %v2920 = vpack.c.b16 %v2400, %v2396
        %v2921 = vpack.c.b16 %v2405, %v2401
        %v2922 = vpack.c.b16 %v2406, %v2402
        %v2923 = vpack.c.b16 %v2407, %v2403
        %v2924 = vpack.c.b16 %v2408, %v2404
        %v2925 = vpack.c.b16 %v2413, %v2409
        %v2926 = vpack.c.b16 %v2414, %v2410
        %v2927 = vpack.c.b16 %v2415, %v2411
        %v2928 = vpack.c.b16 %v2416, %v2412
        %3441 = vmatprep.subr.bf16.mxu0 %v2418
        %3442 = vmatpush1.bf16.msra.mxu0 %v2417
        %3443 = vmatprep.subr.bf16.mxu0 %v2422
        %3444 = vmatpush1.bf16.msra.mxu0 %v2421
        %3445 = vmatprep.subr.bf16.mxu0 %v2426
        %3446 = vmatpush1.bf16.msra.mxu0 %v2425
        %3447 = vmatprep.subr.bf16.mxu0 %v2430
        %3448 = vmatpush1.bf16.msra.mxu0 %v2429
        %3449 = vmatprep.subr.bf16.mxu0 %v2434
        %3450 = vmatpush1.bf16.msra.mxu0 %v2433
        %3451 = vmatprep.subr.bf16.mxu0 %v2438
        %3452 = vmatpush1.bf16.msra.mxu0 %v2437
        %3453 = vmatprep.subr.bf16.mxu0 %v2442
        %3454 = vmatpush1.bf16.msra.mxu0 %v2441
        %3455 = vmatprep.subr.bf16.mxu0 %v2446
        %3456 = vmatpush1.bf16.msra.mxu0 %v2445
        %3457 = vmatprep.subr.bf16.mxu0 %v2450
        %3458 = vmatpush1.bf16.msra.mxu0 %v2449
        %3459 = vmatprep.subr.bf16.mxu0 %v2454
        %3460 = vmatpush1.bf16.msra.mxu0 %v2453
        %3461 = vmatprep.subr.bf16.mxu0 %v2458
        %3462 = vmatpush1.bf16.msra.mxu0 %v2457
        %3463 = vmatprep.subr.bf16.mxu0 %v2462
        %3464 = vmatpush1.bf16.msra.mxu0 %v2461
        %3465 = vmatprep.subr.bf16.mxu0 %v2466
        %3466 = vmatpush1.bf16.msra.mxu0 %v2465
        %3467 = vmatprep.subr.bf16.mxu0 %v2470
        %3468 = vmatpush1.bf16.msra.mxu0 %v2469
        %3469 = vmatprep.subr.bf16.mxu0 %v2474
        %3470 = vmatpush1.bf16.msra.mxu0 %v2473
        %3471 = vmatprep.subr.bf16.mxu0 %v2478
        %3472 = vmatpush1.bf16.msra.mxu0 %v2477
        %3473 = vmatprep.mubr.bf16.mxu0 %v332
        %3474 = vmatmul.mubr.bf16.gmra.mrb[0].mxu0 %v331
        %v3475 = vpop.f32.mrb[0].mxu0
        %v3476 = vadd.f32 %v864, %v3475
        %v3477 = vpop.f32.mrb[0].mxu0
        %v3478 = vadd.f32 %v868, %v3477
        %v3479 = vpop.f32.mrb[0].mxu0
        %v3480 = vpop.f32.mrb[0].mxu0
        %3481 = vdwg.mxu0
        %3482 = vmatprep.subr.bf16.mxu0 %v2482
        %3483 = vmatpush1.bf16.msra.mxu0 %v2481
        %3484 = vmatprep.subr.bf16.mxu0 %v2486
        %3485 = vmatpush1.bf16.msra.mxu0 %v2485
        %3486 = vmatprep.subr.bf16.mxu0 %v2490
        %3487 = vmatpush1.bf16.msra.mxu0 %v2489
        %3488 = vmatprep.subr.bf16.mxu0 %v2494
        %3489 = vmatpush1.bf16.msra.mxu0 %v2493
        %3490 = vmatprep.subr.bf16.mxu0 %v2498
        %3491 = vmatpush1.bf16.msra.mxu0 %v2497
        %3492 = vmatprep.subr.bf16.mxu0 %v2502
        %3493 = vmatpush1.bf16.msra.mxu0 %v2501
        %3494 = vmatprep.subr.bf16.mxu0 %v2506
        %3495 = vmatpush1.bf16.msra.mxu0 %v2505
        %3496 = vmatprep.subr.bf16.mxu0 %v2510
        %3497 = vmatpush1.bf16.msra.mxu0 %v2509
        %3498 = vmatprep.subr.bf16.mxu0 %v2514
        %3499 = vmatpush1.bf16.msra.mxu0 %v2513
        %3500 = vmatprep.subr.bf16.mxu0 %v2518
        %3501 = vmatpush1.bf16.msra.mxu0 %v2517
        %3502 = vmatprep.subr.bf16.mxu0 %v2522
        %3503 = vmatpush1.bf16.msra.mxu0 %v2521
        %3504 = vmatprep.subr.bf16.mxu0 %v2526
        %3505 = vmatpush1.bf16.msra.mxu0 %v2525
        %3506 = vmatprep.subr.bf16.mxu0 %v2530
        %3507 = vmatpush1.bf16.msra.mxu0 %v2529
        %3508 = vmatprep.subr.bf16.mxu0 %v2534
        %3509 = vmatpush1.bf16.msra.mxu0 %v2533
        %3510 = vmatprep.subr.bf16.mxu0 %v2538
        %3511 = vmatpush1.bf16.msra.mxu0 %v2537
        %3512 = vmatprep.subr.bf16.mxu0 %v2542
        %3513 = vmatpush1.bf16.msra.mxu0 %v2541
        %3514 = vmatprep.mubr.bf16.mxu0 %v334
        %3515 = vmatmul.mubr.bf16.gmra.mrb[0].mxu0 %v333
        %v3516 = vpop.f32.mrb[0].mxu0
        %v3517 = vadd.f32 %v3476, %v3516
        %v3518 = vpop.f32.mrb[0].mxu0
        %v3519 = vadd.f32 %v3478, %v3518
        %v3520 = vpop.f32.mrb[0].mxu0
        %v3521 = vpop.f32.mrb[0].mxu0
        %3522 = vdwg.mxu0
        %3523 = vmatprep.subr.bf16.mxu0 %v2546
        %3524 = vmatpush1.bf16.msra.mxu0 %v2545
        %3525 = vmatprep.subr.bf16.mxu0 %v2550
        %3526 = vmatpush1.bf16.msra.mxu0 %v2549
        %3527 = vmatprep.subr.bf16.mxu0 %v2554
        %3528 = vmatpush1.bf16.msra.mxu0 %v2553
        %3529 = vmatprep.subr.bf16.mxu0 %v2558
        %3530 = vmatpush1.bf16.msra.mxu0 %v2557
        %3531 = vmatprep.subr.bf16.mxu0 %v2562
        %3532 = vmatpush1.bf16.msra.mxu0 %v2561
        %3533 = vmatprep.subr.bf16.mxu0 %v2566
        %3534 = vmatpush1.bf16.msra.mxu0 %v2565
        %3535 = vmatprep.subr.bf16.mxu0 %v2570
        %3536 = vmatpush1.bf16.msra.mxu0 %v2569
        %3537 = vmatprep.subr.bf16.mxu0 %v2574
        %3538 = vmatpush1.bf16.msra.mxu0 %v2573
        %3539 = vmatprep.subr.bf16.mxu0 %v2578
        %3540 = vmatpush1.bf16.msra.mxu0 %v2577
        %3541 = vmatprep.subr.bf16.mxu0 %v2582
        %3542 = vmatpush1.bf16.msra.mxu0 %v2581
        %3543 = vmatprep.subr.bf16.mxu0 %v2586
        %3544 = vmatpush1.bf16.msra.mxu0 %v2585
        %3545 = vmatprep.subr.bf16.mxu0 %v2590
        %3546 = vmatpush1.bf16.msra.mxu0 %v2589
        %3547 = vmatprep.subr.bf16.mxu0 %v2594
        %3548 = vmatpush1.bf16.msra.mxu0 %v2593
        %3549 = vmatprep.subr.bf16.mxu0 %v2598
        %3550 = vmatpush1.bf16.msra.mxu0 %v2597
        %3551 = vmatprep.subr.bf16.mxu0 %v2602
        %3552 = vmatpush1.bf16.msra.mxu0 %v2601
        %3553 = vmatprep.subr.bf16.mxu0 %v2606
        %3554 = vmatpush1.bf16.msra.mxu0 %v2605
        %3555 = vmatprep.mubr.bf16.mxu0 %v336
        %3556 = vmatmul.mubr.bf16.gmra.mrb[0].mxu0 %v335
        %v3557 = vpop.f32.mrb[0].mxu0
        %v3558 = vadd.f32 %v3517, %v3557
        %v3559 = vpop.f32.mrb[0].mxu0
        %v3560 = vadd.f32 %v3519, %v3559
        %v3561 = vpop.f32.mrb[0].mxu0
        %v3562 = vpop.f32.mrb[0].mxu0
        %3563 = vdwg.mxu0
        %3564 = vmatprep.subr.bf16.mxu0 %v2610
        %3565 = vmatpush1.bf16.msra.mxu0 %v2609
        %3566 = vmatprep.subr.bf16.mxu0 %v2614
        %3567 = vmatpush1.bf16.msra.mxu0 %v2613
        %3568 = vmatprep.subr.bf16.mxu0 %v2618
        %3569 = vmatpush1.bf16.msra.mxu0 %v2617
        %3570 = vmatprep.subr.bf16.mxu0 %v2622
        %3571 = vmatpush1.bf16.msra.mxu0 %v2621
        %3572 = vmatprep.subr.bf16.mxu0 %v2626
        %3573 = vmatpush1.bf16.msra.mxu0 %v2625
        %3574 = vmatprep.subr.bf16.mxu0 %v2630
        %3575 = vmatpush1.bf16.msra.mxu0 %v2629
        %3576 = vmatprep.subr.bf16.mxu0 %v2634
        %3577 = vmatpush1.bf16.msra.mxu0 %v2633
        %3578 = vmatprep.subr.bf16.mxu0 %v2638
        %3579 = vmatpush1.bf16.msra.mxu0 %v2637
        %3580 = vmatprep.subr.bf16.mxu0 %v2642
        %3581 = vmatpush1.bf16.msra.mxu0 %v2641
        %3582 = vmatprep.subr.bf16.mxu0 %v2646
        %3583 = vmatpush1.bf16.msra.mxu0 %v2645
        %3584 = vmatprep.subr.bf16.mxu0 %v2650
        %3585 = vmatpush1.bf16.msra.mxu0 %v2649
        %3586 = vmatprep.subr.bf16.mxu0 %v2654
        %3587 = vmatpush1.bf16.msra.mxu0 %v2653
        %3588 = vmatprep.subr.bf16.mxu0 %v2658
        %3589 = vmatpush1.bf16.msra.mxu0 %v2657
        %3590 = vmatprep.subr.bf16.mxu0 %v2662
        %3591 = vmatpush1.bf16.msra.mxu0 %v2661
        %3592 = vmatprep.subr.bf16.mxu0 %v2666
        %3593 = vmatpush1.bf16.msra.mxu0 %v2665
        %3594 = vmatprep.subr.bf16.mxu0 %v2670
        %3595 = vmatpush1.bf16.msra.mxu0 %v2669
        %3596 = vmatprep.mubr.bf16.mxu0 %v338
        %3597 = vmatmul.mubr.bf16.gmra.mrb[0].mxu0 %v337
        %v3598 = vpop.f32.mrb[0].mxu0
        %v3599 = vadd.f32 %v3558, %v3598
        %v3600 = vpop.f32.mrb[0].mxu0
        %v3601 = vadd.f32 %v3560, %v3600
        %v3602 = vpop.f32.mrb[0].mxu0
        %v3603 = vpop.f32.mrb[0].mxu0
        %3604 = vdwg.mxu0
        %3605 = vmatprep.subr.bf16.mxu0 %v2674
        %3606 = vmatpush1.bf16.msra.mxu0 %v2673
        %3607 = vmatprep.subr.bf16.mxu0 %v2678
        %3608 = vmatpush1.bf16.msra.mxu0 %v2677
        %3609 = vmatprep.subr.bf16.mxu0 %v2682
        %3610 = vmatpush1.bf16.msra.mxu0 %v2681
        %3611 = vmatprep.subr.bf16.mxu0 %v2686
        %3612 = vmatpush1.bf16.msra.mxu0 %v2685
        %3613 = vmatprep.subr.bf16.mxu0 %v2690
        %3614 = vmatpush1.bf16.msra.mxu0 %v2689
        %3615 = vmatprep.subr.bf16.mxu0 %v2694
        %3616 = vmatpush1.bf16.msra.mxu0 %v2693
        %3617 = vmatprep.subr.bf16.mxu0 %v2698
        %3618 = vmatpush1.bf16.msra.mxu0 %v2697
        %3619 = vmatprep.subr.bf16.mxu0 %v2702
        %3620 = vmatpush1.bf16.msra.mxu0 %v2701
        %3621 = vmatprep.subr.bf16.mxu0 %v2706
        %3622 = vmatpush1.bf16.msra.mxu0 %v2705
        %3623 = vmatprep.subr.bf16.mxu0 %v2710
        %3624 = vmatpush1.bf16.msra.mxu0 %v2709
        %3625 = vmatprep.subr.bf16.mxu0 %v2714
        %3626 = vmatpush1.bf16.msra.mxu0 %v2713
        %3627 = vmatprep.subr.bf16.mxu0 %v2718
        %3628 = vmatpush1.bf16.msra.mxu0 %v2717
        %3629 = vmatprep.subr.bf16.mxu0 %v2722
        %3630 = vmatpush1.bf16.msra.mxu0 %v2721
        %3631 = vmatprep.subr.bf16.mxu0 %v2726
        %3632 = vmatpush1.bf16.msra.mxu0 %v2725
        %3633 = vmatprep.subr.bf16.mxu0 %v2730
        %3634 = vmatpush1.bf16.msra.mxu0 %v2729
        %3635 = vmatprep.subr.bf16.mxu0 %v2734
        %3636 = vmatpush1.bf16.msra.mxu0 %v2733
        %3637 = vmatprep.mubr.bf16.mxu0 %v340
        %3638 = vmatmul.mubr.bf16.gmra.mrb[0].mxu0 %v339
        %v3639 = vpop.f32.mrb[0].mxu0
        %v3640 = vadd.f32 %v3599, %v3639
        %v3641 = vpop.f32.mrb[0].mxu0
        %v3642 = vadd.f32 %v3601, %v3641
        %v3643 = vpop.f32.mrb[0].mxu0
        %v3644 = vpop.f32.mrb[0].mxu0
        %3645 = vdwg.mxu0
        %3646 = vmatprep.subr.bf16.mxu0 %v2738
        %3647 = vmatpush1.bf16.msra.mxu0 %v2737
        %3648 = vmatprep.subr.bf16.mxu0 %v2742
        %3649 = vmatpush1.bf16.msra.mxu0 %v2741
        %3650 = vmatprep.subr.bf16.mxu0 %v2746
        %3651 = vmatpush1.bf16.msra.mxu0 %v2745
        %3652 = vmatprep.subr.bf16.mxu0 %v2750
        %3653 = vmatpush1.bf16.msra.mxu0 %v2749
        %3654 = vmatprep.subr.bf16.mxu0 %v2754
        %3655 = vmatpush1.bf16.msra.mxu0 %v2753
        %3656 = vmatprep.subr.bf16.mxu0 %v2758
        %3657 = vmatpush1.bf16.msra.mxu0 %v2757
        %3658 = vmatprep.subr.bf16.mxu0 %v2762
        %3659 = vmatpush1.bf16.msra.mxu0 %v2761
        %3660 = vmatprep.subr.bf16.mxu0 %v2766
        %3661 = vmatpush1.bf16.msra.mxu0 %v2765
        %3662 = vmatprep.subr.bf16.mxu0 %v2770
        %3663 = vmatpush1.bf16.msra.mxu0 %v2769
        %3664 = vmatprep.subr.bf16.mxu0 %v2774
        %3665 = vmatpush1.bf16.msra.mxu0 %v2773
        %3666 = vmatprep.subr.bf16.mxu0 %v2778
        %3667 = vmatpush1.bf16.msra.mxu0 %v2777
        %3668 = vmatprep.subr.bf16.mxu0 %v2782
        %3669 = vmatpush1.bf16.msra.mxu0 %v2781
        %3670 = vmatprep.subr.bf16.mxu0 %v2786
        %3671 = vmatpush1.bf16.msra.mxu0 %v2785
        %3672 = vmatprep.subr.bf16.mxu0 %v2790
        %3673 = vmatpush1.bf16.msra.mxu0 %v2789
        %3674 = vmatprep.subr.bf16.mxu0 %v2794
        %3675 = vmatpush1.bf16.msra.mxu0 %v2793
        %3676 = vmatprep.subr.bf16.mxu0 %v2798
        %3677 = vmatpush1.bf16.msra.mxu0 %v2797
        %3678 = vmatprep.mubr.bf16.mxu0 %v342
        %3679 = vmatmul.mubr.bf16.gmra.mrb[0].mxu0 %v341
        %v3680 = vpop.f32.mrb[0].mxu0
        %v3681 = vadd.f32 %v3640, %v3680
        %v3682 = vpop.f32.mrb[0].mxu0
        %v3683 = vadd.f32 %v3642, %v3682
        %v3684 = vpop.f32.mrb[0].mxu0
        %v3685 = vpop.f32.mrb[0].mxu0
        %3686 = vdwg.mxu0
        %3687 = vmatprep.subr.bf16.mxu0 %v2802
        %3688 = vmatpush1.bf16.msra.mxu0 %v2801
        %3689 = vmatprep.subr.bf16.mxu0 %v2806
        %3690 = vmatpush1.bf16.msra.mxu0 %v2805
        %3691 = vmatprep.subr.bf16.mxu0 %v2810
        %3692 = vmatpush1.bf16.msra.mxu0 %v2809
        %3693 = vmatprep.subr.bf16.mxu0 %v2814
        %3694 = vmatpush1.bf16.msra.mxu0 %v2813
        %3695 = vmatprep.subr.bf16.mxu0 %v2818
        %3696 = vmatpush1.bf16.msra.mxu0 %v2817
        %3697 = vmatprep.subr.bf16.mxu0 %v2822
        %3698 = vmatpush1.bf16.msra.mxu0 %v2821
        %3699 = vmatprep.subr.bf16.mxu0 %v2826
        %3700 = vmatpush1.bf16.msra.mxu0 %v2825
        %3701 = vmatprep.subr.bf16.mxu0 %v2830
        %3702 = vmatpush1.bf16.msra.mxu0 %v2829
        %3703 = vmatprep.subr.bf16.mxu0 %v2834
        %3704 = vmatpush1.bf16.msra.mxu0 %v2833
        %3705 = vmatprep.subr.bf16.mxu0 %v2838
        %3706 = vmatpush1.bf16.msra.mxu0 %v2837
        %3707 = vmatprep.subr.bf16.mxu0 %v2842
        %3708 = vmatpush1.bf16.msra.mxu0 %v2841
        %3709 = vmatprep.subr.bf16.mxu0 %v2846
        %3710 = vmatpush1.bf16.msra.mxu0 %v2845
        %3711 = vmatprep.subr.bf16.mxu0 %v2850
        %3712 = vmatpush1.bf16.msra.mxu0 %v2849
        %3713 = vmatprep.subr.bf16.mxu0 %v2854
        %3714 = vmatpush1.bf16.msra.mxu0 %v2853
        %3715 = vmatprep.subr.bf16.mxu0 %v2858
        %3716 = vmatpush1.bf16.msra.mxu0 %v2857
        %3717 = vmatprep.subr.bf16.mxu0 %v2862
        %3718 = vmatpush1.bf16.msra.mxu0 %v2861
        %3719 = vmatprep.mubr.bf16.mxu0 %v344
        %3720 = vmatmul.mubr.bf16.gmra.mrb[0].mxu0 %v343
        %v3721 = vpop.f32.mrb[0].mxu0
        %v3722 = vadd.f32 %v3681, %v3721
        %v3723 = vpop.f32.mrb[0].mxu0
        %v3724 = vadd.f32 %v3683, %v3723
        %v3725 = vpop.f32.mrb[0].mxu0
        %v3726 = vpop.f32.mrb[0].mxu0
        %3727 = vdwg.mxu0
        %3728 = vmatprep.subr.bf16.mxu0 %v2866
        %3729 = vmatpush1.bf16.msra.mxu0 %v2865
        %3730 = vmatprep.subr.bf16.mxu0 %v2870
        %3731 = vmatpush1.bf16.msra.mxu0 %v2869
        %3732 = vmatprep.subr.bf16.mxu0 %v2874
        %3733 = vmatpush1.bf16.msra.mxu0 %v2873
        %3734 = vmatprep.subr.bf16.mxu0 %v2878
        %3735 = vmatpush1.bf16.msra.mxu0 %v2877
        %3736 = vmatprep.subr.bf16.mxu0 %v2882
        %3737 = vmatpush1.bf16.msra.mxu0 %v2881
        %3738 = vmatprep.subr.bf16.mxu0 %v2886
        %3739 = vmatpush1.bf16.msra.mxu0 %v2885
        %3740 = vmatprep.subr.bf16.mxu0 %v2890
        %3741 = vmatpush1.bf16.msra.mxu0 %v2889
        %3742 = vmatprep.subr.bf16.mxu0 %v2894
        %3743 = vmatpush1.bf16.msra.mxu0 %v2893
        %3744 = vmatprep.subr.bf16.mxu0 %v2898
        %3745 = vmatpush1.bf16.msra.mxu0 %v2897
        %3746 = vmatprep.subr.bf16.mxu0 %v2902
        %3747 = vmatpush1.bf16.msra.mxu0 %v2901
        %3748 = vmatprep.subr.bf16.mxu0 %v2906
        %3749 = vmatpush1.bf16.msra.mxu0 %v2905
        %3750 = vmatprep.subr.bf16.mxu0 %v2910
        %3751 = vmatpush1.bf16.msra.mxu0 %v2909
        %3752 = vmatprep.subr.bf16.mxu0 %v2914
        %3753 = vmatpush1.bf16.msra.mxu0 %v2913
        %3754 = vmatprep.subr.bf16.mxu0 %v2918
        %3755 = vmatpush1.bf16.msra.mxu0 %v2917
        %3756 = vmatprep.subr.bf16.mxu0 %v2922
        %3757 = vmatpush1.bf16.msra.mxu0 %v2921
        %3758 = vmatprep.subr.bf16.mxu0 %v2926
        %3759 = vmatpush1.bf16.msra.mxu0 %v2925
        %3760 = vmatprep.mubr.bf16.mxu0 %v346
        %3761 = vmatmul.mubr.bf16.gmra.mrb[0].mxu0 %v345
        %v3762 = vpop.f32.mrb[0].mxu0
        %v3763 = vadd.f32 %v3722, %v3762
        %v3764 = vpop.f32.mrb[0].mxu0
        %v3765 = vadd.f32 %v3724, %v3764
        %v3766 = vpop.f32.mrb[0].mxu0
        %v3767 = vpop.f32.mrb[0].mxu0
        %3768 = vdwg.mxu0
        %3769 = vmatprep.subr.bf16.mxu0 %v2420
        %3770 = vmatpush1.bf16.msra.mxu0 %v2419
        %3771 = vmatprep.subr.bf16.mxu0 %v2424
        %3772 = vmatpush1.bf16.msra.mxu0 %v2423
        %3773 = vmatprep.subr.bf16.mxu0 %v2428
        %3774 = vmatpush1.bf16.msra.mxu0 %v2427
        %3775 = vmatprep.subr.bf16.mxu0 %v2432
        %3776 = vmatpush1.bf16.msra.mxu0 %v2431
        %3777 = vmatprep.subr.bf16.mxu0 %v2436
        %3778 = vmatpush1.bf16.msra.mxu0 %v2435
        %3779 = vmatprep.subr.bf16.mxu0 %v2440
        %3780 = vmatpush1.bf16.msra.mxu0 %v2439
        %3781 = vmatprep.subr.bf16.mxu0 %v2444
        %3782 = vmatpush1.bf16.msra.mxu0 %v2443
        %3783 = vmatprep.subr.bf16.mxu0 %v2448
        %3784 = vmatpush1.bf16.msra.mxu0 %v2447
        %3785 = vmatprep.subr.bf16.mxu0 %v2452
        %3786 = vmatpush1.bf16.msra.mxu0 %v2451
        %3787 = vmatprep.subr.bf16.mxu0 %v2456
        %3788 = vmatpush1.bf16.msra.mxu0 %v2455
        %3789 = vmatprep.subr.bf16.mxu0 %v2460
        %3790 = vmatpush1.bf16.msra.mxu0 %v2459
        %3791 = vmatprep.subr.bf16.mxu0 %v2464
        %3792 = vmatpush1.bf16.msra.mxu0 %v2463
        %3793 = vmatprep.subr.bf16.mxu0 %v2468
        %3794 = vmatpush1.bf16.msra.mxu0 %v2467
        %3795 = vmatprep.subr.bf16.mxu0 %v2472
        %3796 = vmatpush1.bf16.msra.mxu0 %v2471
        %3797 = vmatprep.subr.bf16.mxu0 %v2476
        %3798 = vmatpush1.bf16.msra.mxu0 %v2475
        %3799 = vmatprep.subr.bf16.mxu0 %v2480
        %3800 = vmatpush1.bf16.msra.mxu0 %v2479
        %3801 = vmatprep.mubr.bf16.mxu0 %v332
        %3802 = vmatmul.mubr.bf16.gmra.mrb[0].mxu0 %v331
        %v3803 = vpop.f32.mrb[0].mxu0
        %v3804 = vadd.f32 %v872, %v3803
        %v3805 = vpop.f32.mrb[0].mxu0
        %v3806 = vadd.f32 %v876, %v3805
        %v3807 = vpop.f32.mrb[0].mxu0
        %v3808 = vpop.f32.mrb[0].mxu0
        %3809 = vdwg.mxu0
        %3810 = vmatprep.subr.bf16.mxu0 %v2484
        %3811 = vmatpush1.bf16.msra.mxu0 %v2483
        %3812 = vmatprep.subr.bf16.mxu0 %v2488
        %3813 = vmatpush1.bf16.msra.mxu0 %v2487
        %3814 = vmatprep.subr.bf16.mxu0 %v2492
        %3815 = vmatpush1.bf16.msra.mxu0 %v2491
        %3816 = vmatprep.subr.bf16.mxu0 %v2496
        %3817 = vmatpush1.bf16.msra.mxu0 %v2495
        %3818 = vmatprep.subr.bf16.mxu0 %v2500
        %3819 = vmatpush1.bf16.msra.mxu0 %v2499
        %3820 = vmatprep.subr.bf16.mxu0 %v2504
        %3821 = vmatpush1.bf16.msra.mxu0 %v2503
        %3822 = vmatprep.subr.bf16.mxu0 %v2508
        %3823 = vmatpush1.bf16.msra.mxu0 %v2507
        %3824 = vmatprep.subr.bf16.mxu0 %v2512
        %3825 = vmatpush1.bf16.msra.mxu0 %v2511
        %3826 = vmatprep.subr.bf16.mxu0 %v2516
        %3827 = vmatpush1.bf16.msra.mxu0 %v2515
        %3828 = vmatprep.subr.bf16.mxu0 %v2520
        %3829 = vmatpush1.bf16.msra.mxu0 %v2519
        %3830 = vmatprep.subr.bf16.mxu0 %v2524
        %3831 = vmatpush1.bf16.msra.mxu0 %v2523
        %3832 = vmatprep.subr.bf16.mxu0 %v2528
        %3833 = vmatpush1.bf16.msra.mxu0 %v2527
        %3834 = vmatprep.subr.bf16.mxu0 %v2532
        %3835 = vmatpush1.bf16.msra.mxu0 %v2531
        %3836 = vmatprep.subr.bf16.mxu0 %v2536
        %3837 = vmatpush1.bf16.msra.mxu0 %v2535
        %3838 = vmatprep.subr.bf16.mxu0 %v2540
        %3839 = vmatpush1.bf16.msra.mxu0 %v2539
        %3840 = vmatprep.subr.bf16.mxu0 %v2544
        %3841 = vmatpush1.bf16.msra.mxu0 %v2543
        %3842 = vmatprep.mubr.bf16.mxu0 %v334
        %3843 = vmatmul.mubr.bf16.gmra.mrb[0].mxu0 %v333
        %v3844 = vpop.f32.mrb[0].mxu0
        %v3845 = vadd.f32 %v3804, %v3844
        %v3846 = vpop.f32.mrb[0].mxu0
        %v3847 = vadd.f32 %v3806, %v3846
        %v3848 = vpop.f32.mrb[0].mxu0
        %v3849 = vpop.f32.mrb[0].mxu0
        %3850 = vdwg.mxu0
        %3851 = vmatprep.subr.bf16.mxu0 %v2548
        %3852 = vmatpush1.bf16.msra.mxu0 %v2547
        %3853 = vmatprep.subr.bf16.mxu0 %v2552
        %3854 = vmatpush1.bf16.msra.mxu0 %v2551
        %3855 = vmatprep.subr.bf16.mxu0 %v2556
        %3856 = vmatpush1.bf16.msra.mxu0 %v2555
        %3857 = vmatprep.subr.bf16.mxu0 %v2560
        %3858 = vmatpush1.bf16.msra.mxu0 %v2559
        %3859 = vmatprep.subr.bf16.mxu0 %v2564
        %3860 = vmatpush1.bf16.msra.mxu0 %v2563
        %3861 = vmatprep.subr.bf16.mxu0 %v2568
        %3862 = vmatpush1.bf16.msra.mxu0 %v2567
        %3863 = vmatprep.subr.bf16.mxu0 %v2572
        %3864 = vmatpush1.bf16.msra.mxu0 %v2571
        %3865 = vmatprep.subr.bf16.mxu0 %v2576
        %3866 = vmatpush1.bf16.msra.mxu0 %v2575
        %3867 = vmatprep.subr.bf16.mxu0 %v2580
        %3868 = vmatpush1.bf16.msra.mxu0 %v2579
        %3869 = vmatprep.subr.bf16.mxu0 %v2584
        %3870 = vmatpush1.bf16.msra.mxu0 %v2583
        %3871 = vmatprep.subr.bf16.mxu0 %v2588
        %3872 = vmatpush1.bf16.msra.mxu0 %v2587
        %3873 = vmatprep.subr.bf16.mxu0 %v2592
        %3874 = vmatpush1.bf16.msra.mxu0 %v2591
        %3875 = vmatprep.subr.bf16.mxu0 %v2596
        %3876 = vmatpush1.bf16.msra.mxu0 %v2595
        %3877 = vmatprep.subr.bf16.mxu0 %v2600
        %3878 = vmatpush1.bf16.msra.mxu0 %v2599
        %3879 = vmatprep.subr.bf16.mxu0 %v2604
        %3880 = vmatpush1.bf16.msra.mxu0 %v2603
        %3881 = vmatprep.subr.bf16.mxu0 %v2608
        %3882 = vmatpush1.bf16.msra.mxu0 %v2607
        %3883 = vmatprep.mubr.bf16.mxu0 %v336
        %3884 = vmatmul.mubr.bf16.gmra.mrb[0].mxu0 %v335
        %v3885 = vpop.f32.mrb[0].mxu0
        %v3886 = vadd.f32 %v3845, %v3885
        %v3887 = vpop.f32.mrb[0].mxu0
        %v3888 = vadd.f32 %v3847, %v3887
        %v3889 = vpop.f32.mrb[0].mxu0
        %v3890 = vpop.f32.mrb[0].mxu0
        %3891 = vdwg.mxu0
        %3892 = vmatprep.subr.bf16.mxu0 %v2612
        %3893 = vmatpush1.bf16.msra.mxu0 %v2611
        %3894 = vmatprep.subr.bf16.mxu0 %v2616
        %3895 = vmatpush1.bf16.msra.mxu0 %v2615
        %3896 = vmatprep.subr.bf16.mxu0 %v2620
        %3897 = vmatpush1.bf16.msra.mxu0 %v2619
        %3898 = vmatprep.subr.bf16.mxu0 %v2624
        %3899 = vmatpush1.bf16.msra.mxu0 %v2623
        %3900 = vmatprep.subr.bf16.mxu0 %v2628
        %3901 = vmatpush1.bf16.msra.mxu0 %v2627
        %3902 = vmatprep.subr.bf16.mxu0 %v2632
        %3903 = vmatpush1.bf16.msra.mxu0 %v2631
        %3904 = vmatprep.subr.bf16.mxu0 %v2636
        %3905 = vmatpush1.bf16.msra.mxu0 %v2635
        %3906 = vmatprep.subr.bf16.mxu0 %v2640
        %3907 = vmatpush1.bf16.msra.mxu0 %v2639
        %3908 = vmatprep.subr.bf16.mxu0 %v2644
        %3909 = vmatpush1.bf16.msra.mxu0 %v2643
        %3910 = vmatprep.subr.bf16.mxu0 %v2648
        %3911 = vmatpush1.bf16.msra.mxu0 %v2647
        %3912 = vmatprep.subr.bf16.mxu0 %v2652
        %3913 = vmatpush1.bf16.msra.mxu0 %v2651
        %3914 = vmatprep.subr.bf16.mxu0 %v2656
        %3915 = vmatpush1.bf16.msra.mxu0 %v2655
        %3916 = vmatprep.subr.bf16.mxu0 %v2660
        %3917 = vmatpush1.bf16.msra.mxu0 %v2659
        %3918 = vmatprep.subr.bf16.mxu0 %v2664
        %3919 = vmatpush1.bf16.msra.mxu0 %v2663
        %3920 = vmatprep.subr.bf16.mxu0 %v2668
        %3921 = vmatpush1.bf16.msra.mxu0 %v2667
        %3922 = vmatprep.subr.bf16.mxu0 %v2672
        %3923 = vmatpush1.bf16.msra.mxu0 %v2671
        %3924 = vmatprep.mubr.bf16.mxu0 %v338
        %3925 = vmatmul.mubr.bf16.gmra.mrb[0].mxu0 %v337
        %v3926 = vpop.f32.mrb[0].mxu0
        %v3927 = vadd.f32 %v3886, %v3926
        %v3928 = vpop.f32.mrb[0].mxu0
        %v3929 = vadd.f32 %v3888, %v3928
        %v3930 = vpop.f32.mrb[0].mxu0
        %v3931 = vpop.f32.mrb[0].mxu0
        %3932 = vdwg.mxu0
        %3933 = vmatprep.subr.bf16.mxu0 %v2676
        %3934 = vmatpush1.bf16.msra.mxu0 %v2675
        %3935 = vmatprep.subr.bf16.mxu0 %v2680
        %3936 = vmatpush1.bf16.msra.mxu0 %v2679
        %3937 = vmatprep.subr.bf16.mxu0 %v2684
        %3938 = vmatpush1.bf16.msra.mxu0 %v2683
        %3939 = vmatprep.subr.bf16.mxu0 %v2688
        %3940 = vmatpush1.bf16.msra.mxu0 %v2687
        %3941 = vmatprep.subr.bf16.mxu0 %v2692
        %3942 = vmatpush1.bf16.msra.mxu0 %v2691
        %3943 = vmatprep.subr.bf16.mxu0 %v2696
        %3944 = vmatpush1.bf16.msra.mxu0 %v2695
        %3945 = vmatprep.subr.bf16.mxu0 %v2700
        %3946 = vmatpush1.bf16.msra.mxu0 %v2699
        %3947 = vmatprep.subr.bf16.mxu0 %v2704
        %3948 = vmatpush1.bf16.msra.mxu0 %v2703
        %3949 = vmatprep.subr.bf16.mxu0 %v2708
        %3950 = vmatpush1.bf16.msra.mxu0 %v2707
        %3951 = vmatprep.subr.bf16.mxu0 %v2712
        %3952 = vmatpush1.bf16.msra.mxu0 %v2711
        %3953 = vmatprep.subr.bf16.mxu0 %v2716
        %3954 = vmatpush1.bf16.msra.mxu0 %v2715
        %3955 = vmatprep.subr.bf16.mxu0 %v2720
        %3956 = vmatpush1.bf16.msra.mxu0 %v2719
        %3957 = vmatprep.subr.bf16.mxu0 %v2724
        %3958 = vmatpush1.bf16.msra.mxu0 %v2723
        %3959 = vmatprep.subr.bf16.mxu0 %v2728
        %3960 = vmatpush1.bf16.msra.mxu0 %v2727
        %3961 = vmatprep.subr.bf16.mxu0 %v2732
        %3962 = vmatpush1.bf16.msra.mxu0 %v2731
        %3963 = vmatprep.subr.bf16.mxu0 %v2736
        %3964 = vmatpush1.bf16.msra.mxu0 %v2735
        %3965 = vmatprep.mubr.bf16.mxu0 %v340
        %3966 = vmatmul.mubr.bf16.gmra.mrb[0].mxu0 %v339
        %v3967 = vpop.f32.mrb[0].mxu0
        %v3968 = vadd.f32 %v3927, %v3967
        %v3969 = vpop.f32.mrb[0].mxu0
        %v3970 = vadd.f32 %v3929, %v3969
        %v3971 = vpop.f32.mrb[0].mxu0
        %v3972 = vpop.f32.mrb[0].mxu0
        %3973 = vdwg.mxu0
        %3974 = vmatprep.subr.bf16.mxu0 %v2740
        %3975 = vmatpush1.bf16.msra.mxu0 %v2739
        %3976 = vmatprep.subr.bf16.mxu0 %v2744
        %3977 = vmatpush1.bf16.msra.mxu0 %v2743
        %3978 = vmatprep.subr.bf16.mxu0 %v2748
        %3979 = vmatpush1.bf16.msra.mxu0 %v2747
        %3980 = vmatprep.subr.bf16.mxu0 %v2752
        %3981 = vmatpush1.bf16.msra.mxu0 %v2751
        %3982 = vmatprep.subr.bf16.mxu0 %v2756
        %3983 = vmatpush1.bf16.msra.mxu0 %v2755
        %3984 = vmatprep.subr.bf16.mxu0 %v2760
        %3985 = vmatpush1.bf16.msra.mxu0 %v2759
        %3986 = vmatprep.subr.bf16.mxu0 %v2764
        %3987 = vmatpush1.bf16.msra.mxu0 %v2763
        %3988 = vmatprep.subr.bf16.mxu0 %v2768
        %3989 = vmatpush1.bf16.msra.mxu0 %v2767
        %3990 = vmatprep.subr.bf16.mxu0 %v2772
        %3991 = vmatpush1.bf16.msra.mxu0 %v2771
        %3992 = vmatprep.subr.bf16.mxu0 %v2776
        %3993 = vmatpush1.bf16.msra.mxu0 %v2775
        %3994 = vmatprep.subr.bf16.mxu0 %v2780
        %3995 = vmatpush1.bf16.msra.mxu0 %v2779
        %3996 = vmatprep.subr.bf16.mxu0 %v2784
        %3997 = vmatpush1.bf16.msra.mxu0 %v2783
        %3998 = vmatprep.subr.bf16.mxu0 %v2788
        %3999 = vmatpush1.bf16.msra.mxu0 %v2787
        %4000 = vmatprep.subr.bf16.mxu0 %v2792
        %4001 = vmatpush1.bf16.msra.mxu0 %v2791
        %4002 = vmatprep.subr.bf16.mxu0 %v2796
        %4003 = vmatpush1.bf16.msra.mxu0 %v2795
        %4004 = vmatprep.subr.bf16.mxu0 %v2800
        %4005 = vmatpush1.bf16.msra.mxu0 %v2799
        %4006 = vmatprep.mubr.bf16.mxu0 %v342
        %4007 = vmatmul.mubr.bf16.gmra.mrb[0].mxu0 %v341
        %v4008 = vpop.f32.mrb[0].mxu0
        %v4009 = vadd.f32 %v3968, %v4008
        %v4010 = vpop.f32.mrb[0].mxu0
        %v4011 = vadd.f32 %v3970, %v4010
        %v4012 = vpop.f32.mrb[0].mxu0
        %v4013 = vpop.f32.mrb[0].mxu0
        %4014 = vdwg.mxu0
        %4015 = vmatprep.subr.bf16.mxu0 %v2804
        %4016 = vmatpush1.bf16.msra.mxu0 %v2803
        %4017 = vmatprep.subr.bf16.mxu0 %v2808
        %4018 = vmatpush1.bf16.msra.mxu0 %v2807
        %4019 = vmatprep.subr.bf16.mxu0 %v2812
        %4020 = vmatpush1.bf16.msra.mxu0 %v2811
        %4021 = vmatprep.subr.bf16.mxu0 %v2816
        %4022 = vmatpush1.bf16.msra.mxu0 %v2815
        %4023 = vmatprep.subr.bf16.mxu0 %v2820
        %4024 = vmatpush1.bf16.msra.mxu0 %v2819
        %4025 = vmatprep.subr.bf16.mxu0 %v2824
        %4026 = vmatpush1.bf16.msra.mxu0 %v2823
        %4027 = vmatprep.subr.bf16.mxu0 %v2828
        %4028 = vmatpush1.bf16.msra.mxu0 %v2827
        %4029 = vmatprep.subr.bf16.mxu0 %v2832
        %4030 = vmatpush1.bf16.msra.mxu0 %v2831
        %4031 = vmatprep.subr.bf16.mxu0 %v2836
        %4032 = vmatpush1.bf16.msra.mxu0 %v2835
        %4033 = vmatprep.subr.bf16.mxu0 %v2840
        %4034 = vmatpush1.bf16.msra.mxu0 %v2839
        %4035 = vmatprep.subr.bf16.mxu0 %v2844
        %4036 = vmatpush1.bf16.msra.mxu0 %v2843
        %4037 = vmatprep.subr.bf16.mxu0 %v2848
        %4038 = vmatpush1.bf16.msra.mxu0 %v2847
        %4039 = vmatprep.subr.bf16.mxu0 %v2852
        %4040 = vmatpush1.bf16.msra.mxu0 %v2851
        %4041 = vmatprep.subr.bf16.mxu0 %v2856
        %4042 = vmatpush1.bf16.msra.mxu0 %v2855
        %4043 = vmatprep.subr.bf16.mxu0 %v2860
        %4044 = vmatpush1.bf16.msra.mxu0 %v2859
        %4045 = vmatprep.subr.bf16.mxu0 %v2864
        %4046 = vmatpush1.bf16.msra.mxu0 %v2863
        %4047 = vmatprep.mubr.bf16.mxu0 %v344
        %4048 = vmatmul.mubr.bf16.gmra.mrb[0].mxu0 %v343
        %v4049 = vpop.f32.mrb[0].mxu0
        %v4050 = vadd.f32 %v4009, %v4049
        %v4051 = vpop.f32.mrb[0].mxu0
        %v4052 = vadd.f32 %v4011, %v4051
        %v4053 = vpop.f32.mrb[0].mxu0
        %v4054 = vpop.f32.mrb[0].mxu0
        %4055 = vdwg.mxu0
        %4056 = vmatprep.subr.bf16.mxu0 %v2868
        %4057 = vmatpush1.bf16.msra.mxu0 %v2867
        %4058 = vmatprep.subr.bf16.mxu0 %v2872
        %4059 = vmatpush1.bf16.msra.mxu0 %v2871
        %4060 = vmatprep.subr.bf16.mxu0 %v2876
        %4061 = vmatpush1.bf16.msra.mxu0 %v2875
        %4062 = vmatprep.subr.bf16.mxu0 %v2880
        %4063 = vmatpush1.bf16.msra.mxu0 %v2879
        %4064 = vmatprep.subr.bf16.mxu0 %v2884
        %4065 = vmatpush1.bf16.msra.mxu0 %v2883
        %4066 = vmatprep.subr.bf16.mxu0 %v2888
        %4067 = vmatpush1.bf16.msra.mxu0 %v2887
        %4068 = vmatprep.subr.bf16.mxu0 %v2892
        %4069 = vmatpush1.bf16.msra.mxu0 %v2891
        %4070 = vmatprep.subr.bf16.mxu0 %v2896
        %4071 = vmatpush1.bf16.msra.mxu0 %v2895
        %4072 = vmatprep.subr.bf16.mxu0 %v2900
        %4073 = vmatpush1.bf16.msra.mxu0 %v2899
        %4074 = vmatprep.subr.bf16.mxu0 %v2904
        %4075 = vmatpush1.bf16.msra.mxu0 %v2903
        %4076 = vmatprep.subr.bf16.mxu0 %v2908
        %4077 = vmatpush1.bf16.msra.mxu0 %v2907
        %4078 = vmatprep.subr.bf16.mxu0 %v2912
        %4079 = vmatpush1.bf16.msra.mxu0 %v2911
        %4080 = vmatprep.subr.bf16.mxu0 %v2916
        %4081 = vmatpush1.bf16.msra.mxu0 %v2915
        %4082 = vmatprep.subr.bf16.mxu0 %v2920
        %4083 = vmatpush1.bf16.msra.mxu0 %v2919
        %4084 = vmatprep.subr.bf16.mxu0 %v2924
        %4085 = vmatpush1.bf16.msra.mxu0 %v2923
        %4086 = vmatprep.subr.bf16.mxu0 %v2928
        %4087 = vmatpush1.bf16.msra.mxu0 %v2927
        %4088 = vmatprep.mubr.bf16.mxu0 %v346
        %4089 = vmatmul.mubr.bf16.gmra.mrb[0].mxu0 %v345
        %v4090 = vpop.f32.mrb[0].mxu0
        %v4091 = vadd.f32 %v4050, %v4090
        %v4092 = vpop.f32.mrb[0].mxu0
        %v4093 = vadd.f32 %v4052, %v4092
        %v4094 = vpop.f32.mrb[0].mxu0
        %v4095 = vpop.f32.mrb[0].mxu0
        %4096 = vdwg.mxu0
        %4097 = vst [vmem:[%s303] sm:$0xff] %v3763
        %4098 = vst [vmem:[%s303 + $0x8] sm:$0xff] %v3765
        %4099 = vst [vmem:[%s303 + $0x10] sm:$0xff] %v4091
        %4100 = vst [vmem:[%s303 + $0x18] sm:$0xff] %v4093
        %s4101 = sand.u32 %s146, 1
        %s4102 = scalar_lea.sflag [#allocation4], %s4101
        %s4103 = sand.u32 %s146, 1
        %s4104 = smul.addr %s4103, 32
        %s4105 = scalar_lea.vmem [#allocation9], %s4104
        // Predicated region
        $region53: #{tpu_custom_call.1} parent=35 // pred_check
          %p4106 = pneg %p156
        $region54: #{tpu_custom_call.1} parent=35 // pred_check_branch
          %4108 = sbr.rel (%p4106) target = $region56
        $region55: #{tpu_custom_call.1} parent=35 // pred_region
          %s4109 = smul.u32 4, %s25
          %s4111 = ssub.s32 512, 512
          %4112 = vsyncadd %s4102, %s4111
          %s4113 = smul.addr %s24, 8
          %s4114 = sadd.s32 %s4109, %s4113
          %s4115 = smul.addr %s4114, 128
          %s4116 = scalar_lea.hbm %s4, %s4115
          %s4118 = sshll.u32 %s4105, 4
          %s4119 = int_to_ptr.vmem [resolvable:$true] %s4118
          %4121 = dma.vmem_to_hbm [thread:$0]  %s4119, 512, %s4116, %s4102
        $region56: #{tpu_custom_call.1} parent=35 // pred_fallthru
          _
      $region36: #{tpu_custom_call.1} parent=5 // pred_fallthru
        _
      %p4122 = scmp.le.s32.totalorder 2, %s15
      // Predicated region
      $region57: #{tpu_custom_call.1} parent=5 // pred_check
        %p4123 = pneg %p4122
      $region58: #{tpu_custom_call.1} parent=5 // pred_check_branch
        %4125 = sbr.rel (%p4123) target = $region60
      $region59: #{tpu_custom_call.1} parent=5 // pred_region
        %s4126 = ssub.s32 %s15, 2
        // Predicated region
        $region61: #{tpu_custom_call.1} parent=59 // pred_check
          %p4127 = pneg %p162
        $region62: #{tpu_custom_call.1} parent=59 // pred_check_branch
          %4129 = sbr.rel (%p4127) target = $region64
        $region63: #{tpu_custom_call.1} parent=59 // pred_region
          %s4130 = sand.u32 %s147, 1
          %s4131 = scalar_lea.sflag [#allocation4], %s4130
          %s4132 = sand.u32 %s147, 1
          %s4133 = smul.addr %s4132, 32
          %s4134 = scalar_lea.vmem [#allocation9], %s4133
          %4135 = dma.done %s4131, 512
        $region64: #{tpu_custom_call.1} parent=59 // pred_fallthru
          _
      $region60: #{tpu_custom_call.1} parent=5 // pred_fallthru
        _
    $region6: #{tpu_custom_call.1} parent=1 // loop_footer
      %s19 = sadd.s32 1, %s15
    $region7: #{tpu_custom_call.1} parent=1 // loop_footer_branch
      %14 = sbr.rel target = $region3
    $region8: #{tpu_custom_call.1} parent=1 // loop_exit
      _
    %4136 = vsyncpa [#allocation3], 1
    %s4137 = scalar_lea.sflag [#allocation3], 1
    %4138 = vsyncpa %s4137, 1
    %4139 = vsyncpa [#allocation6], 1
    %4140 = vsyncpa [#allocation4], 1
    %s4141 = scalar_lea.sflag [#allocation4], 1
    %4142 = vsyncpa %s4141, 1

</llo_original>
